<compile_context>
chip_gen: v7x
topology: tpu7x:2x2x1
jax: 0.10.0
libtpu: 0.0.40
codegen_flags: <defaults>
</compile_context>

<pallas_src>
import jax
import jax.numpy as jnp
import numpy as np
from jax import lax
from jax.experimental import pallas as pl
from jax.experimental.pallas import tpu as pltpu

FC_PAD = 128  # fc widths (120 / 84 / 9) zero-padded to one lane-dense row


# ------------------------------ fused kernel ---------------------------------

def _make_kernel(H, W):
    """One image per grid step; activations laid out [C (sublanes), H*W (lanes)]."""
    S = H * W

    def kernel(x_ref, w1_ref, b1_ref, m1_ref, w2_ref, b2_ref, m2_ref, sel_ref,
               fw1_ref, fb1_ref, fw2_ref, fb2_ref, fw3_ref, fb3_ref, o_ref):
        C0 = x_ref.shape[1]
        C1 = w1_ref.shape[0]
        C2 = w2_ref.shape[0]

        def rot(x, k):
            # lane rotation: y[:, p] = x[:, (p + k) % S]  (two static slices + concat)
            k %= S
            if k == 0:
                return x
            return jnp.concatenate([x[:, k:], x[:, :k]], axis=1)

        def conv3x3_relu(xin, w_ref, b_ref, mask_ref, cin, dil):
            # SAME 3x3 conv (dilation `dil`) as 9 lane-shifted taps x cin broadcast
            # FMAs on the VPU; zero padding via precomputed 0/1 border masks.
            cout = w_ref.shape[0]
            acc = jnp.zeros((cout, S), jnp.float32) + b_ref[...]
            for dh in range(3):
                for dw in range(3):
                    t = dh * 3 + dw
                    if dh == 1 and dw == 1:
                        xt = xin                                      # centre tap, mask == 1
                    else:
                        off = dil * ((dh - 1) * W + (dw - 1))
                        xt = rot(xin, off) * mask_ref[t:t + 1, :]
                    base = t * cin
                    for ci in range(cin):
                        acc = acc + w_ref[:, base + ci:base + ci + 1] * xt[ci:ci + 1, :]
            return jnp.maximum(acc, 0.0)

        def pool_max(y, step):
            # 2x2 window max kept in registers; only window-aligned lanes are
            # consumed downstream (by masks / the selection matmul), so the
            # wrapped / misaligned lanes never matter.
            a = jnp.maximum(y, rot(y, step))
            b = jnp.maximum(rot(y, step * W), rot(y, step * (W + 1)))
            return jnp.maximum(a, b)

        x = x_ref[0]                                                  # [C0, S]
        y1 = conv3x3_relu(x, w1_ref, b1_ref, m1_ref, C0, dil=1)       # [C1, S]
        m1 = pool_max(y1, step=1)                                     # pool1 (valid at even/even)
        # conv2 == dilation-2 SAME conv over the full lane grid, evaluated at even/even.
        y2 = conv3x3_relu(m1, w2_ref, b2_ref, m2_ref, C1, dil=2)      # [C2, S]
        m2 = pool_max(y2, step=2)                                     # pool2 (valid at multiples of 4)
        # stride-4 subsample + row-major (H/4, W/4) ordering: one exact 0/1 selection
        # matmul on the otherwise idle MXU.
        bm = jnp.dot(m2, sel_ref[...], preferred_element_type=jnp.float32)  # [C2, H*W/16]
        # flatten in PyTorch NCHW `view` order (channel-major) -> lane-dense [1, H*W]
        feat = jnp.concatenate([bm[i:i + 1, :] for i in range(C2)], axis=1)
        h = jnp.maximum(jnp.dot(feat, fw1_ref[...],
                                preferred_element_type=jnp.float32) + fb1_ref[...], 0.0)
        h = jnp.maximum(jnp.dot(h, fw2_ref[...],
                                preferred_element_type=jnp.float32) + fb2_ref[...], 0.0)
        o_ref[0] = jnp.dot(h, fw3_ref[...],
                           preferred_element_type=jnp.float32) + fb3_ref[...]

    return kernel


# --------------------------------- wrapper ------------------------------------

def net_forward(x_nchw, p):
    N, C0, H, W = x_nchw.shape
    assert C0 == 3 and H % 4 == 0 and W % 4 == 0, "kernel assumes 3 channels, H,W % 4 == 0"
    S = H * W
    x_flat = x_nchw.astype(jnp.float32).reshape(N, C0, S)    # NCHW -> [N, C, H*W] (pure reshape)

    def full(a):                                             # whole-array, grid-invariant block
        return pl.BlockSpec(a.shape, lambda n, _nd=a.ndim: (0,) * _nd)

    out = pl.pallas_call(
        _make_kernel(H, W),
        out_shape=jax.ShapeDtypeStruct((N, 1, FC_PAD), jnp.float32),
        grid=(N,),
        in_specs=[pl.BlockSpec((1, C0, S), lambda n: (n, 0, 0)),
                  full(p["w1k"]), full(p["b1k"]), full(p["mask1"]),
                  full(p["w2k"]), full(p["b2k"]), full(p["mask2"]),
                  full(p["selp"]),
                  full(p["fw1p"]), full(p["fb1p"]), full(p["fw2p"]),
                  full(p["fb2p"]), full(p["fw3p"]), full(p["fb3p"])],
        out_specs=pl.BlockSpec((1, 1, FC_PAD), lambda n: (n, 0, 0)),
        compiler_params=pltpu.CompilerParams(dimension_semantics=("parallel",)),
    )(x_flat, p["w1k"], p["b1k"], p["mask1"], p["w2k"], p["b2k"], p["mask2"],
      p["selp"], p["fw1p"], p["fb1p"], p["fw2p"], p["fb2p"], p["fw3p"], p["fb3p"])
    return out[:, 0, :p["num_classes"]]


# --------------------------- deterministic params ------------------------------

def init_params(key, width, height):
    ks = jax.random.split(key, 10)

    def u(k, shape, fan_in):
        bound = 1.0 / np.sqrt(fan_in)
        return jax.random.uniform(k, shape, jnp.float32, -bound, bound)

    C0, C1, C2, NC = 3, 6, 16, 9
    H, W = height, width
    assert H % 4 == 0 and W % 4 == 0
    d = width * height                                    # fc1 in_features
    assert C2 * (H // 4) * (W // 4) == d                  # PyTorch flatten-size consistency

    w1 = u(ks[0], (3, 3, C0, C1), 9 * C0)                 # HWIO
    b1 = u(ks[1], (C1,), 9 * C0)
    w2 = u(ks[2], (3, 3, C1, C2), 9 * C1)
    b2 = u(ks[3], (C2,), 9 * C1)
    fw1 = u(ks[4], (d, 120), d)
    fb1 = u(ks[5], (120,), d)
    fw2 = u(ks[6], (120, 84), 120)
    fb2 = u(ks[7], (84,), 120)
    fw3 = u(ks[8], (84, NC), 84)
    fb3 = u(ks[9], (NC,), 84)

    # 0/1 border masks for the two convs on the flattened [H*W] lane axis
    def conv_masks(dil):
        m = np.zeros((9, H * W), np.float32)
        for dh in range(3):
            for dw in range(3):
                t = dh * 3 + dw
                for r in range(H):
                    for c in range(W):
                        rr, cc = r + dil * (dh - 1), c + dil * (dw - 1)
                        if 0 <= rr < H and 0 <= cc < W:
                            m[t, r * W + c] = 1.0
        return jnp.asarray(m)

    # 0/1 selection: picks lane (4*r)*W + 4*c into row-major (H/4, W/4) order
    H4, W4 = H // 4, W // 4
    sel = np.zeros((H * W, H4 * W4), np.float32)
    for r in range(H4):
        for c in range(W4):
            sel[(4 * r) * W + 4 * c, r * W4 + c] = 1.0

    padc = lambda a: jnp.pad(a, ((0, 0), (0, FC_PAD - a.shape[1])))
    return dict(
        # reference-layout parameters
        w1_hwio=w1, b1=b1, w2_hwio=w2, b2=b2,
        fw1=fw1, fb1=fb1, fw2=fw2, fb2=fb2, fw3=fw3, fb3_vec=fb3,
        # kernel-layout parameters (lane-dense)
        w1k=jnp.transpose(w1, (3, 0, 1, 2)).reshape(C1, 9 * C0),
        b1k=b1.reshape(C1, 1),
        w2k=jnp.transpose(w2, (3, 0, 1, 2)).reshape(C2, 9 * C1),
        b2k=b2.reshape(C2, 1),
        mask1=conv_masks(1), mask2=conv_masks(2),
        selp=jnp.asarray(sel),
        fw1p=padc(fw1),
        fb1p=padc(fb1.reshape(1, -1)),
        fw2p=jnp.pad(fw2, ((0, FC_PAD - 120), (0, FC_PAD - 84))),
        fb2p=padc(fb2.reshape(1, -1)),
        fw3p=jnp.pad(fw3, ((0, FC_PAD - 84), (0, FC_PAD - NC))),
        fb3p=padc(fb3.reshape(1, -1)),
        num_classes=NC,
    )


# ----------------------------- pure-JAX reference ------------------------------

def reference_forward(x_nchw, p, width, height):
    hp = lax.Precision.HIGHEST
    dn = ('NHWC', 'HWIO', 'NHWC')
    x = jnp.transpose(x_nchw.astype(jnp.float32), (0, 2, 3, 1))
    y = lax.conv_general_dilated(x, p["w1_hwio"], (1, 1), 'SAME',
                                 dimension_numbers=dn, precision=hp)
    y = jnp.maximum(y + p["b1"].reshape(1, 1, 1, -1), 0.0)
    y = lax.reduce_window(y, -jnp.inf, lax.max, (1, 2, 2, 1), (1, 2, 2, 1), 'VALID')
    y = lax.conv_general_dilated(y, p["w2_hwio"], (1, 1), 'SAME',
                                 dimension_numbers=dn, precision=hp)
    y = jnp.maximum(y + p["b2"].reshape(1, 1, 1, -1), 0.0)
    y = lax.reduce_window(y, -jnp.inf, lax.max, (1, 2, 2, 1), (1, 2, 2, 1), 'VALID')
    N = y.shape[0]
    feat = jnp.transpose(y, (0, 3, 1, 2)).reshape(N, width * height)
    h = jnp.maximum(jnp.dot(feat, p["fw1"], precision=hp) + p["fb1"], 0.0)
    h = jnp.maximum(jnp.dot(h, p["fw2"], precision=hp) + p["fb2"], 0.0)
    return jnp.dot(h, p["fw3"], precision=hp) + p["fb3_vec"]


# ----------------------------------- main --------------------------------------

if __name__ == "__main__":
    WIDTH = HEIGHT = 16   # small spatial size; fc1 in_features = 16*16 = 256
    key = jax.random.PRNGKey(0)
    kx, kp = jax.random.split(key)
    x = jax.random.normal(kx, (2, 3, HEIGHT, WIDTH), jnp.float32)   # NCHW input
    params = init_params(kp, WIDTH, HEIGHT)

    fwd = jax.jit(lambda xx: net_forward(xx, params))
    out = jax.block_until_ready(fwd(x))
    assert out.shape == (2, 9) and out.dtype == jnp.float32

    ref = reference_forward(x, params, WIDTH, HEIGHT)
    np.testing.assert_allclose(np.asarray(out), np.asarray(ref),
                               rtol=2e-4, atol=2e-4)
    print("KERNEL_OK")
</pallas_src>

<mosaic_0001>
module attributes {stable_mosaic.version = 11 : i64} {
  func.func @kernel(%arg0: i32, %arg1: memref<1x3x256xf32, #tpu.memory_space<vmem>>, %arg2: memref<6x27xf32, #tpu.memory_space<vmem>>, %arg3: memref<6x1xf32, #tpu.memory_space<vmem>>, %arg4: memref<9x256xf32, #tpu.memory_space<vmem>>, %arg5: memref<16x54xf32, #tpu.memory_space<vmem>>, %arg6: memref<16x1xf32, #tpu.memory_space<vmem>>, %arg7: memref<9x256xf32, #tpu.memory_space<vmem>>, %arg8: memref<256x16xf32, #tpu.memory_space<vmem>>, %arg9: memref<256x128xf32, #tpu.memory_space<vmem>>, %arg10: memref<1x128xf32, #tpu.memory_space<vmem>>, %arg11: memref<128x128xf32, #tpu.memory_space<vmem>>, %arg12: memref<1x128xf32, #tpu.memory_space<vmem>>, %arg13: memref<128x128xf32, #tpu.memory_space<vmem>>, %arg14: memref<1x128xf32, #tpu.memory_space<vmem>>, %arg15: memref<1x1x128xf32, #tpu.memory_space<vmem>>) attributes {dimension_semantics = [#tpu.dimension_semantics<parallel>], iteration_bounds = array<i64: 2>, scalar_prefetch = 0 : i64, scratch_operands = 0 : i64, tpu.core_type = #tpu.core_type<tc>, window_params = [{transform_indices = @transform_0, window_bounds = array<i64: 1, 3, 256>}, {pipeline_mode = #tpu.pipeline_mode<synchronous>, transform_indices = @transform_1, window_bounds = array<i64: 6, 27>}, {pipeline_mode = #tpu.pipeline_mode<synchronous>, transform_indices = @transform_2, window_bounds = array<i64: 6, 1>}, {pipeline_mode = #tpu.pipeline_mode<synchronous>, transform_indices = @transform_3, window_bounds = array<i64: 9, 256>}, {pipeline_mode = #tpu.pipeline_mode<synchronous>, transform_indices = @transform_4, window_bounds = array<i64: 16, 54>}, {pipeline_mode = #tpu.pipeline_mode<synchronous>, transform_indices = @transform_5, window_bounds = array<i64: 16, 1>}, {pipeline_mode = #tpu.pipeline_mode<synchronous>, transform_indices = @transform_6, window_bounds = array<i64: 9, 256>}, {pipeline_mode = #tpu.pipeline_mode<synchronous>, transform_indices = @transform_7, window_bounds = array<i64: 256, 16>}, {pipeline_mode = #tpu.pipeline_mode<synchronous>, transform_indices = @transform_8, window_bounds = array<i64: 256, 128>}, {pipeline_mode = #tpu.pipeline_mode<synchronous>, transform_indices = @transform_9, window_bounds = array<i64: 1, 128>}, {pipeline_mode = #tpu.pipeline_mode<synchronous>, transform_indices = @transform_10, window_bounds = array<i64: 128, 128>}, {pipeline_mode = #tpu.pipeline_mode<synchronous>, transform_indices = @transform_11, window_bounds = array<i64: 1, 128>}, {pipeline_mode = #tpu.pipeline_mode<synchronous>, transform_indices = @transform_12, window_bounds = array<i64: 128, 128>}, {pipeline_mode = #tpu.pipeline_mode<synchronous>, transform_indices = @transform_13, window_bounds = array<i64: 1, 128>}, {transform_indices = @transform_14, window_bounds = array<i64: 1, 1, 128>}]} {
    %c0 = arith.constant 0 : index
    %c0_0 = arith.constant 0 : index
    %c0_1 = arith.constant 0 : index
    %0 = vector.load %arg1[%c0, %c0_0, %c0_1] : memref<1x3x256xf32, #tpu.memory_space<vmem>>, vector<1x3x256xf32>
    %1 = vector.shape_cast %0 : vector<1x3x256xf32> to vector<3x256xf32>
    %cst = arith.constant 0.000000e+00 : f32
    %2 = vector.broadcast %cst : f32 to vector<6x256xf32>
    %c0_2 = arith.constant 0 : index
    %c0_3 = arith.constant 0 : index
    %3 = vector.load %arg3[%c0_2, %c0_3] : memref<6x1xf32, #tpu.memory_space<vmem>>, vector<6x1xf32>
    %4 = vector.broadcast %3 : vector<6x1xf32> to vector<6x256xf32>
    %5 = arith.addf %2, %4 : vector<6x256xf32>
    %6 = vector.extract_strided_slice %1 {offsets = [0, 239], sizes = [3, 17], strides = [1, 1]} : vector<3x256xf32> to vector<3x17xf32>
    %7 = vector.extract_strided_slice %1 {offsets = [0, 0], sizes = [3, 239], strides = [1, 1]} : vector<3x256xf32> to vector<3x239xf32>
    %8 = tpu.concatenate %6, %7 in 1 : vector<3x17xf32>, vector<3x239xf32> -> vector<3x256xf32>
    %c0_4 = arith.constant 0 : index
    %c0_5 = arith.constant 0 : index
    %9 = vector.load %arg4[%c0_4, %c0_5] : memref<9x256xf32, #tpu.memory_space<vmem>>, vector<1x256xf32>
    %10 = vector.broadcast %9 : vector<1x256xf32> to vector<3x256xf32>
    %11 = arith.mulf %8, %10 : vector<3x256xf32>
    %c0_6 = arith.constant 0 : index
    %c0_7 = arith.constant 0 : index
    %12 = vector.load %arg2[%c0_6, %c0_7] : memref<6x27xf32, #tpu.memory_space<vmem>>, vector<6x1xf32>
    %13 = vector.extract_strided_slice %11 {offsets = [0, 0], sizes = [1, 256], strides = [1, 1]} : vector<3x256xf32> to vector<1x256xf32>
    %14 = vector.broadcast %12 : vector<6x1xf32> to vector<6x256xf32>
    %15 = vector.broadcast %13 : vector<1x256xf32> to vector<6x256xf32>
    %16 = arith.mulf %14, %15 : vector<6x256xf32>
    %17 = arith.addf %5, %16 : vector<6x256xf32>
    %c0_8 = arith.constant 0 : index
    %c1 = arith.constant 1 : index
    %18 = vector.load %arg2[%c0_8, %c1] : memref<6x27xf32, #tpu.memory_space<vmem>>, vector<6x1xf32>
    %19 = vector.extract_strided_slice %11 {offsets = [1, 0], sizes = [1, 256], strides = [1, 1]} : vector<3x256xf32> to vector<1x256xf32>
    %20 = vector.broadcast %18 : vector<6x1xf32> to vector<6x256xf32>
    %21 = vector.broadcast %19 : vector<1x256xf32> to vector<6x256xf32>
    %22 = arith.mulf %20, %21 : vector<6x256xf32>
    %23 = arith.addf %17, %22 : vector<6x256xf32>
    %c0_9 = arith.constant 0 : index
    %c2 = arith.constant 2 : index
    %24 = vector.load %arg2[%c0_9, %c2] : memref<6x27xf32, #tpu.memory_space<vmem>>, vector<6x1xf32>
    %25 = vector.extract_strided_slice %11 {offsets = [2, 0], sizes = [1, 256], strides = [1, 1]} : vector<3x256xf32> to vector<1x256xf32>
    %26 = vector.broadcast %24 : vector<6x1xf32> to vector<6x256xf32>
    %27 = vector.broadcast %25 : vector<1x256xf32> to vector<6x256xf32>
    %28 = arith.mulf %26, %27 : vector<6x256xf32>
    %29 = arith.addf %23, %28 : vector<6x256xf32>
    %30 = vector.extract_strided_slice %1 {offsets = [0, 240], sizes = [3, 16], strides = [1, 1]} : vector<3x256xf32> to vector<3x16xf32>
    %31 = vector.extract_strided_slice %1 {offsets = [0, 0], sizes = [3, 240], strides = [1, 1]} : vector<3x256xf32> to vector<3x240xf32>
    %32 = tpu.concatenate %30, %31 in 1 : vector<3x16xf32>, vector<3x240xf32> -> vector<3x256xf32>
    %c1_10 = arith.constant 1 : index
    %c0_11 = arith.constant 0 : index
    %33 = vector.load %arg4[%c1_10, %c0_11] : memref<9x256xf32, #tpu.memory_space<vmem>>, vector<1x256xf32>
    %34 = vector.broadcast %33 : vector<1x256xf32> to vector<3x256xf32>
    %35 = arith.mulf %32, %34 : vector<3x256xf32>
    %c0_12 = arith.constant 0 : index
    %c3 = arith.constant 3 : index
    %36 = vector.load %arg2[%c0_12, %c3] : memref<6x27xf32, #tpu.memory_space<vmem>>, vector<6x1xf32>
    %37 = vector.extract_strided_slice %35 {offsets = [0, 0], sizes = [1, 256], strides = [1, 1]} : vector<3x256xf32> to vector<1x256xf32>
    %38 = vector.broadcast %36 : vector<6x1xf32> to vector<6x256xf32>
    %39 = vector.broadcast %37 : vector<1x256xf32> to vector<6x256xf32>
    %40 = arith.mulf %38, %39 : vector<6x256xf32>
    %41 = arith.addf %29, %40 : vector<6x256xf32>
    %c0_13 = arith.constant 0 : index
    %c4 = arith.constant 4 : index
    %42 = vector.load %arg2[%c0_13, %c4] : memref<6x27xf32, #tpu.memory_space<vmem>>, vector<6x1xf32>
    %43 = vector.extract_strided_slice %35 {offsets = [1, 0], sizes = [1, 256], strides = [1, 1]} : vector<3x256xf32> to vector<1x256xf32>
    %44 = vector.broadcast %42 : vector<6x1xf32> to vector<6x256xf32>
    %45 = vector.broadcast %43 : vector<1x256xf32> to vector<6x256xf32>
    %46 = arith.mulf %44, %45 : vector<6x256xf32>
    %47 = arith.addf %41, %46 : vector<6x256xf32>
    %c0_14 = arith.constant 0 : index
    %c5 = arith.constant 5 : index
    %48 = vector.load %arg2[%c0_14, %c5] : memref<6x27xf32, #tpu.memory_space<vmem>>, vector<6x1xf32>
    %49 = vector.extract_strided_slice %35 {offsets = [2, 0], sizes = [1, 256], strides = [1, 1]} : vector<3x256xf32> to vector<1x256xf32>
    %50 = vector.broadcast %48 : vector<6x1xf32> to vector<6x256xf32>
    %51 = vector.broadcast %49 : vector<1x256xf32> to vector<6x256xf32>
    %52 = arith.mulf %50, %51 : vector<6x256xf32>
    %53 = arith.addf %47, %52 : vector<6x256xf32>
    %54 = vector.extract_strided_slice %1 {offsets = [0, 241], sizes = [3, 15], strides = [1, 1]} : vector<3x256xf32> to vector<3x15xf32>
    %55 = vector.extract_strided_slice %1 {offsets = [0, 0], sizes = [3, 241], strides = [1, 1]} : vector<3x256xf32> to vector<3x241xf32>
    %56 = tpu.concatenate %54, %55 in 1 : vector<3x15xf32>, vector<3x241xf32> -> vector<3x256xf32>
    %c2_15 = arith.constant 2 : index
    %c0_16 = arith.constant 0 : index
    %57 = vector.load %arg4[%c2_15, %c0_16] : memref<9x256xf32, #tpu.memory_space<vmem>>, vector<1x256xf32>
    %58 = vector.broadcast %57 : vector<1x256xf32> to vector<3x256xf32>
    %59 = arith.mulf %56, %58 : vector<3x256xf32>
    %c0_17 = arith.constant 0 : index
    %c6 = arith.constant 6 : index
    %60 = vector.load %arg2[%c0_17, %c6] : memref<6x27xf32, #tpu.memory_space<vmem>>, vector<6x1xf32>
    %61 = vector.extract_strided_slice %59 {offsets = [0, 0], sizes = [1, 256], strides = [1, 1]} : vector<3x256xf32> to vector<1x256xf32>
    %62 = vector.broadcast %60 : vector<6x1xf32> to vector<6x256xf32>
    %63 = vector.broadcast %61 : vector<1x256xf32> to vector<6x256xf32>
    %64 = arith.mulf %62, %63 : vector<6x256xf32>
    %65 = arith.addf %53, %64 : vector<6x256xf32>
    %c0_18 = arith.constant 0 : index
    %c7 = arith.constant 7 : index
    %66 = vector.load %arg2[%c0_18, %c7] : memref<6x27xf32, #tpu.memory_space<vmem>>, vector<6x1xf32>
    %67 = vector.extract_strided_slice %59 {offsets = [1, 0], sizes = [1, 256], strides = [1, 1]} : vector<3x256xf32> to vector<1x256xf32>
    %68 = vector.broadcast %66 : vector<6x1xf32> to vector<6x256xf32>
    %69 = vector.broadcast %67 : vector<1x256xf32> to vector<6x256xf32>
    %70 = arith.mulf %68, %69 : vector<6x256xf32>
    %71 = arith.addf %65, %70 : vector<6x256xf32>
    %c0_19 = arith.constant 0 : index
    %c8 = arith.constant 8 : index
    %72 = vector.load %arg2[%c0_19, %c8] : memref<6x27xf32, #tpu.memory_space<vmem>>, vector<6x1xf32>
    %73 = vector.extract_strided_slice %59 {offsets = [2, 0], sizes = [1, 256], strides = [1, 1]} : vector<3x256xf32> to vector<1x256xf32>
    %74 = vector.broadcast %72 : vector<6x1xf32> to vector<6x256xf32>
    %75 = vector.broadcast %73 : vector<1x256xf32> to vector<6x256xf32>
    %76 = arith.mulf %74, %75 : vector<6x256xf32>
    %77 = arith.addf %71, %76 : vector<6x256xf32>
    %78 = vector.extract_strided_slice %1 {offsets = [0, 255], sizes = [3, 1], strides = [1, 1]} : vector<3x256xf32> to vector<3x1xf32>
    %79 = vector.extract_strided_slice %1 {offsets = [0, 0], sizes = [3, 255], strides = [1, 1]} : vector<3x256xf32> to vector<3x255xf32>
    %80 = tpu.concatenate %78, %79 in 1 : vector<3x1xf32>, vector<3x255xf32> -> vector<3x256xf32>
    %c3_20 = arith.constant 3 : index
    %c0_21 = arith.constant 0 : index
    %81 = vector.load %arg4[%c3_20, %c0_21] : memref<9x256xf32, #tpu.memory_space<vmem>>, vector<1x256xf32>
    %82 = vector.broadcast %81 : vector<1x256xf32> to vector<3x256xf32>
    %83 = arith.mulf %80, %82 : vector<3x256xf32>
    %c0_22 = arith.constant 0 : index
    %c9 = arith.constant 9 : index
    %84 = vector.load %arg2[%c0_22, %c9] : memref<6x27xf32, #tpu.memory_space<vmem>>, vector<6x1xf32>
    %85 = vector.extract_strided_slice %83 {offsets = [0, 0], sizes = [1, 256], strides = [1, 1]} : vector<3x256xf32> to vector<1x256xf32>
    %86 = vector.broadcast %84 : vector<6x1xf32> to vector<6x256xf32>
    %87 = vector.broadcast %85 : vector<1x256xf32> to vector<6x256xf32>
    %88 = arith.mulf %86, %87 : vector<6x256xf32>
    %89 = arith.addf %77, %88 : vector<6x256xf32>
    %c0_23 = arith.constant 0 : index
    %c10 = arith.constant 10 : index
    %90 = vector.load %arg2[%c0_23, %c10] : memref<6x27xf32, #tpu.memory_space<vmem>>, vector<6x1xf32>
    %91 = vector.extract_strided_slice %83 {offsets = [1, 0], sizes = [1, 256], strides = [1, 1]} : vector<3x256xf32> to vector<1x256xf32>
    %92 = vector.broadcast %90 : vector<6x1xf32> to vector<6x256xf32>
    %93 = vector.broadcast %91 : vector<1x256xf32> to vector<6x256xf32>
    %94 = arith.mulf %92, %93 : vector<6x256xf32>
    %95 = arith.addf %89, %94 : vector<6x256xf32>
    %c0_24 = arith.constant 0 : index
    %c11 = arith.constant 11 : index
    %96 = vector.load %arg2[%c0_24, %c11] : memref<6x27xf32, #tpu.memory_space<vmem>>, vector<6x1xf32>
    %97 = vector.extract_strided_slice %83 {offsets = [2, 0], sizes = [1, 256], strides = [1, 1]} : vector<3x256xf32> to vector<1x256xf32>
    %98 = vector.broadcast %96 : vector<6x1xf32> to vector<6x256xf32>
    %99 = vector.broadcast %97 : vector<1x256xf32> to vector<6x256xf32>
    %100 = arith.mulf %98, %99 : vector<6x256xf32>
    %101 = arith.addf %95, %100 : vector<6x256xf32>
    %c0_25 = arith.constant 0 : index
    %c12 = arith.constant 12 : index
    %102 = vector.load %arg2[%c0_25, %c12] : memref<6x27xf32, #tpu.memory_space<vmem>>, vector<6x1xf32>
    %103 = vector.extract_strided_slice %1 {offsets = [0, 0], sizes = [1, 256], strides = [1, 1]} : vector<3x256xf32> to vector<1x256xf32>
    %104 = vector.broadcast %102 : vector<6x1xf32> to vector<6x256xf32>
    %105 = vector.broadcast %103 : vector<1x256xf32> to vector<6x256xf32>
    %106 = arith.mulf %104, %105 : vector<6x256xf32>
    %107 = arith.addf %101, %106 : vector<6x256xf32>
    %c0_26 = arith.constant 0 : index
    %c13 = arith.constant 13 : index
    %108 = vector.load %arg2[%c0_26, %c13] : memref<6x27xf32, #tpu.memory_space<vmem>>, vector<6x1xf32>
    %109 = vector.extract_strided_slice %1 {offsets = [1, 0], sizes = [1, 256], strides = [1, 1]} : vector<3x256xf32> to vector<1x256xf32>
    %110 = vector.broadcast %108 : vector<6x1xf32> to vector<6x256xf32>
    %111 = vector.broadcast %109 : vector<1x256xf32> to vector<6x256xf32>
    %112 = arith.mulf %110, %111 : vector<6x256xf32>
    %113 = arith.addf %107, %112 : vector<6x256xf32>
    %c0_27 = arith.constant 0 : index
    %c14 = arith.constant 14 : index
    %114 = vector.load %arg2[%c0_27, %c14] : memref<6x27xf32, #tpu.memory_space<vmem>>, vector<6x1xf32>
    %115 = vector.extract_strided_slice %1 {offsets = [2, 0], sizes = [1, 256], strides = [1, 1]} : vector<3x256xf32> to vector<1x256xf32>
    %116 = vector.broadcast %114 : vector<6x1xf32> to vector<6x256xf32>
    %117 = vector.broadcast %115 : vector<1x256xf32> to vector<6x256xf32>
    %118 = arith.mulf %116, %117 : vector<6x256xf32>
    %119 = arith.addf %113, %118 : vector<6x256xf32>
    %120 = vector.extract_strided_slice %1 {offsets = [0, 1], sizes = [3, 255], strides = [1, 1]} : vector<3x256xf32> to vector<3x255xf32>
    %121 = vector.extract_strided_slice %1 {offsets = [0, 0], sizes = [3, 1], strides = [1, 1]} : vector<3x256xf32> to vector<3x1xf32>
    %122 = tpu.concatenate %120, %121 in 1 : vector<3x255xf32>, vector<3x1xf32> -> vector<3x256xf32>
    %c5_28 = arith.constant 5 : index
    %c0_29 = arith.constant 0 : index
    %123 = vector.load %arg4[%c5_28, %c0_29] : memref<9x256xf32, #tpu.memory_space<vmem>>, vector<1x256xf32>
    %124 = vector.broadcast %123 : vector<1x256xf32> to vector<3x256xf32>
    %125 = arith.mulf %122, %124 : vector<3x256xf32>
    %c0_30 = arith.constant 0 : index
    %c15 = arith.constant 15 : index
    %126 = vector.load %arg2[%c0_30, %c15] : memref<6x27xf32, #tpu.memory_space<vmem>>, vector<6x1xf32>
    %127 = vector.extract_strided_slice %125 {offsets = [0, 0], sizes = [1, 256], strides = [1, 1]} : vector<3x256xf32> to vector<1x256xf32>
    %128 = vector.broadcast %126 : vector<6x1xf32> to vector<6x256xf32>
    %129 = vector.broadcast %127 : vector<1x256xf32> to vector<6x256xf32>
    %130 = arith.mulf %128, %129 : vector<6x256xf32>
    %131 = arith.addf %119, %130 : vector<6x256xf32>
    %c0_31 = arith.constant 0 : index
    %c16 = arith.constant 16 : index
    %132 = vector.load %arg2[%c0_31, %c16] : memref<6x27xf32, #tpu.memory_space<vmem>>, vector<6x1xf32>
    %133 = vector.extract_strided_slice %125 {offsets = [1, 0], sizes = [1, 256], strides = [1, 1]} : vector<3x256xf32> to vector<1x256xf32>
    %134 = vector.broadcast %132 : vector<6x1xf32> to vector<6x256xf32>
    %135 = vector.broadcast %133 : vector<1x256xf32> to vector<6x256xf32>
    %136 = arith.mulf %134, %135 : vector<6x256xf32>
    %137 = arith.addf %131, %136 : vector<6x256xf32>
    %c0_32 = arith.constant 0 : index
    %c17 = arith.constant 17 : index
    %138 = vector.load %arg2[%c0_32, %c17] : memref<6x27xf32, #tpu.memory_space<vmem>>, vector<6x1xf32>
    %139 = vector.extract_strided_slice %125 {offsets = [2, 0], sizes = [1, 256], strides = [1, 1]} : vector<3x256xf32> to vector<1x256xf32>
    %140 = vector.broadcast %138 : vector<6x1xf32> to vector<6x256xf32>
    %141 = vector.broadcast %139 : vector<1x256xf32> to vector<6x256xf32>
    %142 = arith.mulf %140, %141 : vector<6x256xf32>
    %143 = arith.addf %137, %142 : vector<6x256xf32>
    %144 = vector.extract_strided_slice %1 {offsets = [0, 15], sizes = [3, 241], strides = [1, 1]} : vector<3x256xf32> to vector<3x241xf32>
    %145 = vector.extract_strided_slice %1 {offsets = [0, 0], sizes = [3, 15], strides = [1, 1]} : vector<3x256xf32> to vector<3x15xf32>
    %146 = tpu.concatenate %144, %145 in 1 : vector<3x241xf32>, vector<3x15xf32> -> vector<3x256xf32>
    %c6_33 = arith.constant 6 : index
    %c0_34 = arith.constant 0 : index
    %147 = vector.load %arg4[%c6_33, %c0_34] : memref<9x256xf32, #tpu.memory_space<vmem>>, vector<1x256xf32>
    %148 = vector.broadcast %147 : vector<1x256xf32> to vector<3x256xf32>
    %149 = arith.mulf %146, %148 : vector<3x256xf32>
    %c0_35 = arith.constant 0 : index
    %c18 = arith.constant 18 : index
    %150 = vector.load %arg2[%c0_35, %c18] : memref<6x27xf32, #tpu.memory_space<vmem>>, vector<6x1xf32>
    %151 = vector.extract_strided_slice %149 {offsets = [0, 0], sizes = [1, 256], strides = [1, 1]} : vector<3x256xf32> to vector<1x256xf32>
    %152 = vector.broadcast %150 : vector<6x1xf32> to vector<6x256xf32>
    %153 = vector.broadcast %151 : vector<1x256xf32> to vector<6x256xf32>
    %154 = arith.mulf %152, %153 : vector<6x256xf32>
    %155 = arith.addf %143, %154 : vector<6x256xf32>
    %c0_36 = arith.constant 0 : index
    %c19 = arith.constant 19 : index
    %156 = vector.load %arg2[%c0_36, %c19] : memref<6x27xf32, #tpu.memory_space<vmem>>, vector<6x1xf32>
    %157 = vector.extract_strided_slice %149 {offsets = [1, 0], sizes = [1, 256], strides = [1, 1]} : vector<3x256xf32> to vector<1x256xf32>
    %158 = vector.broadcast %156 : vector<6x1xf32> to vector<6x256xf32>
    %159 = vector.broadcast %157 : vector<1x256xf32> to vector<6x256xf32>
    %160 = arith.mulf %158, %159 : vector<6x256xf32>
    %161 = arith.addf %155, %160 : vector<6x256xf32>
    %c0_37 = arith.constant 0 : index
    %c20 = arith.constant 20 : index
    %162 = vector.load %arg2[%c0_37, %c20] : memref<6x27xf32, #tpu.memory_space<vmem>>, vector<6x1xf32>
    %163 = vector.extract_strided_slice %149 {offsets = [2, 0], sizes = [1, 256], strides = [1, 1]} : vector<3x256xf32> to vector<1x256xf32>
    %164 = vector.broadcast %162 : vector<6x1xf32> to vector<6x256xf32>
    %165 = vector.broadcast %163 : vector<1x256xf32> to vector<6x256xf32>
    %166 = arith.mulf %164, %165 : vector<6x256xf32>
    %167 = arith.addf %161, %166 : vector<6x256xf32>
    %168 = vector.extract_strided_slice %1 {offsets = [0, 16], sizes = [3, 240], strides = [1, 1]} : vector<3x256xf32> to vector<3x240xf32>
    %169 = vector.extract_strided_slice %1 {offsets = [0, 0], sizes = [3, 16], strides = [1, 1]} : vector<3x256xf32> to vector<3x16xf32>
    %170 = tpu.concatenate %168, %169 in 1 : vector<3x240xf32>, vector<3x16xf32> -> vector<3x256xf32>
    %c7_38 = arith.constant 7 : index
    %c0_39 = arith.constant 0 : index
    %171 = vector.load %arg4[%c7_38, %c0_39] : memref<9x256xf32, #tpu.memory_space<vmem>>, vector<1x256xf32>
    %172 = vector.broadcast %171 : vector<1x256xf32> to vector<3x256xf32>
    %173 = arith.mulf %170, %172 : vector<3x256xf32>
    %c0_40 = arith.constant 0 : index
    %c21 = arith.constant 21 : index
    %174 = vector.load %arg2[%c0_40, %c21] : memref<6x27xf32, #tpu.memory_space<vmem>>, vector<6x1xf32>
    %175 = vector.extract_strided_slice %173 {offsets = [0, 0], sizes = [1, 256], strides = [1, 1]} : vector<3x256xf32> to vector<1x256xf32>
    %176 = vector.broadcast %174 : vector<6x1xf32> to vector<6x256xf32>
    %177 = vector.broadcast %175 : vector<1x256xf32> to vector<6x256xf32>
    %178 = arith.mulf %176, %177 : vector<6x256xf32>
    %179 = arith.addf %167, %178 : vector<6x256xf32>
    %c0_41 = arith.constant 0 : index
    %c22 = arith.constant 22 : index
    %180 = vector.load %arg2[%c0_41, %c22] : memref<6x27xf32, #tpu.memory_space<vmem>>, vector<6x1xf32>
    %181 = vector.extract_strided_slice %173 {offsets = [1, 0], sizes = [1, 256], strides = [1, 1]} : vector<3x256xf32> to vector<1x256xf32>
    %182 = vector.broadcast %180 : vector<6x1xf32> to vector<6x256xf32>
    %183 = vector.broadcast %181 : vector<1x256xf32> to vector<6x256xf32>
    %184 = arith.mulf %182, %183 : vector<6x256xf32>
    %185 = arith.addf %179, %184 : vector<6x256xf32>
    %c0_42 = arith.constant 0 : index
    %c23 = arith.constant 23 : index
    %186 = vector.load %arg2[%c0_42, %c23] : memref<6x27xf32, #tpu.memory_space<vmem>>, vector<6x1xf32>
    %187 = vector.extract_strided_slice %173 {offsets = [2, 0], sizes = [1, 256], strides = [1, 1]} : vector<3x256xf32> to vector<1x256xf32>
    %188 = vector.broadcast %186 : vector<6x1xf32> to vector<6x256xf32>
    %189 = vector.broadcast %187 : vector<1x256xf32> to vector<6x256xf32>
    %190 = arith.mulf %188, %189 : vector<6x256xf32>
    %191 = arith.addf %185, %190 : vector<6x256xf32>
    %192 = vector.extract_strided_slice %1 {offsets = [0, 17], sizes = [3, 239], strides = [1, 1]} : vector<3x256xf32> to vector<3x239xf32>
    %193 = vector.extract_strided_slice %1 {offsets = [0, 0], sizes = [3, 17], strides = [1, 1]} : vector<3x256xf32> to vector<3x17xf32>
    %194 = tpu.concatenate %192, %193 in 1 : vector<3x239xf32>, vector<3x17xf32> -> vector<3x256xf32>
    %c8_43 = arith.constant 8 : index
    %c0_44 = arith.constant 0 : index
    %195 = vector.load %arg4[%c8_43, %c0_44] : memref<9x256xf32, #tpu.memory_space<vmem>>, vector<1x256xf32>
    %196 = vector.broadcast %195 : vector<1x256xf32> to vector<3x256xf32>
    %197 = arith.mulf %194, %196 : vector<3x256xf32>
    %c0_45 = arith.constant 0 : index
    %c24 = arith.constant 24 : index
    %198 = vector.load %arg2[%c0_45, %c24] : memref<6x27xf32, #tpu.memory_space<vmem>>, vector<6x1xf32>
    %199 = vector.extract_strided_slice %197 {offsets = [0, 0], sizes = [1, 256], strides = [1, 1]} : vector<3x256xf32> to vector<1x256xf32>
    %200 = vector.broadcast %198 : vector<6x1xf32> to vector<6x256xf32>
    %201 = vector.broadcast %199 : vector<1x256xf32> to vector<6x256xf32>
    %202 = arith.mulf %200, %201 : vector<6x256xf32>
    %203 = arith.addf %191, %202 : vector<6x256xf32>
    %c0_46 = arith.constant 0 : index
    %c25 = arith.constant 25 : index
    %204 = vector.load %arg2[%c0_46, %c25] : memref<6x27xf32, #tpu.memory_space<vmem>>, vector<6x1xf32>
    %205 = vector.extract_strided_slice %197 {offsets = [1, 0], sizes = [1, 256], strides = [1, 1]} : vector<3x256xf32> to vector<1x256xf32>
    %206 = vector.broadcast %204 : vector<6x1xf32> to vector<6x256xf32>
    %207 = vector.broadcast %205 : vector<1x256xf32> to vector<6x256xf32>
    %208 = arith.mulf %206, %207 : vector<6x256xf32>
    %209 = arith.addf %203, %208 : vector<6x256xf32>
    %c0_47 = arith.constant 0 : index
    %c26 = arith.constant 26 : index
    %210 = vector.load %arg2[%c0_47, %c26] : memref<6x27xf32, #tpu.memory_space<vmem>>, vector<6x1xf32>
    %211 = vector.extract_strided_slice %197 {offsets = [2, 0], sizes = [1, 256], strides = [1, 1]} : vector<3x256xf32> to vector<1x256xf32>
    %212 = vector.broadcast %210 : vector<6x1xf32> to vector<6x256xf32>
    %213 = vector.broadcast %211 : vector<1x256xf32> to vector<6x256xf32>
    %214 = arith.mulf %212, %213 : vector<6x256xf32>
    %215 = arith.addf %209, %214 : vector<6x256xf32>
    %cst_48 = arith.constant 0.000000e+00 : f32
    %216 = vector.broadcast %cst_48 : f32 to vector<6x256xf32>
    %217 = arith.maximumf %215, %216 : vector<6x256xf32>
    %218 = vector.extract_strided_slice %217 {offsets = [0, 1], sizes = [6, 255], strides = [1, 1]} : vector<6x256xf32> to vector<6x255xf32>
    %219 = vector.extract_strided_slice %217 {offsets = [0, 0], sizes = [6, 1], strides = [1, 1]} : vector<6x256xf32> to vector<6x1xf32>
    %220 = tpu.concatenate %218, %219 in 1 : vector<6x255xf32>, vector<6x1xf32> -> vector<6x256xf32>
    %221 = arith.maximumf %217, %220 : vector<6x256xf32>
    %222 = vector.extract_strided_slice %217 {offsets = [0, 16], sizes = [6, 240], strides = [1, 1]} : vector<6x256xf32> to vector<6x240xf32>
    %223 = vector.extract_strided_slice %217 {offsets = [0, 0], sizes = [6, 16], strides = [1, 1]} : vector<6x256xf32> to vector<6x16xf32>
    %224 = tpu.concatenate %222, %223 in 1 : vector<6x240xf32>, vector<6x16xf32> -> vector<6x256xf32>
    %225 = vector.extract_strided_slice %217 {offsets = [0, 17], sizes = [6, 239], strides = [1, 1]} : vector<6x256xf32> to vector<6x239xf32>
    %226 = vector.extract_strided_slice %217 {offsets = [0, 0], sizes = [6, 17], strides = [1, 1]} : vector<6x256xf32> to vector<6x17xf32>
    %227 = tpu.concatenate %225, %226 in 1 : vector<6x239xf32>, vector<6x17xf32> -> vector<6x256xf32>
    %228 = arith.maximumf %224, %227 : vector<6x256xf32>
    %229 = arith.maximumf %221, %228 : vector<6x256xf32>
    %cst_49 = arith.constant 0.000000e+00 : f32
    %230 = vector.broadcast %cst_49 : f32 to vector<16x256xf32>
    %c0_50 = arith.constant 0 : index
    %c0_51 = arith.constant 0 : index
    %231 = vector.load %arg6[%c0_50, %c0_51] : memref<16x1xf32, #tpu.memory_space<vmem>>, vector<16x1xf32>
    %232 = vector.broadcast %231 : vector<16x1xf32> to vector<16x256xf32>
    %233 = arith.addf %230, %232 : vector<16x256xf32>
    %234 = vector.extract_strided_slice %229 {offsets = [0, 222], sizes = [6, 34], strides = [1, 1]} : vector<6x256xf32> to vector<6x34xf32>
    %235 = vector.extract_strided_slice %229 {offsets = [0, 0], sizes = [6, 222], strides = [1, 1]} : vector<6x256xf32> to vector<6x222xf32>
    %236 = tpu.concatenate %234, %235 in 1 : vector<6x34xf32>, vector<6x222xf32> -> vector<6x256xf32>
    %c0_52 = arith.constant 0 : index
    %c0_53 = arith.constant 0 : index
    %237 = vector.load %arg7[%c0_52, %c0_53] : memref<9x256xf32, #tpu.memory_space<vmem>>, vector<1x256xf32>
    %238 = vector.broadcast %237 : vector<1x256xf32> to vector<6x256xf32>
    %239 = arith.mulf %236, %238 : vector<6x256xf32>
    %c0_54 = arith.constant 0 : index
    %c0_55 = arith.constant 0 : index
    %240 = vector.load %arg5[%c0_54, %c0_55] : memref<16x54xf32, #tpu.memory_space<vmem>>, vector<16x1xf32>
    %241 = vector.extract_strided_slice %239 {offsets = [0, 0], sizes = [1, 256], strides = [1, 1]} : vector<6x256xf32> to vector<1x256xf32>
    %242 = vector.broadcast %240 : vector<16x1xf32> to vector<16x256xf32>
    %243 = vector.broadcast %241 : vector<1x256xf32> to vector<16x256xf32>
    %244 = arith.mulf %242, %243 : vector<16x256xf32>
    %245 = arith.addf %233, %244 : vector<16x256xf32>
    %c0_56 = arith.constant 0 : index
    %c1_57 = arith.constant 1 : index
    %246 = vector.load %arg5[%c0_56, %c1_57] : memref<16x54xf32, #tpu.memory_space<vmem>>, vector<16x1xf32>
    %247 = vector.extract_strided_slice %239 {offsets = [1, 0], sizes = [1, 256], strides = [1, 1]} : vector<6x256xf32> to vector<1x256xf32>
    %248 = vector.broadcast %246 : vector<16x1xf32> to vector<16x256xf32>
    %249 = vector.broadcast %247 : vector<1x256xf32> to vector<16x256xf32>
    %250 = arith.mulf %248, %249 : vector<16x256xf32>
    %251 = arith.addf %245, %250 : vector<16x256xf32>
    %c0_58 = arith.constant 0 : index
    %c2_59 = arith.constant 2 : index
    %252 = vector.load %arg5[%c0_58, %c2_59] : memref<16x54xf32, #tpu.memory_space<vmem>>, vector<16x1xf32>
    %253 = vector.extract_strided_slice %239 {offsets = [2, 0], sizes = [1, 256], strides = [1, 1]} : vector<6x256xf32> to vector<1x256xf32>
    %254 = vector.broadcast %252 : vector<16x1xf32> to vector<16x256xf32>
    %255 = vector.broadcast %253 : vector<1x256xf32> to vector<16x256xf32>
    %256 = arith.mulf %254, %255 : vector<16x256xf32>
    %257 = arith.addf %251, %256 : vector<16x256xf32>
    %c0_60 = arith.constant 0 : index
    %c3_61 = arith.constant 3 : index
    %258 = vector.load %arg5[%c0_60, %c3_61] : memref<16x54xf32, #tpu.memory_space<vmem>>, vector<16x1xf32>
    %259 = vector.extract_strided_slice %239 {offsets = [3, 0], sizes = [1, 256], strides = [1, 1]} : vector<6x256xf32> to vector<1x256xf32>
    %260 = vector.broadcast %258 : vector<16x1xf32> to vector<16x256xf32>
    %261 = vector.broadcast %259 : vector<1x256xf32> to vector<16x256xf32>
    %262 = arith.mulf %260, %261 : vector<16x256xf32>
    %263 = arith.addf %257, %262 : vector<16x256xf32>
    %c0_62 = arith.constant 0 : index
    %c4_63 = arith.constant 4 : index
    %264 = vector.load %arg5[%c0_62, %c4_63] : memref<16x54xf32, #tpu.memory_space<vmem>>, vector<16x1xf32>
    %265 = vector.extract_strided_slice %239 {offsets = [4, 0], sizes = [1, 256], strides = [1, 1]} : vector<6x256xf32> to vector<1x256xf32>
    %266 = vector.broadcast %264 : vector<16x1xf32> to vector<16x256xf32>
    %267 = vector.broadcast %265 : vector<1x256xf32> to vector<16x256xf32>
    %268 = arith.mulf %266, %267 : vector<16x256xf32>
    %269 = arith.addf %263, %268 : vector<16x256xf32>
    %c0_64 = arith.constant 0 : index
    %c5_65 = arith.constant 5 : index
    %270 = vector.load %arg5[%c0_64, %c5_65] : memref<16x54xf32, #tpu.memory_space<vmem>>, vector<16x1xf32>
    %271 = vector.extract_strided_slice %239 {offsets = [5, 0], sizes = [1, 256], strides = [1, 1]} : vector<6x256xf32> to vector<1x256xf32>
    %272 = vector.broadcast %270 : vector<16x1xf32> to vector<16x256xf32>
    %273 = vector.broadcast %271 : vector<1x256xf32> to vector<16x256xf32>
    %274 = arith.mulf %272, %273 : vector<16x256xf32>
    %275 = arith.addf %269, %274 : vector<16x256xf32>
    %276 = vector.extract_strided_slice %229 {offsets = [0, 224], sizes = [6, 32], strides = [1, 1]} : vector<6x256xf32> to vector<6x32xf32>
    %277 = vector.extract_strided_slice %229 {offsets = [0, 0], sizes = [6, 224], strides = [1, 1]} : vector<6x256xf32> to vector<6x224xf32>
    %278 = tpu.concatenate %276, %277 in 1 : vector<6x32xf32>, vector<6x224xf32> -> vector<6x256xf32>
    %c1_66 = arith.constant 1 : index
    %c0_67 = arith.constant 0 : index
    %279 = vector.load %arg7[%c1_66, %c0_67] : memref<9x256xf32, #tpu.memory_space<vmem>>, vector<1x256xf32>
    %280 = vector.broadcast %279 : vector<1x256xf32> to vector<6x256xf32>
    %281 = arith.mulf %278, %280 : vector<6x256xf32>
    %c0_68 = arith.constant 0 : index
    %c6_69 = arith.constant 6 : index
    %282 = vector.load %arg5[%c0_68, %c6_69] : memref<16x54xf32, #tpu.memory_space<vmem>>, vector<16x1xf32>
    %283 = vector.extract_strided_slice %281 {offsets = [0, 0], sizes = [1, 256], strides = [1, 1]} : vector<6x256xf32> to vector<1x256xf32>
    %284 = vector.broadcast %282 : vector<16x1xf32> to vector<16x256xf32>
    %285 = vector.broadcast %283 : vector<1x256xf32> to vector<16x256xf32>
    %286 = arith.mulf %284, %285 : vector<16x256xf32>
    %287 = arith.addf %275, %286 : vector<16x256xf32>
    %c0_70 = arith.constant 0 : index
    %c7_71 = arith.constant 7 : index
    %288 = vector.load %arg5[%c0_70, %c7_71] : memref<16x54xf32, #tpu.memory_space<vmem>>, vector<16x1xf32>
    %289 = vector.extract_strided_slice %281 {offsets = [1, 0], sizes = [1, 256], strides = [1, 1]} : vector<6x256xf32> to vector<1x256xf32>
    %290 = vector.broadcast %288 : vector<16x1xf32> to vector<16x256xf32>
    %291 = vector.broadcast %289 : vector<1x256xf32> to vector<16x256xf32>
    %292 = arith.mulf %290, %291 : vector<16x256xf32>
    %293 = arith.addf %287, %292 : vector<16x256xf32>
    %c0_72 = arith.constant 0 : index
    %c8_73 = arith.constant 8 : index
    %294 = vector.load %arg5[%c0_72, %c8_73] : memref<16x54xf32, #tpu.memory_space<vmem>>, vector<16x1xf32>
    %295 = vector.extract_strided_slice %281 {offsets = [2, 0], sizes = [1, 256], strides = [1, 1]} : vector<6x256xf32> to vector<1x256xf32>
    %296 = vector.broadcast %294 : vector<16x1xf32> to vector<16x256xf32>
    %297 = vector.broadcast %295 : vector<1x256xf32> to vector<16x256xf32>
    %298 = arith.mulf %296, %297 : vector<16x256xf32>
    %299 = arith.addf %293, %298 : vector<16x256xf32>
    %c0_74 = arith.constant 0 : index
    %c9_75 = arith.constant 9 : index
    %300 = vector.load %arg5[%c0_74, %c9_75] : memref<16x54xf32, #tpu.memory_space<vmem>>, vector<16x1xf32>
    %301 = vector.extract_strided_slice %281 {offsets = [3, 0], sizes = [1, 256], strides = [1, 1]} : vector<6x256xf32> to vector<1x256xf32>
    %302 = vector.broadcast %300 : vector<16x1xf32> to vector<16x256xf32>
    %303 = vector.broadcast %301 : vector<1x256xf32> to vector<16x256xf32>
    %304 = arith.mulf %302, %303 : vector<16x256xf32>
    %305 = arith.addf %299, %304 : vector<16x256xf32>
    %c0_76 = arith.constant 0 : index
    %c10_77 = arith.constant 10 : index
    %306 = vector.load %arg5[%c0_76, %c10_77] : memref<16x54xf32, #tpu.memory_space<vmem>>, vector<16x1xf32>
    %307 = vector.extract_strided_slice %281 {offsets = [4, 0], sizes = [1, 256], strides = [1, 1]} : vector<6x256xf32> to vector<1x256xf32>
    %308 = vector.broadcast %306 : vector<16x1xf32> to vector<16x256xf32>
    %309 = vector.broadcast %307 : vector<1x256xf32> to vector<16x256xf32>
    %310 = arith.mulf %308, %309 : vector<16x256xf32>
    %311 = arith.addf %305, %310 : vector<16x256xf32>
    %c0_78 = arith.constant 0 : index
    %c11_79 = arith.constant 11 : index
    %312 = vector.load %arg5[%c0_78, %c11_79] : memref<16x54xf32, #tpu.memory_space<vmem>>, vector<16x1xf32>
    %313 = vector.extract_strided_slice %281 {offsets = [5, 0], sizes = [1, 256], strides = [1, 1]} : vector<6x256xf32> to vector<1x256xf32>
    %314 = vector.broadcast %312 : vector<16x1xf32> to vector<16x256xf32>
    %315 = vector.broadcast %313 : vector<1x256xf32> to vector<16x256xf32>
    %316 = arith.mulf %314, %315 : vector<16x256xf32>
    %317 = arith.addf %311, %316 : vector<16x256xf32>
    %318 = vector.extract_strided_slice %229 {offsets = [0, 226], sizes = [6, 30], strides = [1, 1]} : vector<6x256xf32> to vector<6x30xf32>
    %319 = vector.extract_strided_slice %229 {offsets = [0, 0], sizes = [6, 226], strides = [1, 1]} : vector<6x256xf32> to vector<6x226xf32>
    %320 = tpu.concatenate %318, %319 in 1 : vector<6x30xf32>, vector<6x226xf32> -> vector<6x256xf32>
    %c2_80 = arith.constant 2 : index
    %c0_81 = arith.constant 0 : index
    %321 = vector.load %arg7[%c2_80, %c0_81] : memref<9x256xf32, #tpu.memory_space<vmem>>, vector<1x256xf32>
    %322 = vector.broadcast %321 : vector<1x256xf32> to vector<6x256xf32>
    %323 = arith.mulf %320, %322 : vector<6x256xf32>
    %c0_82 = arith.constant 0 : index
    %c12_83 = arith.constant 12 : index
    %324 = vector.load %arg5[%c0_82, %c12_83] : memref<16x54xf32, #tpu.memory_space<vmem>>, vector<16x1xf32>
    %325 = vector.extract_strided_slice %323 {offsets = [0, 0], sizes = [1, 256], strides = [1, 1]} : vector<6x256xf32> to vector<1x256xf32>
    %326 = vector.broadcast %324 : vector<16x1xf32> to vector<16x256xf32>
    %327 = vector.broadcast %325 : vector<1x256xf32> to vector<16x256xf32>
    %328 = arith.mulf %326, %327 : vector<16x256xf32>
    %329 = arith.addf %317, %328 : vector<16x256xf32>
    %c0_84 = arith.constant 0 : index
    %c13_85 = arith.constant 13 : index
    %330 = vector.load %arg5[%c0_84, %c13_85] : memref<16x54xf32, #tpu.memory_space<vmem>>, vector<16x1xf32>
    %331 = vector.extract_strided_slice %323 {offsets = [1, 0], sizes = [1, 256], strides = [1, 1]} : vector<6x256xf32> to vector<1x256xf32>
    %332 = vector.broadcast %330 : vector<16x1xf32> to vector<16x256xf32>
    %333 = vector.broadcast %331 : vector<1x256xf32> to vector<16x256xf32>
    %334 = arith.mulf %332, %333 : vector<16x256xf32>
    %335 = arith.addf %329, %334 : vector<16x256xf32>
    %c0_86 = arith.constant 0 : index
    %c14_87 = arith.constant 14 : index
    %336 = vector.load %arg5[%c0_86, %c14_87] : memref<16x54xf32, #tpu.memory_space<vmem>>, vector<16x1xf32>
    %337 = vector.extract_strided_slice %323 {offsets = [2, 0], sizes = [1, 256], strides = [1, 1]} : vector<6x256xf32> to vector<1x256xf32>
    %338 = vector.broadcast %336 : vector<16x1xf32> to vector<16x256xf32>
    %339 = vector.broadcast %337 : vector<1x256xf32> to vector<16x256xf32>
    %340 = arith.mulf %338, %339 : vector<16x256xf32>
    %341 = arith.addf %335, %340 : vector<16x256xf32>
    %c0_88 = arith.constant 0 : index
    %c15_89 = arith.constant 15 : index
    %342 = vector.load %arg5[%c0_88, %c15_89] : memref<16x54xf32, #tpu.memory_space<vmem>>, vector<16x1xf32>
    %343 = vector.extract_strided_slice %323 {offsets = [3, 0], sizes = [1, 256], strides = [1, 1]} : vector<6x256xf32> to vector<1x256xf32>
    %344 = vector.broadcast %342 : vector<16x1xf32> to vector<16x256xf32>
    %345 = vector.broadcast %343 : vector<1x256xf32> to vector<16x256xf32>
    %346 = arith.mulf %344, %345 : vector<16x256xf32>
    %347 = arith.addf %341, %346 : vector<16x256xf32>
    %c0_90 = arith.constant 0 : index
    %c16_91 = arith.constant 16 : index
    %348 = vector.load %arg5[%c0_90, %c16_91] : memref<16x54xf32, #tpu.memory_space<vmem>>, vector<16x1xf32>
    %349 = vector.extract_strided_slice %323 {offsets = [4, 0], sizes = [1, 256], strides = [1, 1]} : vector<6x256xf32> to vector<1x256xf32>
    %350 = vector.broadcast %348 : vector<16x1xf32> to vector<16x256xf32>
    %351 = vector.broadcast %349 : vector<1x256xf32> to vector<16x256xf32>
    %352 = arith.mulf %350, %351 : vector<16x256xf32>
    %353 = arith.addf %347, %352 : vector<16x256xf32>
    %c0_92 = arith.constant 0 : index
    %c17_93 = arith.constant 17 : index
    %354 = vector.load %arg5[%c0_92, %c17_93] : memref<16x54xf32, #tpu.memory_space<vmem>>, vector<16x1xf32>
    %355 = vector.extract_strided_slice %323 {offsets = [5, 0], sizes = [1, 256], strides = [1, 1]} : vector<6x256xf32> to vector<1x256xf32>
    %356 = vector.broadcast %354 : vector<16x1xf32> to vector<16x256xf32>
    %357 = vector.broadcast %355 : vector<1x256xf32> to vector<16x256xf32>
    %358 = arith.mulf %356, %357 : vector<16x256xf32>
    %359 = arith.addf %353, %358 : vector<16x256xf32>
    %360 = vector.extract_strided_slice %229 {offsets = [0, 254], sizes = [6, 2], strides = [1, 1]} : vector<6x256xf32> to vector<6x2xf32>
    %361 = vector.extract_strided_slice %229 {offsets = [0, 0], sizes = [6, 254], strides = [1, 1]} : vector<6x256xf32> to vector<6x254xf32>
    %362 = tpu.concatenate %360, %361 in 1 : vector<6x2xf32>, vector<6x254xf32> -> vector<6x256xf32>
    %c3_94 = arith.constant 3 : index
    %c0_95 = arith.constant 0 : index
    %363 = vector.load %arg7[%c3_94, %c0_95] : memref<9x256xf32, #tpu.memory_space<vmem>>, vector<1x256xf32>
    %364 = vector.broadcast %363 : vector<1x256xf32> to vector<6x256xf32>
    %365 = arith.mulf %362, %364 : vector<6x256xf32>
    %c0_96 = arith.constant 0 : index
    %c18_97 = arith.constant 18 : index
    %366 = vector.load %arg5[%c0_96, %c18_97] : memref<16x54xf32, #tpu.memory_space<vmem>>, vector<16x1xf32>
    %367 = vector.extract_strided_slice %365 {offsets = [0, 0], sizes = [1, 256], strides = [1, 1]} : vector<6x256xf32> to vector<1x256xf32>
    %368 = vector.broadcast %366 : vector<16x1xf32> to vector<16x256xf32>
    %369 = vector.broadcast %367 : vector<1x256xf32> to vector<16x256xf32>
    %370 = arith.mulf %368, %369 : vector<16x256xf32>
    %371 = arith.addf %359, %370 : vector<16x256xf32>
    %c0_98 = arith.constant 0 : index
    %c19_99 = arith.constant 19 : index
    %372 = vector.load %arg5[%c0_98, %c19_99] : memref<16x54xf32, #tpu.memory_space<vmem>>, vector<16x1xf32>
    %373 = vector.extract_strided_slice %365 {offsets = [1, 0], sizes = [1, 256], strides = [1, 1]} : vector<6x256xf32> to vector<1x256xf32>
    %374 = vector.broadcast %372 : vector<16x1xf32> to vector<16x256xf32>
    %375 = vector.broadcast %373 : vector<1x256xf32> to vector<16x256xf32>
    %376 = arith.mulf %374, %375 : vector<16x256xf32>
    %377 = arith.addf %371, %376 : vector<16x256xf32>
    %c0_100 = arith.constant 0 : index
    %c20_101 = arith.constant 20 : index
    %378 = vector.load %arg5[%c0_100, %c20_101] : memref<16x54xf32, #tpu.memory_space<vmem>>, vector<16x1xf32>
    %379 = vector.extract_strided_slice %365 {offsets = [2, 0], sizes = [1, 256], strides = [1, 1]} : vector<6x256xf32> to vector<1x256xf32>
    %380 = vector.broadcast %378 : vector<16x1xf32> to vector<16x256xf32>
    %381 = vector.broadcast %379 : vector<1x256xf32> to vector<16x256xf32>
    %382 = arith.mulf %380, %381 : vector<16x256xf32>
    %383 = arith.addf %377, %382 : vector<16x256xf32>
    %c0_102 = arith.constant 0 : index
    %c21_103 = arith.constant 21 : index
    %384 = vector.load %arg5[%c0_102, %c21_103] : memref<16x54xf32, #tpu.memory_space<vmem>>, vector<16x1xf32>
    %385 = vector.extract_strided_slice %365 {offsets = [3, 0], sizes = [1, 256], strides = [1, 1]} : vector<6x256xf32> to vector<1x256xf32>
    %386 = vector.broadcast %384 : vector<16x1xf32> to vector<16x256xf32>
    %387 = vector.broadcast %385 : vector<1x256xf32> to vector<16x256xf32>
    %388 = arith.mulf %386, %387 : vector<16x256xf32>
    %389 = arith.addf %383, %388 : vector<16x256xf32>
    %c0_104 = arith.constant 0 : index
    %c22_105 = arith.constant 22 : index
    %390 = vector.load %arg5[%c0_104, %c22_105] : memref<16x54xf32, #tpu.memory_space<vmem>>, vector<16x1xf32>
    %391 = vector.extract_strided_slice %365 {offsets = [4, 0], sizes = [1, 256], strides = [1, 1]} : vector<6x256xf32> to vector<1x256xf32>
    %392 = vector.broadcast %390 : vector<16x1xf32> to vector<16x256xf32>
    %393 = vector.broadcast %391 : vector<1x256xf32> to vector<16x256xf32>
    %394 = arith.mulf %392, %393 : vector<16x256xf32>
    %395 = arith.addf %389, %394 : vector<16x256xf32>
    %c0_106 = arith.constant 0 : index
    %c23_107 = arith.constant 23 : index
    %396 = vector.load %arg5[%c0_106, %c23_107] : memref<16x54xf32, #tpu.memory_space<vmem>>, vector<16x1xf32>
    %397 = vector.extract_strided_slice %365 {offsets = [5, 0], sizes = [1, 256], strides = [1, 1]} : vector<6x256xf32> to vector<1x256xf32>
    %398 = vector.broadcast %396 : vector<16x1xf32> to vector<16x256xf32>
    %399 = vector.broadcast %397 : vector<1x256xf32> to vector<16x256xf32>
    %400 = arith.mulf %398, %399 : vector<16x256xf32>
    %401 = arith.addf %395, %400 : vector<16x256xf32>
    %c0_108 = arith.constant 0 : index
    %c24_109 = arith.constant 24 : index
    %402 = vector.load %arg5[%c0_108, %c24_109] : memref<16x54xf32, #tpu.memory_space<vmem>>, vector<16x1xf32>
    %403 = vector.extract_strided_slice %229 {offsets = [0, 0], sizes = [1, 256], strides = [1, 1]} : vector<6x256xf32> to vector<1x256xf32>
    %404 = vector.broadcast %402 : vector<16x1xf32> to vector<16x256xf32>
    %405 = vector.broadcast %403 : vector<1x256xf32> to vector<16x256xf32>
    %406 = arith.mulf %404, %405 : vector<16x256xf32>
    %407 = arith.addf %401, %406 : vector<16x256xf32>
    %c0_110 = arith.constant 0 : index
    %c25_111 = arith.constant 25 : index
    %408 = vector.load %arg5[%c0_110, %c25_111] : memref<16x54xf32, #tpu.memory_space<vmem>>, vector<16x1xf32>
    %409 = vector.extract_strided_slice %229 {offsets = [1, 0], sizes = [1, 256], strides = [1, 1]} : vector<6x256xf32> to vector<1x256xf32>
    %410 = vector.broadcast %408 : vector<16x1xf32> to vector<16x256xf32>
    %411 = vector.broadcast %409 : vector<1x256xf32> to vector<16x256xf32>
    %412 = arith.mulf %410, %411 : vector<16x256xf32>
    %413 = arith.addf %407, %412 : vector<16x256xf32>
    %c0_112 = arith.constant 0 : index
    %c26_113 = arith.constant 26 : index
    %414 = vector.load %arg5[%c0_112, %c26_113] : memref<16x54xf32, #tpu.memory_space<vmem>>, vector<16x1xf32>
    %415 = vector.extract_strided_slice %229 {offsets = [2, 0], sizes = [1, 256], strides = [1, 1]} : vector<6x256xf32> to vector<1x256xf32>
    %416 = vector.broadcast %414 : vector<16x1xf32> to vector<16x256xf32>
    %417 = vector.broadcast %415 : vector<1x256xf32> to vector<16x256xf32>
    %418 = arith.mulf %416, %417 : vector<16x256xf32>
    %419 = arith.addf %413, %418 : vector<16x256xf32>
    %c0_114 = arith.constant 0 : index
    %c27 = arith.constant 27 : index
    %420 = vector.load %arg5[%c0_114, %c27] : memref<16x54xf32, #tpu.memory_space<vmem>>, vector<16x1xf32>
    %421 = vector.extract_strided_slice %229 {offsets = [3, 0], sizes = [1, 256], strides = [1, 1]} : vector<6x256xf32> to vector<1x256xf32>
    %422 = vector.broadcast %420 : vector<16x1xf32> to vector<16x256xf32>
    %423 = vector.broadcast %421 : vector<1x256xf32> to vector<16x256xf32>
    %424 = arith.mulf %422, %423 : vector<16x256xf32>
    %425 = arith.addf %419, %424 : vector<16x256xf32>
    %c0_115 = arith.constant 0 : index
    %c28 = arith.constant 28 : index
    %426 = vector.load %arg5[%c0_115, %c28] : memref<16x54xf32, #tpu.memory_space<vmem>>, vector<16x1xf32>
    %427 = vector.extract_strided_slice %229 {offsets = [4, 0], sizes = [1, 256], strides = [1, 1]} : vector<6x256xf32> to vector<1x256xf32>
    %428 = vector.broadcast %426 : vector<16x1xf32> to vector<16x256xf32>
    %429 = vector.broadcast %427 : vector<1x256xf32> to vector<16x256xf32>
    %430 = arith.mulf %428, %429 : vector<16x256xf32>
    %431 = arith.addf %425, %430 : vector<16x256xf32>
    %c0_116 = arith.constant 0 : index
    %c29 = arith.constant 29 : index
    %432 = vector.load %arg5[%c0_116, %c29] : memref<16x54xf32, #tpu.memory_space<vmem>>, vector<16x1xf32>
    %433 = vector.extract_strided_slice %229 {offsets = [5, 0], sizes = [1, 256], strides = [1, 1]} : vector<6x256xf32> to vector<1x256xf32>
    %434 = vector.broadcast %432 : vector<16x1xf32> to vector<16x256xf32>
    %435 = vector.broadcast %433 : vector<1x256xf32> to vector<16x256xf32>
    %436 = arith.mulf %434, %435 : vector<16x256xf32>
    %437 = arith.addf %431, %436 : vector<16x256xf32>
    %438 = vector.extract_strided_slice %229 {offsets = [0, 2], sizes = [6, 254], strides = [1, 1]} : vector<6x256xf32> to vector<6x254xf32>
    %439 = vector.extract_strided_slice %229 {offsets = [0, 0], sizes = [6, 2], strides = [1, 1]} : vector<6x256xf32> to vector<6x2xf32>
    %440 = tpu.concatenate %438, %439 in 1 : vector<6x254xf32>, vector<6x2xf32> -> vector<6x256xf32>
    %c5_117 = arith.constant 5 : index
    %c0_118 = arith.constant 0 : index
    %441 = vector.load %arg7[%c5_117, %c0_118] : memref<9x256xf32, #tpu.memory_space<vmem>>, vector<1x256xf32>
    %442 = vector.broadcast %441 : vector<1x256xf32> to vector<6x256xf32>
    %443 = arith.mulf %440, %442 : vector<6x256xf32>
    %c0_119 = arith.constant 0 : index
    %c30 = arith.constant 30 : index
    %444 = vector.load %arg5[%c0_119, %c30] : memref<16x54xf32, #tpu.memory_space<vmem>>, vector<16x1xf32>
    %445 = vector.extract_strided_slice %443 {offsets = [0, 0], sizes = [1, 256], strides = [1, 1]} : vector<6x256xf32> to vector<1x256xf32>
    %446 = vector.broadcast %444 : vector<16x1xf32> to vector<16x256xf32>
    %447 = vector.broadcast %445 : vector<1x256xf32> to vector<16x256xf32>
    %448 = arith.mulf %446, %447 : vector<16x256xf32>
    %449 = arith.addf %437, %448 : vector<16x256xf32>
    %c0_120 = arith.constant 0 : index
    %c31 = arith.constant 31 : index
    %450 = vector.load %arg5[%c0_120, %c31] : memref<16x54xf32, #tpu.memory_space<vmem>>, vector<16x1xf32>
    %451 = vector.extract_strided_slice %443 {offsets = [1, 0], sizes = [1, 256], strides = [1, 1]} : vector<6x256xf32> to vector<1x256xf32>
    %452 = vector.broadcast %450 : vector<16x1xf32> to vector<16x256xf32>
    %453 = vector.broadcast %451 : vector<1x256xf32> to vector<16x256xf32>
    %454 = arith.mulf %452, %453 : vector<16x256xf32>
    %455 = arith.addf %449, %454 : vector<16x256xf32>
    %c0_121 = arith.constant 0 : index
    %c32 = arith.constant 32 : index
    %456 = vector.load %arg5[%c0_121, %c32] : memref<16x54xf32, #tpu.memory_space<vmem>>, vector<16x1xf32>
    %457 = vector.extract_strided_slice %443 {offsets = [2, 0], sizes = [1, 256], strides = [1, 1]} : vector<6x256xf32> to vector<1x256xf32>
    %458 = vector.broadcast %456 : vector<16x1xf32> to vector<16x256xf32>
    %459 = vector.broadcast %457 : vector<1x256xf32> to vector<16x256xf32>
    %460 = arith.mulf %458, %459 : vector<16x256xf32>
    %461 = arith.addf %455, %460 : vector<16x256xf32>
    %c0_122 = arith.constant 0 : index
    %c33 = arith.constant 33 : index
    %462 = vector.load %arg5[%c0_122, %c33] : memref<16x54xf32, #tpu.memory_space<vmem>>, vector<16x1xf32>
    %463 = vector.extract_strided_slice %443 {offsets = [3, 0], sizes = [1, 256], strides = [1, 1]} : vector<6x256xf32> to vector<1x256xf32>
    %464 = vector.broadcast %462 : vector<16x1xf32> to vector<16x256xf32>
    %465 = vector.broadcast %463 : vector<1x256xf32> to vector<16x256xf32>
    %466 = arith.mulf %464, %465 : vector<16x256xf32>
    %467 = arith.addf %461, %466 : vector<16x256xf32>
    %c0_123 = arith.constant 0 : index
    %c34 = arith.constant 34 : index
    %468 = vector.load %arg5[%c0_123, %c34] : memref<16x54xf32, #tpu.memory_space<vmem>>, vector<16x1xf32>
    %469 = vector.extract_strided_slice %443 {offsets = [4, 0], sizes = [1, 256], strides = [1, 1]} : vector<6x256xf32> to vector<1x256xf32>
    %470 = vector.broadcast %468 : vector<16x1xf32> to vector<16x256xf32>
    %471 = vector.broadcast %469 : vector<1x256xf32> to vector<16x256xf32>
    %472 = arith.mulf %470, %471 : vector<16x256xf32>
    %473 = arith.addf %467, %472 : vector<16x256xf32>
    %c0_124 = arith.constant 0 : index
    %c35 = arith.constant 35 : index
    %474 = vector.load %arg5[%c0_124, %c35] : memref<16x54xf32, #tpu.memory_space<vmem>>, vector<16x1xf32>
    %475 = vector.extract_strided_slice %443 {offsets = [5, 0], sizes = [1, 256], strides = [1, 1]} : vector<6x256xf32> to vector<1x256xf32>
    %476 = vector.broadcast %474 : vector<16x1xf32> to vector<16x256xf32>
    %477 = vector.broadcast %475 : vector<1x256xf32> to vector<16x256xf32>
    %478 = arith.mulf %476, %477 : vector<16x256xf32>
    %479 = arith.addf %473, %478 : vector<16x256xf32>
    %480 = vector.extract_strided_slice %229 {offsets = [0, 30], sizes = [6, 226], strides = [1, 1]} : vector<6x256xf32> to vector<6x226xf32>
    %481 = vector.extract_strided_slice %229 {offsets = [0, 0], sizes = [6, 30], strides = [1, 1]} : vector<6x256xf32> to vector<6x30xf32>
    %482 = tpu.concatenate %480, %481 in 1 : vector<6x226xf32>, vector<6x30xf32> -> vector<6x256xf32>
    %c6_125 = arith.constant 6 : index
    %c0_126 = arith.constant 0 : index
    %483 = vector.load %arg7[%c6_125, %c0_126] : memref<9x256xf32, #tpu.memory_space<vmem>>, vector<1x256xf32>
    %484 = vector.broadcast %483 : vector<1x256xf32> to vector<6x256xf32>
    %485 = arith.mulf %482, %484 : vector<6x256xf32>
    %c0_127 = arith.constant 0 : index
    %c36 = arith.constant 36 : index
    %486 = vector.load %arg5[%c0_127, %c36] : memref<16x54xf32, #tpu.memory_space<vmem>>, vector<16x1xf32>
    %487 = vector.extract_strided_slice %485 {offsets = [0, 0], sizes = [1, 256], strides = [1, 1]} : vector<6x256xf32> to vector<1x256xf32>
    %488 = vector.broadcast %486 : vector<16x1xf32> to vector<16x256xf32>
    %489 = vector.broadcast %487 : vector<1x256xf32> to vector<16x256xf32>
    %490 = arith.mulf %488, %489 : vector<16x256xf32>
    %491 = arith.addf %479, %490 : vector<16x256xf32>
    %c0_128 = arith.constant 0 : index
    %c37 = arith.constant 37 : index
    %492 = vector.load %arg5[%c0_128, %c37] : memref<16x54xf32, #tpu.memory_space<vmem>>, vector<16x1xf32>
    %493 = vector.extract_strided_slice %485 {offsets = [1, 0], sizes = [1, 256], strides = [1, 1]} : vector<6x256xf32> to vector<1x256xf32>
    %494 = vector.broadcast %492 : vector<16x1xf32> to vector<16x256xf32>
    %495 = vector.broadcast %493 : vector<1x256xf32> to vector<16x256xf32>
    %496 = arith.mulf %494, %495 : vector<16x256xf32>
    %497 = arith.addf %491, %496 : vector<16x256xf32>
    %c0_129 = arith.constant 0 : index
    %c38 = arith.constant 38 : index
    %498 = vector.load %arg5[%c0_129, %c38] : memref<16x54xf32, #tpu.memory_space<vmem>>, vector<16x1xf32>
    %499 = vector.extract_strided_slice %485 {offsets = [2, 0], sizes = [1, 256], strides = [1, 1]} : vector<6x256xf32> to vector<1x256xf32>
    %500 = vector.broadcast %498 : vector<16x1xf32> to vector<16x256xf32>
    %501 = vector.broadcast %499 : vector<1x256xf32> to vector<16x256xf32>
    %502 = arith.mulf %500, %501 : vector<16x256xf32>
    %503 = arith.addf %497, %502 : vector<16x256xf32>
    %c0_130 = arith.constant 0 : index
    %c39 = arith.constant 39 : index
    %504 = vector.load %arg5[%c0_130, %c39] : memref<16x54xf32, #tpu.memory_space<vmem>>, vector<16x1xf32>
    %505 = vector.extract_strided_slice %485 {offsets = [3, 0], sizes = [1, 256], strides = [1, 1]} : vector<6x256xf32> to vector<1x256xf32>
    %506 = vector.broadcast %504 : vector<16x1xf32> to vector<16x256xf32>
    %507 = vector.broadcast %505 : vector<1x256xf32> to vector<16x256xf32>
    %508 = arith.mulf %506, %507 : vector<16x256xf32>
    %509 = arith.addf %503, %508 : vector<16x256xf32>
    %c0_131 = arith.constant 0 : index
    %c40 = arith.constant 40 : index
    %510 = vector.load %arg5[%c0_131, %c40] : memref<16x54xf32, #tpu.memory_space<vmem>>, vector<16x1xf32>
    %511 = vector.extract_strided_slice %485 {offsets = [4, 0], sizes = [1, 256], strides = [1, 1]} : vector<6x256xf32> to vector<1x256xf32>
    %512 = vector.broadcast %510 : vector<16x1xf32> to vector<16x256xf32>
    %513 = vector.broadcast %511 : vector<1x256xf32> to vector<16x256xf32>
    %514 = arith.mulf %512, %513 : vector<16x256xf32>
    %515 = arith.addf %509, %514 : vector<16x256xf32>
    %c0_132 = arith.constant 0 : index
    %c41 = arith.constant 41 : index
    %516 = vector.load %arg5[%c0_132, %c41] : memref<16x54xf32, #tpu.memory_space<vmem>>, vector<16x1xf32>
    %517 = vector.extract_strided_slice %485 {offsets = [5, 0], sizes = [1, 256], strides = [1, 1]} : vector<6x256xf32> to vector<1x256xf32>
    %518 = vector.broadcast %516 : vector<16x1xf32> to vector<16x256xf32>
    %519 = vector.broadcast %517 : vector<1x256xf32> to vector<16x256xf32>
    %520 = arith.mulf %518, %519 : vector<16x256xf32>
    %521 = arith.addf %515, %520 : vector<16x256xf32>
    %522 = vector.extract_strided_slice %229 {offsets = [0, 32], sizes = [6, 224], strides = [1, 1]} : vector<6x256xf32> to vector<6x224xf32>
    %523 = vector.extract_strided_slice %229 {offsets = [0, 0], sizes = [6, 32], strides = [1, 1]} : vector<6x256xf32> to vector<6x32xf32>
    %524 = tpu.concatenate %522, %523 in 1 : vector<6x224xf32>, vector<6x32xf32> -> vector<6x256xf32>
    %c7_133 = arith.constant 7 : index
    %c0_134 = arith.constant 0 : index
    %525 = vector.load %arg7[%c7_133, %c0_134] : memref<9x256xf32, #tpu.memory_space<vmem>>, vector<1x256xf32>
    %526 = vector.broadcast %525 : vector<1x256xf32> to vector<6x256xf32>
    %527 = arith.mulf %524, %526 : vector<6x256xf32>
    %c0_135 = arith.constant 0 : index
    %c42 = arith.constant 42 : index
    %528 = vector.load %arg5[%c0_135, %c42] : memref<16x54xf32, #tpu.memory_space<vmem>>, vector<16x1xf32>
    %529 = vector.extract_strided_slice %527 {offsets = [0, 0], sizes = [1, 256], strides = [1, 1]} : vector<6x256xf32> to vector<1x256xf32>
    %530 = vector.broadcast %528 : vector<16x1xf32> to vector<16x256xf32>
    %531 = vector.broadcast %529 : vector<1x256xf32> to vector<16x256xf32>
    %532 = arith.mulf %530, %531 : vector<16x256xf32>
    %533 = arith.addf %521, %532 : vector<16x256xf32>
    %c0_136 = arith.constant 0 : index
    %c43 = arith.constant 43 : index
    %534 = vector.load %arg5[%c0_136, %c43] : memref<16x54xf32, #tpu.memory_space<vmem>>, vector<16x1xf32>
    %535 = vector.extract_strided_slice %527 {offsets = [1, 0], sizes = [1, 256], strides = [1, 1]} : vector<6x256xf32> to vector<1x256xf32>
    %536 = vector.broadcast %534 : vector<16x1xf32> to vector<16x256xf32>
    %537 = vector.broadcast %535 : vector<1x256xf32> to vector<16x256xf32>
    %538 = arith.mulf %536, %537 : vector<16x256xf32>
    %539 = arith.addf %533, %538 : vector<16x256xf32>
    %c0_137 = arith.constant 0 : index
    %c44 = arith.constant 44 : index
    %540 = vector.load %arg5[%c0_137, %c44] : memref<16x54xf32, #tpu.memory_space<vmem>>, vector<16x1xf32>
    %541 = vector.extract_strided_slice %527 {offsets = [2, 0], sizes = [1, 256], strides = [1, 1]} : vector<6x256xf32> to vector<1x256xf32>
    %542 = vector.broadcast %540 : vector<16x1xf32> to vector<16x256xf32>
    %543 = vector.broadcast %541 : vector<1x256xf32> to vector<16x256xf32>
    %544 = arith.mulf %542, %543 : vector<16x256xf32>
    %545 = arith.addf %539, %544 : vector<16x256xf32>
    %c0_138 = arith.constant 0 : index
    %c45 = arith.constant 45 : index
    %546 = vector.load %arg5[%c0_138, %c45] : memref<16x54xf32, #tpu.memory_space<vmem>>, vector<16x1xf32>
    %547 = vector.extract_strided_slice %527 {offsets = [3, 0], sizes = [1, 256], strides = [1, 1]} : vector<6x256xf32> to vector<1x256xf32>
    %548 = vector.broadcast %546 : vector<16x1xf32> to vector<16x256xf32>
    %549 = vector.broadcast %547 : vector<1x256xf32> to vector<16x256xf32>
    %550 = arith.mulf %548, %549 : vector<16x256xf32>
    %551 = arith.addf %545, %550 : vector<16x256xf32>
    %c0_139 = arith.constant 0 : index
    %c46 = arith.constant 46 : index
    %552 = vector.load %arg5[%c0_139, %c46] : memref<16x54xf32, #tpu.memory_space<vmem>>, vector<16x1xf32>
    %553 = vector.extract_strided_slice %527 {offsets = [4, 0], sizes = [1, 256], strides = [1, 1]} : vector<6x256xf32> to vector<1x256xf32>
    %554 = vector.broadcast %552 : vector<16x1xf32> to vector<16x256xf32>
    %555 = vector.broadcast %553 : vector<1x256xf32> to vector<16x256xf32>
    %556 = arith.mulf %554, %555 : vector<16x256xf32>
    %557 = arith.addf %551, %556 : vector<16x256xf32>
    %c0_140 = arith.constant 0 : index
    %c47 = arith.constant 47 : index
    %558 = vector.load %arg5[%c0_140, %c47] : memref<16x54xf32, #tpu.memory_space<vmem>>, vector<16x1xf32>
    %559 = vector.extract_strided_slice %527 {offsets = [5, 0], sizes = [1, 256], strides = [1, 1]} : vector<6x256xf32> to vector<1x256xf32>
    %560 = vector.broadcast %558 : vector<16x1xf32> to vector<16x256xf32>
    %561 = vector.broadcast %559 : vector<1x256xf32> to vector<16x256xf32>
    %562 = arith.mulf %560, %561 : vector<16x256xf32>
    %563 = arith.addf %557, %562 : vector<16x256xf32>
    %564 = vector.extract_strided_slice %229 {offsets = [0, 34], sizes = [6, 222], strides = [1, 1]} : vector<6x256xf32> to vector<6x222xf32>
    %565 = vector.extract_strided_slice %229 {offsets = [0, 0], sizes = [6, 34], strides = [1, 1]} : vector<6x256xf32> to vector<6x34xf32>
    %566 = tpu.concatenate %564, %565 in 1 : vector<6x222xf32>, vector<6x34xf32> -> vector<6x256xf32>
    %c8_141 = arith.constant 8 : index
    %c0_142 = arith.constant 0 : index
    %567 = vector.load %arg7[%c8_141, %c0_142] : memref<9x256xf32, #tpu.memory_space<vmem>>, vector<1x256xf32>
    %568 = vector.broadcast %567 : vector<1x256xf32> to vector<6x256xf32>
    %569 = arith.mulf %566, %568 : vector<6x256xf32>
    %c0_143 = arith.constant 0 : index
    %c48 = arith.constant 48 : index
    %570 = vector.load %arg5[%c0_143, %c48] : memref<16x54xf32, #tpu.memory_space<vmem>>, vector<16x1xf32>
    %571 = vector.extract_strided_slice %569 {offsets = [0, 0], sizes = [1, 256], strides = [1, 1]} : vector<6x256xf32> to vector<1x256xf32>
    %572 = vector.broadcast %570 : vector<16x1xf32> to vector<16x256xf32>
    %573 = vector.broadcast %571 : vector<1x256xf32> to vector<16x256xf32>
    %574 = arith.mulf %572, %573 : vector<16x256xf32>
    %575 = arith.addf %563, %574 : vector<16x256xf32>
    %c0_144 = arith.constant 0 : index
    %c49 = arith.constant 49 : index
    %576 = vector.load %arg5[%c0_144, %c49] : memref<16x54xf32, #tpu.memory_space<vmem>>, vector<16x1xf32>
    %577 = vector.extract_strided_slice %569 {offsets = [1, 0], sizes = [1, 256], strides = [1, 1]} : vector<6x256xf32> to vector<1x256xf32>
    %578 = vector.broadcast %576 : vector<16x1xf32> to vector<16x256xf32>
    %579 = vector.broadcast %577 : vector<1x256xf32> to vector<16x256xf32>
    %580 = arith.mulf %578, %579 : vector<16x256xf32>
    %581 = arith.addf %575, %580 : vector<16x256xf32>
    %c0_145 = arith.constant 0 : index
    %c50 = arith.constant 50 : index
    %582 = vector.load %arg5[%c0_145, %c50] : memref<16x54xf32, #tpu.memory_space<vmem>>, vector<16x1xf32>
    %583 = vector.extract_strided_slice %569 {offsets = [2, 0], sizes = [1, 256], strides = [1, 1]} : vector<6x256xf32> to vector<1x256xf32>
    %584 = vector.broadcast %582 : vector<16x1xf32> to vector<16x256xf32>
    %585 = vector.broadcast %583 : vector<1x256xf32> to vector<16x256xf32>
    %586 = arith.mulf %584, %585 : vector<16x256xf32>
    %587 = arith.addf %581, %586 : vector<16x256xf32>
    %c0_146 = arith.constant 0 : index
    %c51 = arith.constant 51 : index
    %588 = vector.load %arg5[%c0_146, %c51] : memref<16x54xf32, #tpu.memory_space<vmem>>, vector<16x1xf32>
    %589 = vector.extract_strided_slice %569 {offsets = [3, 0], sizes = [1, 256], strides = [1, 1]} : vector<6x256xf32> to vector<1x256xf32>
    %590 = vector.broadcast %588 : vector<16x1xf32> to vector<16x256xf32>
    %591 = vector.broadcast %589 : vector<1x256xf32> to vector<16x256xf32>
    %592 = arith.mulf %590, %591 : vector<16x256xf32>
    %593 = arith.addf %587, %592 : vector<16x256xf32>
    %c0_147 = arith.constant 0 : index
    %c52 = arith.constant 52 : index
    %594 = vector.load %arg5[%c0_147, %c52] : memref<16x54xf32, #tpu.memory_space<vmem>>, vector<16x1xf32>
    %595 = vector.extract_strided_slice %569 {offsets = [4, 0], sizes = [1, 256], strides = [1, 1]} : vector<6x256xf32> to vector<1x256xf32>
    %596 = vector.broadcast %594 : vector<16x1xf32> to vector<16x256xf32>
    %597 = vector.broadcast %595 : vector<1x256xf32> to vector<16x256xf32>
    %598 = arith.mulf %596, %597 : vector<16x256xf32>
    %599 = arith.addf %593, %598 : vector<16x256xf32>
    %c0_148 = arith.constant 0 : index
    %c53 = arith.constant 53 : index
    %600 = vector.load %arg5[%c0_148, %c53] : memref<16x54xf32, #tpu.memory_space<vmem>>, vector<16x1xf32>
    %601 = vector.extract_strided_slice %569 {offsets = [5, 0], sizes = [1, 256], strides = [1, 1]} : vector<6x256xf32> to vector<1x256xf32>
    %602 = vector.broadcast %600 : vector<16x1xf32> to vector<16x256xf32>
    %603 = vector.broadcast %601 : vector<1x256xf32> to vector<16x256xf32>
    %604 = arith.mulf %602, %603 : vector<16x256xf32>
    %605 = arith.addf %599, %604 : vector<16x256xf32>
    %cst_149 = arith.constant 0.000000e+00 : f32
    %606 = vector.broadcast %cst_149 : f32 to vector<16x256xf32>
    %607 = arith.maximumf %605, %606 : vector<16x256xf32>
    %608 = vector.extract_strided_slice %607 {offsets = [0, 2], sizes = [16, 254], strides = [1, 1]} : vector<16x256xf32> to vector<16x254xf32>
    %609 = vector.extract_strided_slice %607 {offsets = [0, 0], sizes = [16, 2], strides = [1, 1]} : vector<16x256xf32> to vector<16x2xf32>
    %610 = tpu.concatenate %608, %609 in 1 : vector<16x254xf32>, vector<16x2xf32> -> vector<16x256xf32>
    %611 = arith.maximumf %607, %610 : vector<16x256xf32>
    %612 = vector.extract_strided_slice %607 {offsets = [0, 32], sizes = [16, 224], strides = [1, 1]} : vector<16x256xf32> to vector<16x224xf32>
    %613 = vector.extract_strided_slice %607 {offsets = [0, 0], sizes = [16, 32], strides = [1, 1]} : vector<16x256xf32> to vector<16x32xf32>
    %614 = tpu.concatenate %612, %613 in 1 : vector<16x224xf32>, vector<16x32xf32> -> vector<16x256xf32>
    %615 = vector.extract_strided_slice %607 {offsets = [0, 34], sizes = [16, 222], strides = [1, 1]} : vector<16x256xf32> to vector<16x222xf32>
    %616 = vector.extract_strided_slice %607 {offsets = [0, 0], sizes = [16, 34], strides = [1, 1]} : vector<16x256xf32> to vector<16x34xf32>
    %617 = tpu.concatenate %615, %616 in 1 : vector<16x222xf32>, vector<16x34xf32> -> vector<16x256xf32>
    %618 = arith.maximumf %614, %617 : vector<16x256xf32>
    %619 = arith.maximumf %611, %618 : vector<16x256xf32>
    %c0_150 = arith.constant 0 : index
    %c0_151 = arith.constant 0 : index
    %620 = vector.load %arg8[%c0_150, %c0_151] : memref<256x16xf32, #tpu.memory_space<vmem>>, vector<256x16xf32>
    %cst_152 = arith.constant dense<0.000000e+00> : vector<16x16xf32>
    %621 = tpu.matmul %619, %620, %cst_152 {dimension_numbers = #tpu.dot_dimension_numbers<[1], [0], [0], [1], [0, 0, 1, 1], [], []>} : vector<16x256xf32>, vector<256x16xf32>, vector<16x16xf32> -> vector<16x16xf32>
    %622 = vector.extract_strided_slice %621 {offsets = [0, 0], sizes = [1, 16], strides = [1, 1]} : vector<16x16xf32> to vector<1x16xf32>
    %623 = vector.extract_strided_slice %621 {offsets = [1, 0], sizes = [1, 16], strides = [1, 1]} : vector<16x16xf32> to vector<1x16xf32>
    %624 = vector.extract_strided_slice %621 {offsets = [2, 0], sizes = [1, 16], strides = [1, 1]} : vector<16x16xf32> to vector<1x16xf32>
    %625 = vector.extract_strided_slice %621 {offsets = [3, 0], sizes = [1, 16], strides = [1, 1]} : vector<16x16xf32> to vector<1x16xf32>
    %626 = vector.extract_strided_slice %621 {offsets = [4, 0], sizes = [1, 16], strides = [1, 1]} : vector<16x16xf32> to vector<1x16xf32>
    %627 = vector.extract_strided_slice %621 {offsets = [5, 0], sizes = [1, 16], strides = [1, 1]} : vector<16x16xf32> to vector<1x16xf32>
    %628 = vector.extract_strided_slice %621 {offsets = [6, 0], sizes = [1, 16], strides = [1, 1]} : vector<16x16xf32> to vector<1x16xf32>
    %629 = vector.extract_strided_slice %621 {offsets = [7, 0], sizes = [1, 16], strides = [1, 1]} : vector<16x16xf32> to vector<1x16xf32>
    %630 = vector.extract_strided_slice %621 {offsets = [8, 0], sizes = [1, 16], strides = [1, 1]} : vector<16x16xf32> to vector<1x16xf32>
    %631 = vector.extract_strided_slice %621 {offsets = [9, 0], sizes = [1, 16], strides = [1, 1]} : vector<16x16xf32> to vector<1x16xf32>
    %632 = vector.extract_strided_slice %621 {offsets = [10, 0], sizes = [1, 16], strides = [1, 1]} : vector<16x16xf32> to vector<1x16xf32>
    %633 = vector.extract_strided_slice %621 {offsets = [11, 0], sizes = [1, 16], strides = [1, 1]} : vector<16x16xf32> to vector<1x16xf32>
    %634 = vector.extract_strided_slice %621 {offsets = [12, 0], sizes = [1, 16], strides = [1, 1]} : vector<16x16xf32> to vector<1x16xf32>
    %635 = vector.extract_strided_slice %621 {offsets = [13, 0], sizes = [1, 16], strides = [1, 1]} : vector<16x16xf32> to vector<1x16xf32>
    %636 = vector.extract_strided_slice %621 {offsets = [14, 0], sizes = [1, 16], strides = [1, 1]} : vector<16x16xf32> to vector<1x16xf32>
    %637 = vector.extract_strided_slice %621 {offsets = [15, 0], sizes = [1, 16], strides = [1, 1]} : vector<16x16xf32> to vector<1x16xf32>
    %638 = tpu.concatenate %622, %623, %624, %625, %626, %627, %628, %629, %630, %631, %632, %633, %634, %635, %636, %637 in 1 : vector<1x16xf32>, vector<1x16xf32>, vector<1x16xf32>, vector<1x16xf32>, vector<1x16xf32>, vector<1x16xf32>, vector<1x16xf32>, vector<1x16xf32>, vector<1x16xf32>, vector<1x16xf32>, vector<1x16xf32>, vector<1x16xf32>, vector<1x16xf32>, vector<1x16xf32>, vector<1x16xf32>, vector<1x16xf32> -> vector<1x256xf32>
    %c0_153 = arith.constant 0 : index
    %c0_154 = arith.constant 0 : index
    %639 = vector.load %arg9[%c0_153, %c0_154] : memref<256x128xf32, #tpu.memory_space<vmem>>, vector<256x128xf32>
    %cst_155 = arith.constant dense<0.000000e+00> : vector<1x128xf32>
    %640 = tpu.matmul %638, %639, %cst_155 {dimension_numbers = #tpu.dot_dimension_numbers<[1], [0], [0], [1], [0, 0, 1, 1], [], []>} : vector<1x256xf32>, vector<256x128xf32>, vector<1x128xf32> -> vector<1x128xf32>
    %c0_156 = arith.constant 0 : index
    %c0_157 = arith.constant 0 : index
    %641 = vector.load %arg10[%c0_156, %c0_157] : memref<1x128xf32, #tpu.memory_space<vmem>>, vector<1x128xf32>
    %642 = arith.addf %640, %641 : vector<1x128xf32>
    %cst_158 = arith.constant 0.000000e+00 : f32
    %643 = vector.broadcast %cst_158 : f32 to vector<1x128xf32>
    %644 = arith.maximumf %642, %643 : vector<1x128xf32>
    %c0_159 = arith.constant 0 : index
    %c0_160 = arith.constant 0 : index
    %645 = vector.load %arg11[%c0_159, %c0_160] : memref<128x128xf32, #tpu.memory_space<vmem>>, vector<128x128xf32>
    %cst_161 = arith.constant dense<0.000000e+00> : vector<1x128xf32>
    %646 = tpu.matmul %644, %645, %cst_161 {dimension_numbers = #tpu.dot_dimension_numbers<[1], [0], [0], [1], [0, 0, 1, 1], [], []>} : vector<1x128xf32>, vector<128x128xf32>, vector<1x128xf32> -> vector<1x128xf32>
    %c0_162 = arith.constant 0 : index
    %c0_163 = arith.constant 0 : index
    %647 = vector.load %arg12[%c0_162, %c0_163] : memref<1x128xf32, #tpu.memory_space<vmem>>, vector<1x128xf32>
    %648 = arith.addf %646, %647 : vector<1x128xf32>
    %cst_164 = arith.constant 0.000000e+00 : f32
    %649 = vector.broadcast %cst_164 : f32 to vector<1x128xf32>
    %650 = arith.maximumf %648, %649 : vector<1x128xf32>
    %c0_165 = arith.constant 0 : index
    %c0_166 = arith.constant 0 : index
    %651 = vector.load %arg13[%c0_165, %c0_166] : memref<128x128xf32, #tpu.memory_space<vmem>>, vector<128x128xf32>
    %cst_167 = arith.constant dense<0.000000e+00> : vector<1x128xf32>
    %652 = tpu.matmul %650, %651, %cst_167 {dimension_numbers = #tpu.dot_dimension_numbers<[1], [0], [0], [1], [0, 0, 1, 1], [], []>} : vector<1x128xf32>, vector<128x128xf32>, vector<1x128xf32> -> vector<1x128xf32>
    %c0_168 = arith.constant 0 : index
    %c0_169 = arith.constant 0 : index
    %653 = vector.load %arg14[%c0_168, %c0_169] : memref<1x128xf32, #tpu.memory_space<vmem>>, vector<1x128xf32>
    %654 = arith.addf %652, %653 : vector<1x128xf32>
    %c0_170 = arith.constant 0 : index
    %c0_171 = arith.constant 0 : index
    %c0_172 = arith.constant 0 : index
    %655 = vector.load %arg15[%c0_170, %c0_171, %c0_172] : memref<1x1x128xf32, #tpu.memory_space<vmem>>, vector<1x1x128xf32>
    %656 = vector.shape_cast %655 : vector<1x1x128xf32> to vector<1x128xf32>
    %657 = vector.shape_cast %654 : vector<1x128xf32> to vector<1x1x128xf32>
    tpu.vector_store %arg15[%c0_170, %c0_171, %c0_172], %657 {strides = array<i32>} : memref<1x1x128xf32, #tpu.memory_space<vmem>>, vector<1x1x128xf32>,
    return
  }
  func.func @transform_0(%arg0: i32) -> (i32, i32, i32) {
    %c0_i32 = arith.constant 0 : i32
    %c0_i32_0 = arith.constant 0 : i32
    %c0_i32_1 = arith.constant 0 : i32
    return %arg0, %c0_i32, %c0_i32_0 : i32, i32, i32
  }
  func.func @transform_1(%arg0: i32) -> (i32, i32) {
    %c0_i32 = arith.constant 0 : i32
    %c0_i32_0 = arith.constant 0 : i32
    %c0_i32_1 = arith.constant 0 : i32
    return %c0_i32, %c0_i32_0 : i32, i32
  }
  func.func @transform_2(%arg0: i32) -> (i32, i32) {
    %c0_i32 = arith.constant 0 : i32
    %c0_i32_0 = arith.constant 0 : i32
    %c0_i32_1 = arith.constant 0 : i32
    return %c0_i32, %c0_i32_0 : i32, i32
  }
  func.func @transform_3(%arg0: i32) -> (i32, i32) {
    %c0_i32 = arith.constant 0 : i32
    %c0_i32_0 = arith.constant 0 : i32
    %c0_i32_1 = arith.constant 0 : i32
    return %c0_i32, %c0_i32_0 : i32, i32
  }
  func.func @transform_4(%arg0: i32) -> (i32, i32) {
    %c0_i32 = arith.constant 0 : i32
    %c0_i32_0 = arith.constant 0 : i32
    %c0_i32_1 = arith.constant 0 : i32
    return %c0_i32, %c0_i32_0 : i32, i32
  }
  func.func @transform_5(%arg0: i32) -> (i32, i32) {
    %c0_i32 = arith.constant 0 : i32
    %c0_i32_0 = arith.constant 0 : i32
    %c0_i32_1 = arith.constant 0 : i32
    return %c0_i32, %c0_i32_0 : i32, i32
  }
  func.func @transform_6(%arg0: i32) -> (i32, i32) {
    %c0_i32 = arith.constant 0 : i32
    %c0_i32_0 = arith.constant 0 : i32
    %c0_i32_1 = arith.constant 0 : i32
    return %c0_i32, %c0_i32_0 : i32, i32
  }
  func.func @transform_7(%arg0: i32) -> (i32, i32) {
    %c0_i32 = arith.constant 0 : i32
    %c0_i32_0 = arith.constant 0 : i32
    %c0_i32_1 = arith.constant 0 : i32
    return %c0_i32, %c0_i32_0 : i32, i32
  }
  func.func @transform_8(%arg0: i32) -> (i32, i32) {
    %c0_i32 = arith.constant 0 : i32
    %c0_i32_0 = arith.constant 0 : i32
    %c0_i32_1 = arith.constant 0 : i32
    return %c0_i32, %c0_i32_0 : i32, i32
  }
  func.func @transform_9(%arg0: i32) -> (i32, i32) {
    %c0_i32 = arith.constant 0 : i32
    %c0_i32_0 = arith.constant 0 : i32
    %c0_i32_1 = arith.constant 0 : i32
    return %c0_i32, %c0_i32_0 : i32, i32
  }
  func.func @transform_10(%arg0: i32) -> (i32, i32) {
    %c0_i32 = arith.constant 0 : i32
    %c0_i32_0 = arith.constant 0 : i32
    %c0_i32_1 = arith.constant 0 : i32
    return %c0_i32, %c0_i32_0 : i32, i32
  }
  func.func @transform_11(%arg0: i32) -> (i32, i32) {
    %c0_i32 = arith.constant 0 : i32
    %c0_i32_0 = arith.constant 0 : i32
    %c0_i32_1 = arith.constant 0 : i32
    return %c0_i32, %c0_i32_0 : i32, i32
  }
  func.func @transform_12(%arg0: i32) -> (i32, i32) {
    %c0_i32 = arith.constant 0 : i32
    %c0_i32_0 = arith.constant 0 : i32
    %c0_i32_1 = arith.constant 0 : i32
    return %c0_i32, %c0_i32_0 : i32, i32
  }
  func.func @transform_13(%arg0: i32) -> (i32, i32) {
    %c0_i32 = arith.constant 0 : i32
    %c0_i32_0 = arith.constant 0 : i32
    %c0_i32_1 = arith.constant 0 : i32
    return %c0_i32, %c0_i32_0 : i32, i32
  }
  func.func @transform_14(%arg0: i32) -> (i32, i32, i32) {
    %c0_i32 = arith.constant 0 : i32
    %c0_i32_0 = arith.constant 0 : i32
    %c0_i32_1 = arith.constant 0 : i32
    return %arg0, %c0_i32, %c0_i32_0 : i32, i32, i32
  }
}

</mosaic_0001>

<llo_original>
// kernel: _lambda_.1
$region0: #{_lambda_.1}
  #allocation0 [shape = 'u32[]', space=smem, size = 0x4, offset = 0x4, fixed_abs, tag = 'smem constant byte address 0x4 - core index']
  #allocation1 [shape = 'u32[144,128]{1,0:T(1,128)}', space=vmem, size = 0x12000, scoped, tag = 'internal scratch']
  %s0 = inlined_call_operand.vmem [shape: f32[2,3,256], index: 0, kind: input, shape index: {}]
  %s1 = inlined_call_operand.hbm [shape: f32[6,27], index: 1, kind: input, shape index: {}]
  %s2 = inlined_call_operand.vmem [shape: f32[6,1], index: 2, kind: input, shape index: {}]
  %s3 = inlined_call_operand.hbm [shape: f32[9,256], index: 3, kind: input, shape index: {}]
  %s4 = inlined_call_operand.hbm [shape: f32[16,54], index: 4, kind: input, shape index: {}]
  %s5 = inlined_call_operand.vmem [shape: f32[16,1], index: 5, kind: input, shape index: {}]
  %s6 = inlined_call_operand.hbm [shape: f32[9,256], index: 6, kind: input, shape index: {}]
  %s7 = inlined_call_operand.hbm [shape: f32[256,16], index: 7, kind: input, shape index: {}]
  %s8 = inlined_call_operand.hbm [shape: f32[256,128], index: 8, kind: input, shape index: {}]
  %s9 = inlined_call_operand.vmem [shape: f32[1,128], index: 9, kind: input, shape index: {}]
  %s10 = inlined_call_operand.hbm [shape: f32[128,128], index: 10, kind: input, shape index: {}]
  %s11 = inlined_call_operand.vmem [shape: f32[1,128], index: 11, kind: input, shape index: {}]
  %s12 = inlined_call_operand.vmem [shape: f32[128,128], index: 12, kind: input, shape index: {}]
  %s13 = inlined_call_operand.vmem [shape: f32[1,128], index: 13, kind: input, shape index: {}]
  %s14 = inlined_call_operand.hbm [shape: f32[2,1,128], index: 14, kind: output, shape index: {}]
  %s15 = sld [smem:[#allocation0]]
  $region117: #{_lambda_.1} parent=0
    _
  %s17 = ssub.s32 1, %s15
  %s18 = scalar_select 0, %s17, %s15
  $region1: #{_lambda_.1} parent=0
    #allocation2 [shape = 'u8[4096]{0}', space=vmem, size = 0x1000, scoped, tag = 'input window, operand 1, single buffered']
    #allocation3 [shape = 's32[2]{0}', space=sflag, size = 0x8, scoped, tag = 'scoped memory for _lambda_.1']
    #allocation4 [shape = 's32[2]{0}', space=sflag, size = 0x8, scoped, tag = 'scoped memory for _lambda_.1']
    #allocation5 [shape = 'u8[16384]{0}', space=vmem, size = 0x4000, scoped, tag = 'input window, operand 3, single buffered']
    #allocation6 [shape = 's32[1]{0}', space=sflag, size = 0x4, scoped, tag = 'scoped memory for _lambda_.1']
    #allocation7 [shape = 'u8[8192]{0}', space=vmem, size = 0x2000, scoped, tag = 'input window, operand 4, single buffered']
    #allocation8 [shape = 'u8[16384]{0}', space=vmem, size = 0x4000, scoped, tag = 'input window, operand 6, single buffered']
    #allocation9 [shape = 's32[1]{0}', space=sflag, size = 0x4, scoped, tag = 'scoped memory for _lambda_.1']
    #allocation10 [shape = 'u8[131072]{0}', space=vmem, size = 0x20000, scoped, tag = 'input window, operand 7, single buffered']
    #allocation11 [shape = 'u8[131072]{0}', space=vmem, size = 0x20000, scoped, tag = 'input window, operand 8, single buffered']
    #allocation12 [shape = 's32[1]{0}', space=sflag, size = 0x4, scoped, tag = 'scoped memory for _lambda_.1']
    #allocation13 [shape = 'u8[65536]{0}', space=vmem, size = 0x10000, scoped, tag = 'input window, operand 10, single buffered']
    #allocation14 [shape = 'u8[1024]{0}', space=vmem, size = 0x400, scoped, tag = 'output window, operand 0']
    %19 = vsyncpa [#allocation3], 0
    %20 = vsyncpa [#allocation6], 0
    %21 = vsyncpa [#allocation9], 0
    %22 = vsyncpa [#allocation12], 0
    %23 = vsyncpa [#allocation4], 0
    %s24 = scalar_lea.sflag [#allocation4], 1
    %25 = vsyncpa %s24, 0
    loop: start=0, step=1, limit=4
    $region2: #{_lambda_.1} parent=1 // loop_pre_header
      _
    $region3: #{_lambda_.1} parent=1 // loop_header
      %s27 = sphi 0, %s31
      %p28 = scmp.ge.s32.totalorder %s27, 4
      %s37 = sphi 0, %s39
      %s40 = sphi 0, %s37
      %s41 = sphi 0, %s40
      %s57 = sphi 0, %s41
      %s61 = sphi 0, %s61
      %s63 = sphi 0, %s61
      %s64 = sphi 0, %s63
      %s78 = sphi 0, %s64
      %s82 = sphi 0, %s82
      %s84 = sphi 0, %s82
      %s85 = sphi 0, %s84
      %s99 = sphi 0, %s85
      %s103 = sphi 0, %s103
      %s105 = sphi 0, %s103
      %s106 = sphi 0, %s105
      %s120 = sphi 0, %s106
      %s124 = sphi 0, %s124
      %s126 = sphi 0, %s124
      %s127 = sphi 0, %s126
      %s141 = sphi 0, %s127
      %s145 = sphi 0, %s145
      %s147 = sphi 0, %s145
      %s148 = sphi 0, %s147
      %s162 = sphi 0, %s148
      %s166 = sphi 0, %s166
      %s168 = sphi 0, %s166
      %s169 = sphi 0, %s168
      %s183 = sphi 0, %s169
      %s187 = sphi 0, %s187
      %s189 = sphi 0, %s187
      %s190 = sphi 0, %s189
      %s204 = sphi 0, %s190
      %s208 = sphi 0, %s208
      %s210 = sphi 0, %s208
      %s211 = sphi 0, %s210
      %s225 = sphi 0, %s211
      %s229 = sphi 0, %s229
      %s231 = sphi 0, %s229
      %s232 = sphi 0, %s231
      %s246 = sphi 0, %s232
      %s250 = sphi 0, %s250
      %s252 = sphi 0, %s250
      %s253 = sphi 0, %s252
      %s267 = sphi 0, %s253
      %s271 = sphi 0, %s271
      %s273 = sphi 0, %s271
      %s274 = sphi 0, %s273
      %s288 = sphi 0, %s274
      %s292 = sphi 0, %s292
      %s294 = sphi 0, %s292
      %s295 = sphi 0, %s294
      %s309 = sphi 0, %s295
      %s313 = sphi 0, %s313
      %s315 = sphi 0, %s313
      %s316 = sphi 0, %s315
      %s330 = sphi 0, %s316
      %s336 = sphi 0, %s338
      %s339 = sphi 0, %s336
      %s340 = sphi 0, %s339
      %s356 = sphi 0, %s340
    $region4: #{_lambda_.1} parent=1 // loop_header_branch
      %30 = sbr.rel (%p28) target = $region8
    $region5: #{_lambda_.1} parent=1 // loop_body
      %s32 = ssub.s32 %s27, 1
      %s33 = ssub.s32 %s27, 2
      %s34 = sadd.s32 %s27, 1
      %s35 = ssub.s32 %s27, %s34
      %p36 = scmp.eq.s32.totalorder %s35, 0
      %s38 = sadd.s32 %s37, 1
      %s39 = scalar_select %p36, %s37, %s38
      %p42 = pneg %p36
      %p43 = scmp.eq.s32.totalorder %s27, 1
      %p44 = por %p42, %p43
      %p45 = scmp.ne.s32.totalorder %s37, %s40
      %p46 = scmp.eq.s32.totalorder %s27, 0
      %p47 = por %p45, %p46
      %p48 = scmp.ne.s32.totalorder %s37, %s40
      %p49 = scmp.eq.s32.totalorder %s32, 1
      %p50 = por %p48, %p49
      %p51 = scmp.ne.s32.totalorder %s40, %s41
      %p52 = scmp.eq.s32.totalorder %s32, 0
      %p53 = por %p51, %p52
      %p54 = scmp.ne.s32.totalorder %s40, %s41
      %p55 = scmp.eq.s32.totalorder %s33, 1
      %p56 = por %p54, %p55
      %p58 = scmp.ne.s32.totalorder %s41, %s57
      %p59 = scmp.eq.s32.totalorder %s33, 0
      %p60 = por %p58, %p59
      %s62 = sadd.s32 %s61, 1
      %p65 = scmp.eq.s32.totalorder %s27, 1
      %p66 = scmp.ne.s32.totalorder %s61, %s63
      %p67 = scmp.eq.s32.totalorder %s27, 0
      %p68 = por %p66, %p67
      %p69 = scmp.ne.s32.totalorder %s61, %s63
      %p70 = scmp.eq.s32.totalorder %s32, 1
      %p71 = por %p69, %p70
      %p72 = scmp.ne.s32.totalorder %s63, %s64
      %p73 = scmp.eq.s32.totalorder %s32, 0
      %p74 = por %p72, %p73
      %p75 = scmp.ne.s32.totalorder %s63, %s64
      %p76 = scmp.eq.s32.totalorder %s33, 1
      %p77 = por %p75, %p76
      %p79 = scmp.ne.s32.totalorder %s64, %s78
      %p80 = scmp.eq.s32.totalorder %s33, 0
      %p81 = por %p79, %p80
      %s83 = sadd.s32 %s82, 1
      %p86 = scmp.eq.s32.totalorder %s27, 1
      %p87 = scmp.ne.s32.totalorder %s82, %s84
      %p88 = scmp.eq.s32.totalorder %s27, 0
      %p89 = por %p87, %p88
      %p90 = scmp.ne.s32.totalorder %s82, %s84
      %p91 = scmp.eq.s32.totalorder %s32, 1
      %p92 = por %p90, %p91
      %p93 = scmp.ne.s32.totalorder %s84, %s85
      %p94 = scmp.eq.s32.totalorder %s32, 0
      %p95 = por %p93, %p94
      %p96 = scmp.ne.s32.totalorder %s84, %s85
      %p97 = scmp.eq.s32.totalorder %s33, 1
      %p98 = por %p96, %p97
      %p100 = scmp.ne.s32.totalorder %s85, %s99
      %p101 = scmp.eq.s32.totalorder %s33, 0
      %p102 = por %p100, %p101
      %s104 = sadd.s32 %s103, 1
      %p107 = scmp.eq.s32.totalorder %s27, 1
      %p108 = scmp.ne.s32.totalorder %s103, %s105
      %p109 = scmp.eq.s32.totalorder %s27, 0
      %p110 = por %p108, %p109
      %p111 = scmp.ne.s32.totalorder %s103, %s105
      %p112 = scmp.eq.s32.totalorder %s32, 1
      %p113 = por %p111, %p112
      %p114 = scmp.ne.s32.totalorder %s105, %s106
      %p115 = scmp.eq.s32.totalorder %s32, 0
      %p116 = por %p114, %p115
      %p117 = scmp.ne.s32.totalorder %s105, %s106
      %p118 = scmp.eq.s32.totalorder %s33, 1
      %p119 = por %p117, %p118
      %p121 = scmp.ne.s32.totalorder %s106, %s120
      %p122 = scmp.eq.s32.totalorder %s33, 0
      %p123 = por %p121, %p122
      %s125 = sadd.s32 %s124, 1
      %p128 = scmp.eq.s32.totalorder %s27, 1
      %p129 = scmp.ne.s32.totalorder %s124, %s126
      %p130 = scmp.eq.s32.totalorder %s27, 0
      %p131 = por %p129, %p130
      %p132 = scmp.ne.s32.totalorder %s124, %s126
      %p133 = scmp.eq.s32.totalorder %s32, 1
      %p134 = por %p132, %p133
      %p135 = scmp.ne.s32.totalorder %s126, %s127
      %p136 = scmp.eq.s32.totalorder %s32, 0
      %p137 = por %p135, %p136
      %p138 = scmp.ne.s32.totalorder %s126, %s127
      %p139 = scmp.eq.s32.totalorder %s33, 1
      %p140 = por %p138, %p139
      %p142 = scmp.ne.s32.totalorder %s127, %s141
      %p143 = scmp.eq.s32.totalorder %s33, 0
      %p144 = por %p142, %p143
      %s146 = sadd.s32 %s145, 1
      %p149 = scmp.eq.s32.totalorder %s27, 1
      %p150 = scmp.ne.s32.totalorder %s145, %s147
      %p151 = scmp.eq.s32.totalorder %s27, 0
      %p152 = por %p150, %p151
      %p153 = scmp.ne.s32.totalorder %s145, %s147
      %p154 = scmp.eq.s32.totalorder %s32, 1
      %p155 = por %p153, %p154
      %p156 = scmp.ne.s32.totalorder %s147, %s148
      %p157 = scmp.eq.s32.totalorder %s32, 0
      %p158 = por %p156, %p157
      %p159 = scmp.ne.s32.totalorder %s147, %s148
      %p160 = scmp.eq.s32.totalorder %s33, 1
      %p161 = por %p159, %p160
      %p163 = scmp.ne.s32.totalorder %s148, %s162
      %p164 = scmp.eq.s32.totalorder %s33, 0
      %p165 = por %p163, %p164
      %s167 = sadd.s32 %s166, 1
      %p170 = scmp.eq.s32.totalorder %s27, 1
      %p171 = scmp.ne.s32.totalorder %s166, %s168
      %p172 = scmp.eq.s32.totalorder %s27, 0
      %p173 = por %p171, %p172
      %p174 = scmp.ne.s32.totalorder %s166, %s168
      %p175 = scmp.eq.s32.totalorder %s32, 1
      %p176 = por %p174, %p175
      %p177 = scmp.ne.s32.totalorder %s168, %s169
      %p178 = scmp.eq.s32.totalorder %s32, 0
      %p179 = por %p177, %p178
      %p180 = scmp.ne.s32.totalorder %s168, %s169
      %p181 = scmp.eq.s32.totalorder %s33, 1
      %p182 = por %p180, %p181
      %p184 = scmp.ne.s32.totalorder %s169, %s183
      %p185 = scmp.eq.s32.totalorder %s33, 0
      %p186 = por %p184, %p185
      %s188 = sadd.s32 %s187, 1
      %p191 = scmp.eq.s32.totalorder %s27, 1
      %p192 = scmp.ne.s32.totalorder %s187, %s189
      %p193 = scmp.eq.s32.totalorder %s27, 0
      %p194 = por %p192, %p193
      %p195 = scmp.ne.s32.totalorder %s187, %s189
      %p196 = scmp.eq.s32.totalorder %s32, 1
      %p197 = por %p195, %p196
      %p198 = scmp.ne.s32.totalorder %s189, %s190
      %p199 = scmp.eq.s32.totalorder %s32, 0
      %p200 = por %p198, %p199
      %p201 = scmp.ne.s32.totalorder %s189, %s190
      %p202 = scmp.eq.s32.totalorder %s33, 1
      %p203 = por %p201, %p202
      %p205 = scmp.ne.s32.totalorder %s190, %s204
      %p206 = scmp.eq.s32.totalorder %s33, 0
      %p207 = por %p205, %p206
      %s209 = sadd.s32 %s208, 1
      %p212 = scmp.eq.s32.totalorder %s27, 1
      %p213 = scmp.ne.s32.totalorder %s208, %s210
      %p214 = scmp.eq.s32.totalorder %s27, 0
      %p215 = por %p213, %p214
      %p216 = scmp.ne.s32.totalorder %s208, %s210
      %p217 = scmp.eq.s32.totalorder %s32, 1
      %p218 = por %p216, %p217
      %p219 = scmp.ne.s32.totalorder %s210, %s211
      %p220 = scmp.eq.s32.totalorder %s32, 0
      %p221 = por %p219, %p220
      %p222 = scmp.ne.s32.totalorder %s210, %s211
      %p223 = scmp.eq.s32.totalorder %s33, 1
      %p224 = por %p222, %p223
      %p226 = scmp.ne.s32.totalorder %s211, %s225
      %p227 = scmp.eq.s32.totalorder %s33, 0
      %p228 = por %p226, %p227
      %s230 = sadd.s32 %s229, 1
      %p233 = scmp.eq.s32.totalorder %s27, 1
      %p234 = scmp.ne.s32.totalorder %s229, %s231
      %p235 = scmp.eq.s32.totalorder %s27, 0
      %p236 = por %p234, %p235
      %p237 = scmp.ne.s32.totalorder %s229, %s231
      %p238 = scmp.eq.s32.totalorder %s32, 1
      %p239 = por %p237, %p238
      %p240 = scmp.ne.s32.totalorder %s231, %s232
      %p241 = scmp.eq.s32.totalorder %s32, 0
      %p242 = por %p240, %p241
      %p243 = scmp.ne.s32.totalorder %s231, %s232
      %p244 = scmp.eq.s32.totalorder %s33, 1
      %p245 = por %p243, %p244
      %p247 = scmp.ne.s32.totalorder %s232, %s246
      %p248 = scmp.eq.s32.totalorder %s33, 0
      %p249 = por %p247, %p248
      %s251 = sadd.s32 %s250, 1
      %p254 = scmp.eq.s32.totalorder %s27, 1
      %p255 = scmp.ne.s32.totalorder %s250, %s252
      %p256 = scmp.eq.s32.totalorder %s27, 0
      %p257 = por %p255, %p256
      %p258 = scmp.ne.s32.totalorder %s250, %s252
      %p259 = scmp.eq.s32.totalorder %s32, 1
      %p260 = por %p258, %p259
      %p261 = scmp.ne.s32.totalorder %s252, %s253
      %p262 = scmp.eq.s32.totalorder %s32, 0
      %p263 = por %p261, %p262
      %p264 = scmp.ne.s32.totalorder %s252, %s253
      %p265 = scmp.eq.s32.totalorder %s33, 1
      %p266 = por %p264, %p265
      %p268 = scmp.ne.s32.totalorder %s253, %s267
      %p269 = scmp.eq.s32.totalorder %s33, 0
      %p270 = por %p268, %p269
      %s272 = sadd.s32 %s271, 1
      %p275 = scmp.eq.s32.totalorder %s27, 1
      %p276 = scmp.ne.s32.totalorder %s271, %s273
      %p277 = scmp.eq.s32.totalorder %s27, 0
      %p278 = por %p276, %p277
      %p279 = scmp.ne.s32.totalorder %s271, %s273
      %p280 = scmp.eq.s32.totalorder %s32, 1
      %p281 = por %p279, %p280
      %p282 = scmp.ne.s32.totalorder %s273, %s274
      %p283 = scmp.eq.s32.totalorder %s32, 0
      %p284 = por %p282, %p283
      %p285 = scmp.ne.s32.totalorder %s273, %s274
      %p286 = scmp.eq.s32.totalorder %s33, 1
      %p287 = por %p285, %p286
      %p289 = scmp.ne.s32.totalorder %s274, %s288
      %p290 = scmp.eq.s32.totalorder %s33, 0
      %p291 = por %p289, %p290
      %s293 = sadd.s32 %s292, 1
      %p296 = scmp.eq.s32.totalorder %s27, 1
      %p297 = scmp.ne.s32.totalorder %s292, %s294
      %p298 = scmp.eq.s32.totalorder %s27, 0
      %p299 = por %p297, %p298
      %p300 = scmp.ne.s32.totalorder %s292, %s294
      %p301 = scmp.eq.s32.totalorder %s32, 1
      %p302 = por %p300, %p301
      %p303 = scmp.ne.s32.totalorder %s294, %s295
      %p304 = scmp.eq.s32.totalorder %s32, 0
      %p305 = por %p303, %p304
      %p306 = scmp.ne.s32.totalorder %s294, %s295
      %p307 = scmp.eq.s32.totalorder %s33, 1
      %p308 = por %p306, %p307
      %p310 = scmp.ne.s32.totalorder %s295, %s309
      %p311 = scmp.eq.s32.totalorder %s33, 0
      %p312 = por %p310, %p311
      %s314 = sadd.s32 %s313, 1
      %p317 = scmp.eq.s32.totalorder %s27, 1
      %p318 = scmp.ne.s32.totalorder %s313, %s315
      %p319 = scmp.eq.s32.totalorder %s27, 0
      %p320 = por %p318, %p319
      %p321 = scmp.ne.s32.totalorder %s313, %s315
      %p322 = scmp.eq.s32.totalorder %s32, 1
      %p323 = por %p321, %p322
      %p324 = scmp.ne.s32.totalorder %s315, %s316
      %p325 = scmp.eq.s32.totalorder %s32, 0
      %p326 = por %p324, %p325
      %p327 = scmp.ne.s32.totalorder %s315, %s316
      %p328 = scmp.eq.s32.totalorder %s33, 1
      %p329 = por %p327, %p328
      %p331 = scmp.ne.s32.totalorder %s316, %s330
      %p332 = scmp.eq.s32.totalorder %s33, 0
      %p333 = por %p331, %p332
      %s334 = ssub.s32 %s27, %s34
      %p335 = scmp.eq.s32.totalorder %s334, 0
      %s337 = sadd.s32 %s336, 1
      %s338 = scalar_select %p335, %s336, %s337
      %p341 = pneg %p335
      %p342 = scmp.eq.s32.totalorder %s27, 1
      %p343 = por %p341, %p342
      %p344 = scmp.ne.s32.totalorder %s336, %s339
      %p345 = scmp.eq.s32.totalorder %s27, 0
      %p346 = por %p344, %p345
      %p347 = scmp.ne.s32.totalorder %s336, %s339
      %p348 = scmp.eq.s32.totalorder %s32, 1
      %p349 = por %p347, %p348
      %p350 = scmp.ne.s32.totalorder %s339, %s340
      %p351 = scmp.eq.s32.totalorder %s32, 0
      %p352 = por %p350, %p351
      %p353 = scmp.ne.s32.totalorder %s339, %s340
      %p354 = scmp.eq.s32.totalorder %s33, 1
      %p355 = por %p353, %p354
      %p357 = scmp.ne.s32.totalorder %s340, %s356
      %p358 = scmp.eq.s32.totalorder %s33, 0
      %p359 = por %p357, %p358
      %p360 = scmp.le.s32.totalorder 1, %s27
      %p361 = scmp.lt.s32.totalorder %s27, 3
      %p362 = pnand %p360, %p361
      %p363 = pneg %p362
      // Predicated region
      $region9: #{_lambda_.1} parent=5 // pred_check
        _
      $region10: #{_lambda_.1} parent=5 // pred_check_branch
        %365 = sbr.rel (%p362) target = $region12
      $region11: #{_lambda_.1} parent=5 // pred_region
        %s366 = ssub.s32 %s27, 1
        // Predicated region
        $region13: #{_lambda_.1} parent=11 // pred_check
          %p367 = pneg %p74
        $region14: #{_lambda_.1} parent=11 // pred_check_branch
          %369 = sbr.rel (%p367) target = $region16
        $region15: #{_lambda_.1} parent=11 // pred_region
          %s371 = ssub.s32 128, 128
          %372 = vsyncadd [#allocation3], %s371
          %s374 = sshll.u32 [#allocation2], 4
          %s375 = int_to_ptr.vmem [resolvable:$true] %s374
          %377 = dma.hbm_to_vmem [thread:$0]  %s1, 128, %s375, [#allocation3]
        $region16: #{_lambda_.1} parent=11 // pred_fallthru
          _
        // Predicated region
        $region17: #{_lambda_.1} parent=11 // pred_check
          %p378 = pneg %p95
        $region18: #{_lambda_.1} parent=11 // pred_check_branch
          %380 = sbr.rel (%p378) target = $region20
        $region19: #{_lambda_.1} parent=11 // pred_region
          _
        $region20: #{_lambda_.1} parent=11 // pred_fallthru
          _
        // Predicated region
        $region21: #{_lambda_.1} parent=11 // pred_check
          %p381 = pneg %p116
        $region22: #{_lambda_.1} parent=11 // pred_check_branch
          %383 = sbr.rel (%p381) target = $region24
        $region23: #{_lambda_.1} parent=11 // pred_region
          %s385 = ssub.s32 512, 512
          %386 = vsyncadd [#allocation6], %s385
          %s387 = sshll.u32 [#allocation5], 4
          %s388 = int_to_ptr.vmem [resolvable:$true] %s387
          %393 = dma.hbm_to_vmem [thread:$0]  %s3, 512, %s388, [#allocation6], 256, 256, 16
        $region24: #{_lambda_.1} parent=11 // pred_fallthru
          _
        // Predicated region
        $region25: #{_lambda_.1} parent=11 // pred_check
          %p394 = pneg %p137
        $region26: #{_lambda_.1} parent=11 // pred_check_branch
          %396 = sbr.rel (%p394) target = $region28
        $region27: #{_lambda_.1} parent=11 // pred_region
          %s398 = ssub.s32 256, 256
          %399 = vsyncadd [#allocation6], %s398
          %s400 = sshll.u32 [#allocation7], 4
          %s401 = int_to_ptr.vmem [resolvable:$true] %s400
          %406 = dma.hbm_to_vmem [thread:$0]  %s4, 256, %s401, [#allocation6], 128, 128, 8
        $region28: #{_lambda_.1} parent=11 // pred_fallthru
          _
        // Predicated region
        $region29: #{_lambda_.1} parent=11 // pred_check
          %p407 = pneg %p158
        $region30: #{_lambda_.1} parent=11 // pred_check_branch
          %409 = sbr.rel (%p407) target = $region32
        $region31: #{_lambda_.1} parent=11 // pred_region
          _
        $region32: #{_lambda_.1} parent=11 // pred_fallthru
          _
        // Predicated region
        $region33: #{_lambda_.1} parent=11 // pred_check
          %p410 = pneg %p179
        $region34: #{_lambda_.1} parent=11 // pred_check_branch
          %412 = sbr.rel (%p410) target = $region36
        $region35: #{_lambda_.1} parent=11 // pred_region
          %s414 = ssub.s32 512, 512
          %415 = vsyncadd [#allocation9], %s414
          %s416 = sshll.u32 [#allocation8], 4
          %s417 = int_to_ptr.vmem [resolvable:$true] %s416
          %422 = dma.hbm_to_vmem [thread:$0]  %s6, 512, %s417, [#allocation9], 256, 256, 16
        $region36: #{_lambda_.1} parent=11 // pred_fallthru
          _
        // Predicated region
        $region37: #{_lambda_.1} parent=11 // pred_check
          %p423 = pneg %p200
        $region38: #{_lambda_.1} parent=11 // pred_check_branch
          %425 = sbr.rel (%p423) target = $region40
        $region39: #{_lambda_.1} parent=11 // pred_region
          %s427 = ssub.s32 4096, 4096
          %428 = vsyncadd [#allocation9], %s427
          %s429 = sshll.u32 [#allocation10], 4
          %s430 = int_to_ptr.vmem [resolvable:$true] %s429
          %435 = dma.hbm_to_vmem [thread:$0]  %s7, 4096, %s430, [#allocation9], 128, 128, 8
        $region40: #{_lambda_.1} parent=11 // pred_fallthru
          _
        // Predicated region
        $region41: #{_lambda_.1} parent=11 // pred_check
          %p436 = pneg %p221
        $region42: #{_lambda_.1} parent=11 // pred_check_branch
          %438 = sbr.rel (%p436) target = $region44
        $region43: #{_lambda_.1} parent=11 // pred_region
          %s440 = ssub.s32 4096, 4096
          %441 = vsyncadd [#allocation12], %s440
          %s442 = sshll.u32 [#allocation11], 4
          %s443 = int_to_ptr.vmem [resolvable:$true] %s442
          %448 = dma.hbm_to_vmem [thread:$0]  %s8, 4096, %s443, [#allocation12], 128, 128, 8
        $region44: #{_lambda_.1} parent=11 // pred_fallthru
          _
        // Predicated region
        $region45: #{_lambda_.1} parent=11 // pred_check
          %p449 = pneg %p242
        $region46: #{_lambda_.1} parent=11 // pred_check_branch
          %451 = sbr.rel (%p449) target = $region48
        $region47: #{_lambda_.1} parent=11 // pred_region
          _
        $region48: #{_lambda_.1} parent=11 // pred_fallthru
          _
        // Predicated region
        $region49: #{_lambda_.1} parent=11 // pred_check
          %p452 = pneg %p263
        $region50: #{_lambda_.1} parent=11 // pred_check_branch
          %454 = sbr.rel (%p452) target = $region52
        $region51: #{_lambda_.1} parent=11 // pred_region
          %s456 = ssub.s32 2048, 2048
          %457 = vsyncadd [#allocation12], %s456
          %s458 = sshll.u32 [#allocation13], 4
          %s459 = int_to_ptr.vmem [resolvable:$true] %s458
          %464 = dma.hbm_to_vmem [thread:$0]  %s10, 2048, %s459, [#allocation12], 128, 128, 8
        $region52: #{_lambda_.1} parent=11 // pred_fallthru
          _
        // Predicated region
        $region53: #{_lambda_.1} parent=11 // pred_check
          %p465 = pneg %p284
        $region54: #{_lambda_.1} parent=11 // pred_check_branch
          %467 = sbr.rel (%p465) target = $region56
        $region55: #{_lambda_.1} parent=11 // pred_region
          _
        $region56: #{_lambda_.1} parent=11 // pred_fallthru
          _
        // Predicated region
        $region57: #{_lambda_.1} parent=11 // pred_check
          %p468 = pneg %p305
        $region58: #{_lambda_.1} parent=11 // pred_check_branch
          %470 = sbr.rel (%p468) target = $region60
        $region59: #{_lambda_.1} parent=11 // pred_region
          _
        $region60: #{_lambda_.1} parent=11 // pred_fallthru
          _
        // Predicated region
        $region61: #{_lambda_.1} parent=11 // pred_check
          %p471 = pneg %p326
        $region62: #{_lambda_.1} parent=11 // pred_check_branch
          %473 = sbr.rel (%p471) target = $region64
        $region63: #{_lambda_.1} parent=11 // pred_region
          _
        $region64: #{_lambda_.1} parent=11 // pred_fallthru
          _
      $region12: #{_lambda_.1} parent=5 // pred_fallthru
        _
      %p474 = scmp.lt.s32.totalorder %s27, 2
      // Predicated region
      $region65: #{_lambda_.1} parent=5 // pred_check
        %p475 = pneg %p474
      $region66: #{_lambda_.1} parent=5 // pred_check_branch
        %477 = sbr.rel (%p475) target = $region68
      $region67: #{_lambda_.1} parent=5 // pred_region
        // Predicated region
        $region69: #{_lambda_.1} parent=67 // pred_check
          %p478 = pneg %p47
        $region70: #{_lambda_.1} parent=67 // pred_check_branch
          %480 = sbr.rel (%p478) target = $region72
        $region71: #{_lambda_.1} parent=67 // pred_region
          %p481 = scmp.lt.s32.totalorder %s27, 1
          %s482 = scalar_select %p481, %s27, 1
          %s483 = smul.addr %s482, 2
          %s484 = smul.addr %s483, 4
          %s485 = scalar_lea.vmem %s0, %s484
        $region72: #{_lambda_.1} parent=67 // pred_fallthru
          _
      $region68: #{_lambda_.1} parent=5 // pred_fallthru
        _
      %p486 = scmp.le.s32.totalorder 1, %s27
      %p487 = scmp.lt.s32.totalorder %s27, 3
      %p488 = pnand %p486, %p487
      %p489 = pneg %p488
      // Predicated region
      $region73: #{_lambda_.1} parent=5 // pred_check
        _
      $region74: #{_lambda_.1} parent=5 // pred_check_branch
        %491 = sbr.rel (%p488) target = $region76
      $region75: #{_lambda_.1} parent=5 // pred_region
        %s492 = ssub.s32 %s27, 1
        // Predicated region
        $region77: #{_lambda_.1} parent=75 // pred_check
          %p493 = pneg %p74
        $region78: #{_lambda_.1} parent=75 // pred_check_branch
          %495 = sbr.rel (%p493) target = $region80
        $region79: #{_lambda_.1} parent=75 // pred_region
          %496 = dma.done [#allocation3], 128
        $region80: #{_lambda_.1} parent=75 // pred_fallthru
          _
        // Predicated region
        $region81: #{_lambda_.1} parent=75 // pred_check
          %p497 = pneg %p116
        $region82: #{_lambda_.1} parent=75 // pred_check_branch
          %499 = sbr.rel (%p497) target = $region84
        $region83: #{_lambda_.1} parent=75 // pred_region
          %500 = dma.done [#allocation6], 512
        $region84: #{_lambda_.1} parent=75 // pred_fallthru
          _
        // Predicated region
        $region85: #{_lambda_.1} parent=75 // pred_check
          %p501 = pneg %p137
        $region86: #{_lambda_.1} parent=75 // pred_check_branch
          %503 = sbr.rel (%p501) target = $region88
        $region87: #{_lambda_.1} parent=75 // pred_region
          %504 = dma.done [#allocation6], 256
        $region88: #{_lambda_.1} parent=75 // pred_fallthru
          _
        // Predicated region
        $region89: #{_lambda_.1} parent=75 // pred_check
          %p505 = pneg %p179
        $region90: #{_lambda_.1} parent=75 // pred_check_branch
          %507 = sbr.rel (%p505) target = $region92
        $region91: #{_lambda_.1} parent=75 // pred_region
          %508 = dma.done [#allocation9], 512
        $region92: #{_lambda_.1} parent=75 // pred_fallthru
          _
        // Predicated region
        $region93: #{_lambda_.1} parent=75 // pred_check
          %p509 = pneg %p200
        $region94: #{_lambda_.1} parent=75 // pred_check_branch
          %511 = sbr.rel (%p509) target = $region96
        $region95: #{_lambda_.1} parent=75 // pred_region
          %512 = dma.done [#allocation9], 4096
        $region96: #{_lambda_.1} parent=75 // pred_fallthru
          _
        // Predicated region
        $region97: #{_lambda_.1} parent=75 // pred_check
          %p513 = pneg %p221
        $region98: #{_lambda_.1} parent=75 // pred_check_branch
          %515 = sbr.rel (%p513) target = $region100
        $region99: #{_lambda_.1} parent=75 // pred_region
          %516 = dma.done [#allocation12], 4096
        $region100: #{_lambda_.1} parent=75 // pred_fallthru
          _
        // Predicated region
        $region101: #{_lambda_.1} parent=75 // pred_check
          %p517 = pneg %p263
        $region102: #{_lambda_.1} parent=75 // pred_check_branch
          %519 = sbr.rel (%p517) target = $region104
        $region103: #{_lambda_.1} parent=75 // pred_region
          %520 = dma.done [#allocation12], 2048
        $region104: #{_lambda_.1} parent=75 // pred_fallthru
          _
        %p521 = scmp.lt.s32.totalorder %s32, 1
        %s522 = scalar_select %p521, %s32, 1
        %s523 = smul.addr %s522, 2
        %s524 = smul.addr %s523, 4
        %s525 = scalar_lea.vmem %s0, %s524
        %p526 = pneg %p53
        %p527 = pneg %p50
        %p528 = pneg %p74
        %p529 = pneg %p71
        %p530 = pneg %p95
        %p531 = pneg %p92
        %p532 = pneg %p116
        %p533 = pneg %p113
        %p534 = pneg %p137
        %p535 = pneg %p134
        %p536 = pneg %p158
        %p537 = pneg %p155
        %p538 = pneg %p179
        %p539 = pneg %p176
        %p540 = pneg %p200
        %p541 = pneg %p197
        %p542 = pneg %p221
        %p543 = pneg %p218
        %p544 = pneg %p242
        %p545 = pneg %p239
        %p546 = pneg %p263
        %p547 = pneg %p260
        %p548 = pneg %p284
        %p549 = pneg %p281
        %p550 = pneg %p305
        %p551 = pneg %p302
        %p552 = pneg %p326
        %p553 = pneg %p323
        %p554 = pneg %p352
        %p555 = pneg %p349
        %s556 = sand.u32 %s339, 1
        %s557 = scalar_lea.sflag [#allocation4], %s556
        %s558 = sand.u32 %s339, 1
        %s559 = scalar_lea.vmem [#allocation14], %s558
        %p560 = scmp.lt.s32.totalorder %s32, 1
        %s561 = scalar_select %p560, %s32, 1
        %s562 = smul.addr %s561, 2
        %s563 = smul.addr %s562, 4
        %s564 = scalar_lea.vmem %s0, %s563
        %v565 = vld [vmem:[%s564] sm:$0x77]
        %v566 = vld [vmem:[%s2] sm:$0x3f]
        %568 = vset.pattern.permute.xlu0 0
        %569 = vperm.xlu0 %568, %v566
        %v570 = vpop.permute.xlu0 %569
        %v572 = vadd.f32 %v570, 0.0
        %v574 = vcombine.high %v565, %v565
        %575 = vrot.lane.b32.xlu0 %v574, 17
        %v576 = vpop.permute.xlu0 %575
        %578 = vrot.lane.b32.xlu0 %v565, 17
        %v579 = vpop.permute.xlu0 %578
        %vm580 = vcmask 138240
        %v581 = vsel %vm580, %v579, %v576
        %v584 = vsel %vm580, %v576, %v579
        %v585 = vld [vmem:[#allocation5] ss:$8 sm:$0x3]
        %v587 = vlaneseq
        %v588 = vshrl.u32 %v587, 7
        %v589 = vsub.s32 0, %v588
        %v590 = vrot.slane %v585, %v589
        %v591 = vlaneseq
        %v592 = vshrl.u32 %v591, 7
        %v593 = vsub.s32 1, %v592
        %v594 = vrot.slane %v585, %v593
        %v597 = vmul.f32 %v584, %v590
        %v598 = vmul.f32 %v581, %v594
        %v599 = vld [vmem:[#allocation2] sm:$0x3f]
        %601 = vset.pattern.permute.xlu0 0
        %602 = vperm.xlu0 %601, %v599
        %v603 = vpop.permute.xlu0 %602
        %v605 = vlaneseq
        %v606 = vshrl.u32 %v605, 7
        %v607 = vsub.s32 0, %v606
        %v608 = vrot.slane %v597, %v607
        %v609 = vlaneseq
        %v610 = vshrl.u32 %v609, 7
        %v611 = vsub.s32 0, %v610
        %v612 = vrot.slane %v598, %v611
        %v613 = vmul.f32 %v603, %v608
        %v614 = vmul.f32 %v603, %v612
        %v615 = vadd.f32 %v572, %v613
        %v616 = vadd.f32 %v572, %v614
        %617 = vset.pattern.permute.xlu0 1
        %618 = vperm.xlu0 %617, %v599
        %v619 = vpop.permute.xlu0 %618
        %v621 = vlaneseq
        %v622 = vshrl.u32 %v621, 7
        %v623 = vsub.s32 1, %v622
        %v624 = vrot.slane %v597, %v623
        %v625 = vlaneseq
        %v626 = vshrl.u32 %v625, 7
        %v627 = vsub.s32 1, %v626
        %v628 = vrot.slane %v598, %v627
        %v629 = vmul.f32 %v619, %v624
        %v630 = vmul.f32 %v619, %v628
        %v631 = vadd.f32 %v615, %v629
        %v632 = vadd.f32 %v616, %v630
        %633 = vset.pattern.permute.xlu0 2
        %634 = vperm.xlu0 %633, %v599
        %v635 = vpop.permute.xlu0 %634
        %v637 = vlaneseq
        %v638 = vshrl.u32 %v637, 7
        %v639 = vsub.s32 2, %v638
        %v640 = vrot.slane %v597, %v639
        %v641 = vlaneseq
        %v642 = vshrl.u32 %v641, 7
        %v643 = vsub.s32 2, %v642
        %v644 = vrot.slane %v598, %v643
        %v645 = vmul.f32 %v635, %v640
        %v646 = vmul.f32 %v635, %v644
        %v647 = vadd.f32 %v631, %v645
        %v648 = vadd.f32 %v632, %v646
        %649 = vrot.lane.b32.xlu0 %v574, 16
        %v650 = vpop.permute.xlu0 %649
        %652 = vrot.lane.b32.xlu0 %v565, 16
        %v653 = vpop.permute.xlu0 %652
        %vm654 = vcmask 130048
        %v655 = vsel %vm654, %v653, %v650
        %v658 = vsel %vm654, %v650, %v653
        %s659 = scalar_lea.vmem [#allocation5], 1
        %v660 = vld [vmem:[%s659] ss:$8 sm:$0x3]
        %v662 = vlaneseq
        %v663 = vshrl.u32 %v662, 7
        %v664 = vsub.s32 0, %v663
        %v665 = vrot.slane %v660, %v664
        %v666 = vlaneseq
        %v667 = vshrl.u32 %v666, 7
        %v668 = vsub.s32 1, %v667
        %v669 = vrot.slane %v660, %v668
        %v672 = vmul.f32 %v658, %v665
        %v673 = vmul.f32 %v655, %v669
        %v674 = vld [vmem:[#allocation2] sm:$0x3f]
        %676 = vset.pattern.permute.xlu0 3
        %677 = vperm.xlu0 %676, %v674
        %v678 = vpop.permute.xlu0 %677
        %v680 = vlaneseq
        %v681 = vshrl.u32 %v680, 7
        %v682 = vsub.s32 0, %v681
        %v683 = vrot.slane %v672, %v682
        %v684 = vlaneseq
        %v685 = vshrl.u32 %v684, 7
        %v686 = vsub.s32 0, %v685
        %v687 = vrot.slane %v673, %v686
        %v688 = vmul.f32 %v678, %v683
        %v689 = vmul.f32 %v678, %v687
        %v690 = vadd.f32 %v647, %v688
        %v691 = vadd.f32 %v648, %v689
        %692 = vset.pattern.permute.xlu0 4
        %693 = vperm.xlu0 %692, %v674
        %v694 = vpop.permute.xlu0 %693
        %v696 = vlaneseq
        %v697 = vshrl.u32 %v696, 7
        %v698 = vsub.s32 1, %v697
        %v699 = vrot.slane %v672, %v698
        %v700 = vlaneseq
        %v701 = vshrl.u32 %v700, 7
        %v702 = vsub.s32 1, %v701
        %v703 = vrot.slane %v673, %v702
        %v704 = vmul.f32 %v694, %v699
        %v705 = vmul.f32 %v694, %v703
        %v706 = vadd.f32 %v690, %v704
        %v707 = vadd.f32 %v691, %v705
        %708 = vset.pattern.permute.xlu0 5
        %709 = vperm.xlu0 %708, %v674
        %v710 = vpop.permute.xlu0 %709
        %v712 = vlaneseq
        %v713 = vshrl.u32 %v712, 7
        %v714 = vsub.s32 2, %v713
        %v715 = vrot.slane %v672, %v714
        %v716 = vlaneseq
        %v717 = vshrl.u32 %v716, 7
        %v718 = vsub.s32 2, %v717
        %v719 = vrot.slane %v673, %v718
        %v720 = vmul.f32 %v710, %v715
        %v721 = vmul.f32 %v710, %v719
        %v722 = vadd.f32 %v706, %v720
        %v723 = vadd.f32 %v707, %v721
        %724 = vrot.lane.b32.xlu0 %v574, 15
        %v725 = vpop.permute.xlu0 %724
        %727 = vrot.lane.b32.xlu0 %v565, 15
        %v728 = vpop.permute.xlu0 %727
        %vm729 = vcmask 121856
        %v730 = vsel %vm729, %v728, %v725
        %v733 = vsel %vm729, %v725, %v728
        %s734 = scalar_lea.vmem [#allocation5], 2
        %v735 = vld [vmem:[%s734] ss:$8 sm:$0x3]
        %v737 = vlaneseq
        %v738 = vshrl.u32 %v737, 7
        %v739 = vsub.s32 0, %v738
        %v740 = vrot.slane %v735, %v739
        %v741 = vlaneseq
        %v742 = vshrl.u32 %v741, 7
        %v743 = vsub.s32 1, %v742
        %v744 = vrot.slane %v735, %v743
        %v747 = vmul.f32 %v733, %v740
        %v748 = vmul.f32 %v730, %v744
        %v749 = vld [vmem:[#allocation2] sm:$0x3f]
        %751 = vset.pattern.permute.xlu0 6
        %752 = vperm.xlu0 %751, %v749
        %v753 = vpop.permute.xlu0 %752
        %v755 = vlaneseq
        %v756 = vshrl.u32 %v755, 7
        %v757 = vsub.s32 0, %v756
        %v758 = vrot.slane %v747, %v757
        %v759 = vlaneseq
        %v760 = vshrl.u32 %v759, 7
        %v761 = vsub.s32 0, %v760
        %v762 = vrot.slane %v748, %v761
        %v763 = vmul.f32 %v753, %v758
        %v764 = vmul.f32 %v753, %v762
        %v765 = vadd.f32 %v722, %v763
        %v766 = vadd.f32 %v723, %v764
        %767 = vset.pattern.permute.xlu0 7
        %768 = vperm.xlu0 %767, %v749
        %v769 = vpop.permute.xlu0 %768
        %v771 = vlaneseq
        %v772 = vshrl.u32 %v771, 7
        %v773 = vsub.s32 1, %v772
        %v774 = vrot.slane %v747, %v773
        %v775 = vlaneseq
        %v776 = vshrl.u32 %v775, 7
        %v777 = vsub.s32 1, %v776
        %v778 = vrot.slane %v748, %v777
        %v779 = vmul.f32 %v769, %v774
        %v780 = vmul.f32 %v769, %v778
        %v781 = vadd.f32 %v765, %v779
        %v782 = vadd.f32 %v766, %v780
        %783 = vset.pattern.permute.xlu0 8
        %784 = vperm.xlu0 %783, %v749
        %v785 = vpop.permute.xlu0 %784
        %v787 = vlaneseq
        %v788 = vshrl.u32 %v787, 7
        %v789 = vsub.s32 2, %v788
        %v790 = vrot.slane %v747, %v789
        %v791 = vlaneseq
        %v792 = vshrl.u32 %v791, 7
        %v793 = vsub.s32 2, %v792
        %v794 = vrot.slane %v748, %v793
        %v795 = vmul.f32 %v785, %v790
        %v796 = vmul.f32 %v785, %v794
        %v797 = vadd.f32 %v781, %v795
        %v798 = vadd.f32 %v782, %v796
        %799 = vrot.lane.b32.xlu0 %v574, 1
        %v800 = vpop.permute.xlu0 %799
        %802 = vrot.lane.b32.xlu0 %v565, 1
        %v803 = vpop.permute.xlu0 %802
        %vm804 = vcmask 7168
        %v805 = vsel %vm804, %v803, %v800
        %v808 = vsel %vm804, %v800, %v803
        %s809 = scalar_lea.vmem [#allocation5], 3
        %v810 = vld [vmem:[%s809] ss:$8 sm:$0x3]
        %v812 = vlaneseq
        %v813 = vshrl.u32 %v812, 7
        %v814 = vsub.s32 0, %v813
        %v815 = vrot.slane %v810, %v814
        %v816 = vlaneseq
        %v817 = vshrl.u32 %v816, 7
        %v818 = vsub.s32 1, %v817
        %v819 = vrot.slane %v810, %v818
        %v822 = vmul.f32 %v808, %v815
        %v823 = vmul.f32 %v805, %v819
        %v824 = vld [vmem:[#allocation2] sm:$0x3f]
        %826 = vset.pattern.permute.xlu0 9
        %827 = vperm.xlu0 %826, %v824
        %v828 = vpop.permute.xlu0 %827
        %v830 = vlaneseq
        %v831 = vshrl.u32 %v830, 7
        %v832 = vsub.s32 0, %v831
        %v833 = vrot.slane %v822, %v832
        %v834 = vlaneseq
        %v835 = vshrl.u32 %v834, 7
        %v836 = vsub.s32 0, %v835
        %v837 = vrot.slane %v823, %v836
        %v838 = vmul.f32 %v828, %v833
        %v839 = vmul.f32 %v828, %v837
        %v840 = vadd.f32 %v797, %v838
        %v841 = vadd.f32 %v798, %v839
        %842 = vset.pattern.permute.xlu0 10
        %843 = vperm.xlu0 %842, %v824
        %v844 = vpop.permute.xlu0 %843
        %v846 = vlaneseq
        %v847 = vshrl.u32 %v846, 7
        %v848 = vsub.s32 1, %v847
        %v849 = vrot.slane %v822, %v848
        %v850 = vlaneseq
        %v851 = vshrl.u32 %v850, 7
        %v852 = vsub.s32 1, %v851
        %v853 = vrot.slane %v823, %v852
        %v854 = vmul.f32 %v844, %v849
        %v855 = vmul.f32 %v844, %v853
        %v856 = vadd.f32 %v840, %v854
        %v857 = vadd.f32 %v841, %v855
        %858 = vset.pattern.permute.xlu0 11
        %859 = vperm.xlu0 %858, %v824
        %v860 = vpop.permute.xlu0 %859
        %v862 = vlaneseq
        %v863 = vshrl.u32 %v862, 7
        %v864 = vsub.s32 2, %v863
        %v865 = vrot.slane %v822, %v864
        %v866 = vlaneseq
        %v867 = vshrl.u32 %v866, 7
        %v868 = vsub.s32 2, %v867
        %v869 = vrot.slane %v823, %v868
        %v870 = vmul.f32 %v860, %v865
        %v871 = vmul.f32 %v860, %v869
        %v872 = vadd.f32 %v856, %v870
        %v873 = vadd.f32 %v857, %v871
        %874 = vset.pattern.permute.xlu0 12
        %875 = vperm.xlu0 %874, %v824
        %v876 = vpop.permute.xlu0 %875
        %v878 = vlaneseq
        %v879 = vshrl.u32 %v878, 7
        %v880 = vsub.s32 0, %v879
        %v881 = vrot.slane %v565, %v880
        %v882 = vlaneseq
        %v883 = vshrl.u32 %v882, 7
        %v884 = vsub.s32 4, %v883
        %v885 = vrot.slane %v565, %v884
        %v888 = vlaneseq
        %v889 = vshrl.u32 %v888, 7
        %v890 = vsub.s32 0, %v889
        %v891 = vrot.slane %v881, %v890
        %v892 = vlaneseq
        %v893 = vshrl.u32 %v892, 7
        %v894 = vsub.s32 0, %v893
        %v895 = vrot.slane %v885, %v894
        %v896 = vmul.f32 %v876, %v891
        %v897 = vmul.f32 %v876, %v895
        %v898 = vadd.f32 %v872, %v896
        %v899 = vadd.f32 %v873, %v897
        %900 = vset.pattern.permute.xlu0 13
        %901 = vperm.xlu0 %900, %v824
        %v902 = vpop.permute.xlu0 %901
        %v904 = vlaneseq
        %v905 = vshrl.u32 %v904, 7
        %v906 = vsub.s32 1, %v905
        %v907 = vrot.slane %v565, %v906
        %v908 = vlaneseq
        %v909 = vshrl.u32 %v908, 7
        %v910 = vsub.s32 5, %v909
        %v911 = vrot.slane %v565, %v910
        %v914 = vlaneseq
        %v915 = vshrl.u32 %v914, 7
        %v916 = vsub.s32 1, %v915
        %v917 = vrot.slane %v907, %v916
        %v918 = vlaneseq
        %v919 = vshrl.u32 %v918, 7
        %v920 = vsub.s32 1, %v919
        %v921 = vrot.slane %v911, %v920
        %v922 = vmul.f32 %v902, %v917
        %v923 = vmul.f32 %v902, %v921
        %v924 = vadd.f32 %v898, %v922
        %v925 = vadd.f32 %v899, %v923
        %926 = vset.pattern.permute.xlu0 14
        %927 = vperm.xlu0 %926, %v824
        %v928 = vpop.permute.xlu0 %927
        %v930 = vlaneseq
        %v931 = vshrl.u32 %v930, 7
        %v932 = vsub.s32 2, %v931
        %v933 = vrot.slane %v565, %v932
        %v934 = vlaneseq
        %v935 = vshrl.u32 %v934, 7
        %v936 = vsub.s32 6, %v935
        %v937 = vrot.slane %v565, %v936
        %v940 = vlaneseq
        %v941 = vshrl.u32 %v940, 7
        %v942 = vsub.s32 2, %v941
        %v943 = vrot.slane %v933, %v942
        %v944 = vlaneseq
        %v945 = vshrl.u32 %v944, 7
        %v946 = vsub.s32 2, %v945
        %v947 = vrot.slane %v937, %v946
        %v948 = vmul.f32 %v928, %v943
        %v949 = vmul.f32 %v928, %v947
        %v950 = vadd.f32 %v924, %v948
        %v951 = vadd.f32 %v925, %v949
        %952 = vrot.lane.b32.xlu0 %v565, 127
        %v953 = vpop.permute.xlu0 %952
        %954 = vrot.lane.b32.xlu0 %v574, 127
        %v955 = vpop.permute.xlu0 %954
        %vm956 = vcmask 1039360
        %v957 = vsel %vm956, %v953, %v955
        %v961 = vsel %vm956, %v955, %v953
        %s962 = scalar_lea.vmem [#allocation5], 5
        %v963 = vld [vmem:[%s962] ss:$8 sm:$0x3]
        %v965 = vlaneseq
        %v966 = vshrl.u32 %v965, 7
        %v967 = vsub.s32 0, %v966
        %v968 = vrot.slane %v963, %v967
        %v969 = vlaneseq
        %v970 = vshrl.u32 %v969, 7
        %v971 = vsub.s32 1, %v970
        %v972 = vrot.slane %v963, %v971
        %v975 = vmul.f32 %v957, %v968
        %v976 = vmul.f32 %v961, %v972
        %v977 = vld [vmem:[#allocation2] sm:$0x3f]
        %979 = vset.pattern.permute.xlu0 15
        %980 = vperm.xlu0 %979, %v977
        %v981 = vpop.permute.xlu0 %980
        %v983 = vlaneseq
        %v984 = vshrl.u32 %v983, 7
        %v985 = vsub.s32 0, %v984
        %v986 = vrot.slane %v975, %v985
        %v987 = vlaneseq
        %v988 = vshrl.u32 %v987, 7
        %v989 = vsub.s32 0, %v988
        %v990 = vrot.slane %v976, %v989
        %v991 = vmul.f32 %v981, %v986
        %v992 = vmul.f32 %v981, %v990
        %v993 = vadd.f32 %v950, %v991
        %v994 = vadd.f32 %v951, %v992
        %995 = vset.pattern.permute.xlu0 16
        %996 = vperm.xlu0 %995, %v977
        %v997 = vpop.permute.xlu0 %996
        %v999 = vlaneseq
        %v1000 = vshrl.u32 %v999, 7
        %v1001 = vsub.s32 1, %v1000
        %v1002 = vrot.slane %v975, %v1001
        %v1003 = vlaneseq
        %v1004 = vshrl.u32 %v1003, 7
        %v1005 = vsub.s32 1, %v1004
        %v1006 = vrot.slane %v976, %v1005
        %v1007 = vmul.f32 %v997, %v1002
        %v1008 = vmul.f32 %v997, %v1006
        %v1009 = vadd.f32 %v993, %v1007
        %v1010 = vadd.f32 %v994, %v1008
        %1011 = vset.pattern.permute.xlu0 17
        %1012 = vperm.xlu0 %1011, %v977
        %v1013 = vpop.permute.xlu0 %1012
        %v1015 = vlaneseq
        %v1016 = vshrl.u32 %v1015, 7
        %v1017 = vsub.s32 2, %v1016
        %v1018 = vrot.slane %v975, %v1017
        %v1019 = vlaneseq
        %v1020 = vshrl.u32 %v1019, 7
        %v1021 = vsub.s32 2, %v1020
        %v1022 = vrot.slane %v976, %v1021
        %v1023 = vmul.f32 %v1013, %v1018
        %v1024 = vmul.f32 %v1013, %v1022
        %v1025 = vadd.f32 %v1009, %v1023
        %v1026 = vadd.f32 %v1010, %v1024
        %1027 = vrot.lane.b32.xlu0 %v565, 113
        %v1028 = vpop.permute.xlu0 %1027
        %1029 = vrot.lane.b32.xlu0 %v574, 113
        %v1030 = vpop.permute.xlu0 %1029
        %vm1031 = vcmask 924672
        %v1032 = vsel %vm1031, %v1028, %v1030
        %v1036 = vsel %vm1031, %v1030, %v1028
        %s1037 = scalar_lea.vmem [#allocation5], 6
        %v1038 = vld [vmem:[%s1037] ss:$8 sm:$0x3]
        %v1040 = vlaneseq
        %v1041 = vshrl.u32 %v1040, 7
        %v1042 = vsub.s32 0, %v1041
        %v1043 = vrot.slane %v1038, %v1042
        %v1044 = vlaneseq
        %v1045 = vshrl.u32 %v1044, 7
        %v1046 = vsub.s32 1, %v1045
        %v1047 = vrot.slane %v1038, %v1046
        %v1050 = vmul.f32 %v1032, %v1043
        %v1051 = vmul.f32 %v1036, %v1047
        %v1052 = vld [vmem:[#allocation2] sm:$0x3f]
        %1054 = vset.pattern.permute.xlu0 18
        %1055 = vperm.xlu0 %1054, %v1052
        %v1056 = vpop.permute.xlu0 %1055
        %v1058 = vlaneseq
        %v1059 = vshrl.u32 %v1058, 7
        %v1060 = vsub.s32 0, %v1059
        %v1061 = vrot.slane %v1050, %v1060
        %v1062 = vlaneseq
        %v1063 = vshrl.u32 %v1062, 7
        %v1064 = vsub.s32 0, %v1063
        %v1065 = vrot.slane %v1051, %v1064
        %v1066 = vmul.f32 %v1056, %v1061
        %v1067 = vmul.f32 %v1056, %v1065
        %v1068 = vadd.f32 %v1025, %v1066
        %v1069 = vadd.f32 %v1026, %v1067
        %1070 = vset.pattern.permute.xlu0 19
        %1071 = vperm.xlu0 %1070, %v1052
        %v1072 = vpop.permute.xlu0 %1071
        %v1074 = vlaneseq
        %v1075 = vshrl.u32 %v1074, 7
        %v1076 = vsub.s32 1, %v1075
        %v1077 = vrot.slane %v1050, %v1076
        %v1078 = vlaneseq
        %v1079 = vshrl.u32 %v1078, 7
        %v1080 = vsub.s32 1, %v1079
        %v1081 = vrot.slane %v1051, %v1080
        %v1082 = vmul.f32 %v1072, %v1077
        %v1083 = vmul.f32 %v1072, %v1081
        %v1084 = vadd.f32 %v1068, %v1082
        %v1085 = vadd.f32 %v1069, %v1083
        %1086 = vset.pattern.permute.xlu0 20
        %1087 = vperm.xlu0 %1086, %v1052
        %v1088 = vpop.permute.xlu0 %1087
        %v1090 = vlaneseq
        %v1091 = vshrl.u32 %v1090, 7
        %v1092 = vsub.s32 2, %v1091
        %v1093 = vrot.slane %v1050, %v1092
        %v1094 = vlaneseq
        %v1095 = vshrl.u32 %v1094, 7
        %v1096 = vsub.s32 2, %v1095
        %v1097 = vrot.slane %v1051, %v1096
        %v1098 = vmul.f32 %v1088, %v1093
        %v1099 = vmul.f32 %v1088, %v1097
        %v1100 = vadd.f32 %v1084, %v1098
        %v1101 = vadd.f32 %v1085, %v1099
        %1102 = vrot.lane.b32.xlu0 %v565, 112
        %v1103 = vpop.permute.xlu0 %1102
        %1104 = vrot.lane.b32.xlu0 %v574, 112
        %v1105 = vpop.permute.xlu0 %1104
        %vm1106 = vcmask 916480
        %v1107 = vsel %vm1106, %v1103, %v1105
        %v1111 = vsel %vm1106, %v1105, %v1103
        %s1112 = scalar_lea.vmem [#allocation5], 7
        %v1113 = vld [vmem:[%s1112] ss:$8 sm:$0x3]
        %v1115 = vlaneseq
        %v1116 = vshrl.u32 %v1115, 7
        %v1117 = vsub.s32 0, %v1116
        %v1118 = vrot.slane %v1113, %v1117
        %v1119 = vlaneseq
        %v1120 = vshrl.u32 %v1119, 7
        %v1121 = vsub.s32 1, %v1120
        %v1122 = vrot.slane %v1113, %v1121
        %v1125 = vmul.f32 %v1107, %v1118
        %v1126 = vmul.f32 %v1111, %v1122
        %v1127 = vld [vmem:[#allocation2] sm:$0x3f]
        %1129 = vset.pattern.permute.xlu0 21
        %1130 = vperm.xlu0 %1129, %v1127
        %v1131 = vpop.permute.xlu0 %1130
        %v1133 = vlaneseq
        %v1134 = vshrl.u32 %v1133, 7
        %v1135 = vsub.s32 0, %v1134
        %v1136 = vrot.slane %v1125, %v1135
        %v1137 = vlaneseq
        %v1138 = vshrl.u32 %v1137, 7
        %v1139 = vsub.s32 0, %v1138
        %v1140 = vrot.slane %v1126, %v1139
        %v1141 = vmul.f32 %v1131, %v1136
        %v1142 = vmul.f32 %v1131, %v1140
        %v1143 = vadd.f32 %v1100, %v1141
        %v1144 = vadd.f32 %v1101, %v1142
        %1145 = vset.pattern.permute.xlu0 22
        %1146 = vperm.xlu0 %1145, %v1127
        %v1147 = vpop.permute.xlu0 %1146
        %v1149 = vlaneseq
        %v1150 = vshrl.u32 %v1149, 7
        %v1151 = vsub.s32 1, %v1150
        %v1152 = vrot.slane %v1125, %v1151
        %v1153 = vlaneseq
        %v1154 = vshrl.u32 %v1153, 7
        %v1155 = vsub.s32 1, %v1154
        %v1156 = vrot.slane %v1126, %v1155
        %v1157 = vmul.f32 %v1147, %v1152
        %v1158 = vmul.f32 %v1147, %v1156
        %v1159 = vadd.f32 %v1143, %v1157
        %v1160 = vadd.f32 %v1144, %v1158
        %1161 = vset.pattern.permute.xlu0 23
        %1162 = vperm.xlu0 %1161, %v1127
        %v1163 = vpop.permute.xlu0 %1162
        %v1165 = vlaneseq
        %v1166 = vshrl.u32 %v1165, 7
        %v1167 = vsub.s32 2, %v1166
        %v1168 = vrot.slane %v1125, %v1167
        %v1169 = vlaneseq
        %v1170 = vshrl.u32 %v1169, 7
        %v1171 = vsub.s32 2, %v1170
        %v1172 = vrot.slane %v1126, %v1171
        %v1173 = vmul.f32 %v1163, %v1168
        %v1174 = vmul.f32 %v1163, %v1172
        %v1175 = vadd.f32 %v1159, %v1173
        %v1176 = vadd.f32 %v1160, %v1174
        %1177 = vrot.lane.b32.xlu0 %v565, 111
        %v1178 = vpop.permute.xlu0 %1177
        %1179 = vrot.lane.b32.xlu0 %v574, 111
        %v1180 = vpop.permute.xlu0 %1179
        %vm1181 = vcmask 908288
        %v1182 = vsel %vm1181, %v1178, %v1180
        %v1186 = vsel %vm1181, %v1180, %v1178
        %s1187 = scalar_lea.vmem [#allocation5], 16
        %v1188 = vld [vmem:[%s1187] ss:$8 sm:$0x3]
        %v1190 = vlaneseq
        %v1191 = vshrl.u32 %v1190, 7
        %v1192 = vsub.s32 0, %v1191
        %v1193 = vrot.slane %v1188, %v1192
        %v1194 = vlaneseq
        %v1195 = vshrl.u32 %v1194, 7
        %v1196 = vsub.s32 1, %v1195
        %v1197 = vrot.slane %v1188, %v1196
        %v1200 = vmul.f32 %v1182, %v1193
        %v1201 = vmul.f32 %v1186, %v1197
        %v1202 = vld [vmem:[#allocation2] sm:$0x3f]
        %1204 = vset.pattern.permute.xlu0 24
        %1205 = vperm.xlu0 %1204, %v1202
        %v1206 = vpop.permute.xlu0 %1205
        %v1208 = vlaneseq
        %v1209 = vshrl.u32 %v1208, 7
        %v1210 = vsub.s32 0, %v1209
        %v1211 = vrot.slane %v1200, %v1210
        %v1212 = vlaneseq
        %v1213 = vshrl.u32 %v1212, 7
        %v1214 = vsub.s32 0, %v1213
        %v1215 = vrot.slane %v1201, %v1214
        %v1216 = vmul.f32 %v1206, %v1211
        %v1217 = vmul.f32 %v1206, %v1215
        %v1218 = vadd.f32 %v1175, %v1216
        %v1219 = vadd.f32 %v1176, %v1217
        %1220 = vset.pattern.permute.xlu0 25
        %1221 = vperm.xlu0 %1220, %v1202
        %v1222 = vpop.permute.xlu0 %1221
        %v1224 = vlaneseq
        %v1225 = vshrl.u32 %v1224, 7
        %v1226 = vsub.s32 1, %v1225
        %v1227 = vrot.slane %v1200, %v1226
        %v1228 = vlaneseq
        %v1229 = vshrl.u32 %v1228, 7
        %v1230 = vsub.s32 1, %v1229
        %v1231 = vrot.slane %v1201, %v1230
        %v1232 = vmul.f32 %v1222, %v1227
        %v1233 = vmul.f32 %v1222, %v1231
        %v1234 = vadd.f32 %v1218, %v1232
        %v1235 = vadd.f32 %v1219, %v1233
        %1236 = vset.pattern.permute.xlu0 26
        %1237 = vperm.xlu0 %1236, %v1202
        %v1238 = vpop.permute.xlu0 %1237
        %v1240 = vlaneseq
        %v1241 = vshrl.u32 %v1240, 7
        %v1242 = vsub.s32 2, %v1241
        %v1243 = vrot.slane %v1200, %v1242
        %v1244 = vlaneseq
        %v1245 = vshrl.u32 %v1244, 7
        %v1246 = vsub.s32 2, %v1245
        %v1247 = vrot.slane %v1201, %v1246
        %v1248 = vmul.f32 %v1238, %v1243
        %v1249 = vmul.f32 %v1238, %v1247
        %v1250 = vadd.f32 %v1234, %v1248
        %v1251 = vadd.f32 %v1235, %v1249
        %v1252 = vmax.f32 %v1250, 0.0
        %v1253 = vmax.f32 %v1251, 0.0
        %1256 = vrot.lane.b32.xlu0 %v1252, 127
        %v1257 = vpop.permute.xlu0 %1256
        %1258 = vrot.lane.b32.xlu0 %v1253, 127
        %v1259 = vpop.permute.xlu0 %1258
        %v1260 = vsel %vm956, %v1257, %v1259
        %v1264 = vsel %vm956, %v1259, %v1257
        %v1265 = vmax.f32 %v1252, %v1260
        %v1266 = vmax.f32 %v1253, %v1264
        %1267 = vrot.lane.b32.xlu0 %v1252, 112
        %v1268 = vpop.permute.xlu0 %1267
        %1269 = vrot.lane.b32.xlu0 %v1253, 112
        %v1270 = vpop.permute.xlu0 %1269
        %v1271 = vsel %vm1106, %v1268, %v1270
        %v1275 = vsel %vm1106, %v1270, %v1268
        %1276 = vrot.lane.b32.xlu0 %v1252, 111
        %v1277 = vpop.permute.xlu0 %1276
        %1278 = vrot.lane.b32.xlu0 %v1253, 111
        %v1279 = vpop.permute.xlu0 %1278
        %v1280 = vsel %vm1181, %v1277, %v1279
        %v1284 = vsel %vm1181, %v1279, %v1277
        %v1285 = vmax.f32 %v1271, %v1280
        %v1286 = vmax.f32 %v1275, %v1284
        %v1287 = vmax.f32 %v1265, %v1285
        %v1288 = vmax.f32 %v1266, %v1286
        %v1289 = vld [vmem:[%s5] sm:$0xff]
        %v1290 = vld [vmem:[%s5 + $0x8] sm:$0xff]
        %1292 = vset.pattern.permute.xlu0 0
        %1293 = vperm.xlu0 %1292, %v1289
        %v1294 = vpop.permute.xlu0 %1293
        %1297 = vset.pattern.permute.xlu0 0
        %1298 = vperm.xlu0 %1297, %v1290
        %v1299 = vpop.permute.xlu0 %1298
        %v1301 = vadd.f32 %v1294, 0.0
        %v1302 = vadd.f32 %v1299, 0.0
        %1304 = vrot.lane.b32.xlu0 %v1288, 34
        %v1305 = vpop.permute.xlu0 %1304
        %1308 = vrot.lane.b32.xlu0 %v1287, 34
        %v1309 = vpop.permute.xlu0 %1308
        %vm1310 = vcmask 277504
        %v1311 = vsel %vm1310, %v1309, %v1305
        %v1314 = vsel %vm1310, %v1305, %v1309
        %v1315 = vld [vmem:[#allocation8] ss:$8 sm:$0x3]
        %v1317 = vlaneseq
        %v1318 = vshrl.u32 %v1317, 7
        %v1319 = vsub.s32 0, %v1318
        %v1320 = vrot.slane %v1315, %v1319
        %v1321 = vlaneseq
        %v1322 = vshrl.u32 %v1321, 7
        %v1323 = vsub.s32 1, %v1322
        %v1324 = vrot.slane %v1315, %v1323
        %v1327 = vmul.f32 %v1314, %v1320
        %v1328 = vmul.f32 %v1311, %v1324
        %v1329 = vld [vmem:[#allocation7] sm:$0xff]
        %v1330 = vld [vmem:[#allocation7 + $0x8] sm:$0xff]
        %1332 = vset.pattern.permute.xlu0 0
        %1333 = vperm.xlu0 %1332, %v1329
        %v1334 = vpop.permute.xlu0 %1333
        %1337 = vset.pattern.permute.xlu0 0
        %1338 = vperm.xlu0 %1337, %v1330
        %v1339 = vpop.permute.xlu0 %1338
        %v1341 = vlaneseq
        %v1342 = vshrl.u32 %v1341, 7
        %v1343 = vsub.s32 0, %v1342
        %v1344 = vrot.slane %v1327, %v1343
        %v1345 = vlaneseq
        %v1346 = vshrl.u32 %v1345, 7
        %v1347 = vsub.s32 0, %v1346
        %v1348 = vrot.slane %v1328, %v1347
        %v1349 = vmul.f32 %v1334, %v1344
        %v1350 = vmul.f32 %v1334, %v1348
        %v1351 = vmul.f32 %v1339, %v1344
        %v1352 = vmul.f32 %v1339, %v1348
        %v1353 = vadd.f32 %v1301, %v1349
        %v1354 = vadd.f32 %v1301, %v1350
        %v1355 = vadd.f32 %v1302, %v1351
        %v1356 = vadd.f32 %v1302, %v1352
        %1357 = vset.pattern.permute.xlu0 1
        %1358 = vperm.xlu0 %1357, %v1329
        %v1359 = vpop.permute.xlu0 %1358
        %1361 = vset.pattern.permute.xlu0 1
        %1362 = vperm.xlu0 %1361, %v1330
        %v1363 = vpop.permute.xlu0 %1362
        %v1365 = vlaneseq
        %v1366 = vshrl.u32 %v1365, 7
        %v1367 = vsub.s32 1, %v1366
        %v1368 = vrot.slane %v1327, %v1367
        %v1369 = vlaneseq
        %v1370 = vshrl.u32 %v1369, 7
        %v1371 = vsub.s32 1, %v1370
        %v1372 = vrot.slane %v1328, %v1371
        %v1373 = vmul.f32 %v1359, %v1368
        %v1374 = vmul.f32 %v1359, %v1372
        %v1375 = vmul.f32 %v1363, %v1368
        %v1376 = vmul.f32 %v1363, %v1372
        %v1377 = vadd.f32 %v1353, %v1373
        %v1378 = vadd.f32 %v1354, %v1374
        %v1379 = vadd.f32 %v1355, %v1375
        %v1380 = vadd.f32 %v1356, %v1376
        %1381 = vset.pattern.permute.xlu0 2
        %1382 = vperm.xlu0 %1381, %v1329
        %v1383 = vpop.permute.xlu0 %1382
        %1385 = vset.pattern.permute.xlu0 2
        %1386 = vperm.xlu0 %1385, %v1330
        %v1387 = vpop.permute.xlu0 %1386
        %v1389 = vlaneseq
        %v1390 = vshrl.u32 %v1389, 7
        %v1391 = vsub.s32 2, %v1390
        %v1392 = vrot.slane %v1327, %v1391
        %v1393 = vlaneseq
        %v1394 = vshrl.u32 %v1393, 7
        %v1395 = vsub.s32 2, %v1394
        %v1396 = vrot.slane %v1328, %v1395
        %v1397 = vmul.f32 %v1383, %v1392
        %v1398 = vmul.f32 %v1383, %v1396
        %v1399 = vmul.f32 %v1387, %v1392
        %v1400 = vmul.f32 %v1387, %v1396
        %v1401 = vadd.f32 %v1377, %v1397
        %v1402 = vadd.f32 %v1378, %v1398
        %v1403 = vadd.f32 %v1379, %v1399
        %v1404 = vadd.f32 %v1380, %v1400
        %1405 = vset.pattern.permute.xlu0 3
        %1406 = vperm.xlu0 %1405, %v1329
        %v1407 = vpop.permute.xlu0 %1406
        %1409 = vset.pattern.permute.xlu0 3
        %1410 = vperm.xlu0 %1409, %v1330
        %v1411 = vpop.permute.xlu0 %1410
        %v1413 = vlaneseq
        %v1414 = vshrl.u32 %v1413, 7
        %v1415 = vsub.s32 3, %v1414
        %v1416 = vrot.slane %v1327, %v1415
        %v1417 = vlaneseq
        %v1418 = vshrl.u32 %v1417, 7
        %v1419 = vsub.s32 3, %v1418
        %v1420 = vrot.slane %v1328, %v1419
        %v1421 = vmul.f32 %v1407, %v1416
        %v1422 = vmul.f32 %v1407, %v1420
        %v1423 = vmul.f32 %v1411, %v1416
        %v1424 = vmul.f32 %v1411, %v1420
        %v1425 = vadd.f32 %v1401, %v1421
        %v1426 = vadd.f32 %v1402, %v1422
        %v1427 = vadd.f32 %v1403, %v1423
        %v1428 = vadd.f32 %v1404, %v1424
        %1429 = vset.pattern.permute.xlu0 4
        %1430 = vperm.xlu0 %1429, %v1329
        %v1431 = vpop.permute.xlu0 %1430
        %1433 = vset.pattern.permute.xlu0 4
        %1434 = vperm.xlu0 %1433, %v1330
        %v1435 = vpop.permute.xlu0 %1434
        %v1437 = vlaneseq
        %v1438 = vshrl.u32 %v1437, 7
        %v1439 = vsub.s32 4, %v1438
        %v1440 = vrot.slane %v1327, %v1439
        %v1441 = vlaneseq
        %v1442 = vshrl.u32 %v1441, 7
        %v1443 = vsub.s32 4, %v1442
        %v1444 = vrot.slane %v1328, %v1443
        %v1445 = vmul.f32 %v1431, %v1440
        %v1446 = vmul.f32 %v1431, %v1444
        %v1447 = vmul.f32 %v1435, %v1440
        %v1448 = vmul.f32 %v1435, %v1444
        %v1449 = vadd.f32 %v1425, %v1445
        %v1450 = vadd.f32 %v1426, %v1446
        %v1451 = vadd.f32 %v1427, %v1447
        %v1452 = vadd.f32 %v1428, %v1448
        %1453 = vset.pattern.permute.xlu0 5
        %1454 = vperm.xlu0 %1453, %v1329
        %v1455 = vpop.permute.xlu0 %1454
        %1457 = vset.pattern.permute.xlu0 5
        %1458 = vperm.xlu0 %1457, %v1330
        %v1459 = vpop.permute.xlu0 %1458
        %v1461 = vlaneseq
        %v1462 = vshrl.u32 %v1461, 7
        %v1463 = vsub.s32 5, %v1462
        %v1464 = vrot.slane %v1327, %v1463
        %v1465 = vlaneseq
        %v1466 = vshrl.u32 %v1465, 7
        %v1467 = vsub.s32 5, %v1466
        %v1468 = vrot.slane %v1328, %v1467
        %v1469 = vmul.f32 %v1455, %v1464
        %v1470 = vmul.f32 %v1455, %v1468
        %v1471 = vmul.f32 %v1459, %v1464
        %v1472 = vmul.f32 %v1459, %v1468
        %v1473 = vadd.f32 %v1449, %v1469
        %v1474 = vadd.f32 %v1450, %v1470
        %v1475 = vadd.f32 %v1451, %v1471
        %v1476 = vadd.f32 %v1452, %v1472
        %1477 = vrot.lane.b32.xlu0 %v1288, 32
        %v1478 = vpop.permute.xlu0 %1477
        %1480 = vrot.lane.b32.xlu0 %v1287, 32
        %v1481 = vpop.permute.xlu0 %1480
        %vm1482 = vcmask 261120
        %v1483 = vsel %vm1482, %v1481, %v1478
        %v1486 = vsel %vm1482, %v1478, %v1481
        %s1487 = scalar_lea.vmem [#allocation8], 1
        %v1488 = vld [vmem:[%s1487] ss:$8 sm:$0x3]
        %v1490 = vlaneseq
        %v1491 = vshrl.u32 %v1490, 7
        %v1492 = vsub.s32 0, %v1491
        %v1493 = vrot.slane %v1488, %v1492
        %v1494 = vlaneseq
        %v1495 = vshrl.u32 %v1494, 7
        %v1496 = vsub.s32 1, %v1495
        %v1497 = vrot.slane %v1488, %v1496
        %v1500 = vmul.f32 %v1486, %v1493
        %v1501 = vmul.f32 %v1483, %v1497
        %1502 = vset.pattern.permute.xlu0 6
        %1503 = vperm.xlu0 %1502, %v1329
        %v1504 = vpop.permute.xlu0 %1503
        %1506 = vset.pattern.permute.xlu0 6
        %1507 = vperm.xlu0 %1506, %v1330
        %v1508 = vpop.permute.xlu0 %1507
        %v1510 = vlaneseq
        %v1511 = vshrl.u32 %v1510, 7
        %v1512 = vsub.s32 0, %v1511
        %v1513 = vrot.slane %v1500, %v1512
        %v1514 = vlaneseq
        %v1515 = vshrl.u32 %v1514, 7
        %v1516 = vsub.s32 0, %v1515
        %v1517 = vrot.slane %v1501, %v1516
        %v1518 = vmul.f32 %v1504, %v1513
        %v1519 = vmul.f32 %v1504, %v1517
        %v1520 = vmul.f32 %v1508, %v1513
        %v1521 = vmul.f32 %v1508, %v1517
        %v1522 = vadd.f32 %v1473, %v1518
        %v1523 = vadd.f32 %v1474, %v1519
        %v1524 = vadd.f32 %v1475, %v1520
        %v1525 = vadd.f32 %v1476, %v1521
        %1526 = vset.pattern.permute.xlu0 7
        %1527 = vperm.xlu0 %1526, %v1329
        %v1528 = vpop.permute.xlu0 %1527
        %1530 = vset.pattern.permute.xlu0 7
        %1531 = vperm.xlu0 %1530, %v1330
        %v1532 = vpop.permute.xlu0 %1531
        %v1534 = vlaneseq
        %v1535 = vshrl.u32 %v1534, 7
        %v1536 = vsub.s32 1, %v1535
        %v1537 = vrot.slane %v1500, %v1536
        %v1538 = vlaneseq
        %v1539 = vshrl.u32 %v1538, 7
        %v1540 = vsub.s32 1, %v1539
        %v1541 = vrot.slane %v1501, %v1540
        %v1542 = vmul.f32 %v1528, %v1537
        %v1543 = vmul.f32 %v1528, %v1541
        %v1544 = vmul.f32 %v1532, %v1537
        %v1545 = vmul.f32 %v1532, %v1541
        %v1546 = vadd.f32 %v1522, %v1542
        %v1547 = vadd.f32 %v1523, %v1543
        %v1548 = vadd.f32 %v1524, %v1544
        %v1549 = vadd.f32 %v1525, %v1545
        %1550 = vset.pattern.permute.xlu0 8
        %1551 = vperm.xlu0 %1550, %v1329
        %v1552 = vpop.permute.xlu0 %1551
        %1554 = vset.pattern.permute.xlu0 8
        %1555 = vperm.xlu0 %1554, %v1330
        %v1556 = vpop.permute.xlu0 %1555
        %v1558 = vlaneseq
        %v1559 = vshrl.u32 %v1558, 7
        %v1560 = vsub.s32 2, %v1559
        %v1561 = vrot.slane %v1500, %v1560
        %v1562 = vlaneseq
        %v1563 = vshrl.u32 %v1562, 7
        %v1564 = vsub.s32 2, %v1563
        %v1565 = vrot.slane %v1501, %v1564
        %v1566 = vmul.f32 %v1552, %v1561
        %v1567 = vmul.f32 %v1552, %v1565
        %v1568 = vmul.f32 %v1556, %v1561
        %v1569 = vmul.f32 %v1556, %v1565
        %v1570 = vadd.f32 %v1546, %v1566
        %v1571 = vadd.f32 %v1547, %v1567
        %v1572 = vadd.f32 %v1548, %v1568
        %v1573 = vadd.f32 %v1549, %v1569
        %1574 = vset.pattern.permute.xlu0 9
        %1575 = vperm.xlu0 %1574, %v1329
        %v1576 = vpop.permute.xlu0 %1575
        %1578 = vset.pattern.permute.xlu0 9
        %1579 = vperm.xlu0 %1578, %v1330
        %v1580 = vpop.permute.xlu0 %1579
        %v1582 = vlaneseq
        %v1583 = vshrl.u32 %v1582, 7
        %v1584 = vsub.s32 3, %v1583
        %v1585 = vrot.slane %v1500, %v1584
        %v1586 = vlaneseq
        %v1587 = vshrl.u32 %v1586, 7
        %v1588 = vsub.s32 3, %v1587
        %v1589 = vrot.slane %v1501, %v1588
        %v1590 = vmul.f32 %v1576, %v1585
        %v1591 = vmul.f32 %v1576, %v1589
        %v1592 = vmul.f32 %v1580, %v1585
        %v1593 = vmul.f32 %v1580, %v1589
        %v1594 = vadd.f32 %v1570, %v1590
        %v1595 = vadd.f32 %v1571, %v1591
        %v1596 = vadd.f32 %v1572, %v1592
        %v1597 = vadd.f32 %v1573, %v1593
        %1598 = vset.pattern.permute.xlu0 10
        %1599 = vperm.xlu0 %1598, %v1329
        %v1600 = vpop.permute.xlu0 %1599
        %1602 = vset.pattern.permute.xlu0 10
        %1603 = vperm.xlu0 %1602, %v1330
        %v1604 = vpop.permute.xlu0 %1603
        %v1606 = vlaneseq
        %v1607 = vshrl.u32 %v1606, 7
        %v1608 = vsub.s32 4, %v1607
        %v1609 = vrot.slane %v1500, %v1608
        %v1610 = vlaneseq
        %v1611 = vshrl.u32 %v1610, 7
        %v1612 = vsub.s32 4, %v1611
        %v1613 = vrot.slane %v1501, %v1612
        %v1614 = vmul.f32 %v1600, %v1609
        %v1615 = vmul.f32 %v1600, %v1613
        %v1616 = vmul.f32 %v1604, %v1609
        %v1617 = vmul.f32 %v1604, %v1613
        %v1618 = vadd.f32 %v1594, %v1614
        %v1619 = vadd.f32 %v1595, %v1615
        %v1620 = vadd.f32 %v1596, %v1616
        %v1621 = vadd.f32 %v1597, %v1617
        %1622 = vset.pattern.permute.xlu0 11
        %1623 = vperm.xlu0 %1622, %v1329
        %v1624 = vpop.permute.xlu0 %1623
        %1626 = vset.pattern.permute.xlu0 11
        %1627 = vperm.xlu0 %1626, %v1330
        %v1628 = vpop.permute.xlu0 %1627
        %v1630 = vlaneseq
        %v1631 = vshrl.u32 %v1630, 7
        %v1632 = vsub.s32 5, %v1631
        %v1633 = vrot.slane %v1500, %v1632
        %v1634 = vlaneseq
        %v1635 = vshrl.u32 %v1634, 7
        %v1636 = vsub.s32 5, %v1635
        %v1637 = vrot.slane %v1501, %v1636
        %v1638 = vmul.f32 %v1624, %v1633
        %v1639 = vmul.f32 %v1624, %v1637
        %v1640 = vmul.f32 %v1628, %v1633
        %v1641 = vmul.f32 %v1628, %v1637
        %v1642 = vadd.f32 %v1618, %v1638
        %v1643 = vadd.f32 %v1619, %v1639
        %v1644 = vadd.f32 %v1620, %v1640
        %v1645 = vadd.f32 %v1621, %v1641
        %1646 = vrot.lane.b32.xlu0 %v1288, 30
        %v1647 = vpop.permute.xlu0 %1646
        %1649 = vrot.lane.b32.xlu0 %v1287, 30
        %v1650 = vpop.permute.xlu0 %1649
        %vm1651 = vcmask 244736
        %v1652 = vsel %vm1651, %v1650, %v1647
        %v1655 = vsel %vm1651, %v1647, %v1650
        %s1656 = scalar_lea.vmem [#allocation8], 2
        %v1657 = vld [vmem:[%s1656] ss:$8 sm:$0x3]
        %v1659 = vlaneseq
        %v1660 = vshrl.u32 %v1659, 7
        %v1661 = vsub.s32 0, %v1660
        %v1662 = vrot.slane %v1657, %v1661
        %v1663 = vlaneseq
        %v1664 = vshrl.u32 %v1663, 7
        %v1665 = vsub.s32 1, %v1664
        %v1666 = vrot.slane %v1657, %v1665
        %v1669 = vmul.f32 %v1655, %v1662
        %v1670 = vmul.f32 %v1652, %v1666
        %1671 = vset.pattern.permute.xlu0 12
        %1672 = vperm.xlu0 %1671, %v1329
        %v1673 = vpop.permute.xlu0 %1672
        %1675 = vset.pattern.permute.xlu0 12
        %1676 = vperm.xlu0 %1675, %v1330
        %v1677 = vpop.permute.xlu0 %1676
        %v1679 = vlaneseq
        %v1680 = vshrl.u32 %v1679, 7
        %v1681 = vsub.s32 0, %v1680
        %v1682 = vrot.slane %v1669, %v1681
        %v1683 = vlaneseq
        %v1684 = vshrl.u32 %v1683, 7
        %v1685 = vsub.s32 0, %v1684
        %v1686 = vrot.slane %v1670, %v1685
        %v1687 = vmul.f32 %v1673, %v1682
        %v1688 = vmul.f32 %v1673, %v1686
        %v1689 = vmul.f32 %v1677, %v1682
        %v1690 = vmul.f32 %v1677, %v1686
        %v1691 = vadd.f32 %v1642, %v1687
        %v1692 = vadd.f32 %v1643, %v1688
        %v1693 = vadd.f32 %v1644, %v1689
        %v1694 = vadd.f32 %v1645, %v1690
        %1695 = vset.pattern.permute.xlu0 13
        %1696 = vperm.xlu0 %1695, %v1329
        %v1697 = vpop.permute.xlu0 %1696
        %1699 = vset.pattern.permute.xlu0 13
        %1700 = vperm.xlu0 %1699, %v1330
        %v1701 = vpop.permute.xlu0 %1700
        %v1703 = vlaneseq
        %v1704 = vshrl.u32 %v1703, 7
        %v1705 = vsub.s32 1, %v1704
        %v1706 = vrot.slane %v1669, %v1705
        %v1707 = vlaneseq
        %v1708 = vshrl.u32 %v1707, 7
        %v1709 = vsub.s32 1, %v1708
        %v1710 = vrot.slane %v1670, %v1709
        %v1711 = vmul.f32 %v1697, %v1706
        %v1712 = vmul.f32 %v1697, %v1710
        %v1713 = vmul.f32 %v1701, %v1706
        %v1714 = vmul.f32 %v1701, %v1710
        %v1715 = vadd.f32 %v1691, %v1711
        %v1716 = vadd.f32 %v1692, %v1712
        %v1717 = vadd.f32 %v1693, %v1713
        %v1718 = vadd.f32 %v1694, %v1714
        %1719 = vset.pattern.permute.xlu0 14
        %1720 = vperm.xlu0 %1719, %v1329
        %v1721 = vpop.permute.xlu0 %1720
        %1723 = vset.pattern.permute.xlu0 14
        %1724 = vperm.xlu0 %1723, %v1330
        %v1725 = vpop.permute.xlu0 %1724
        %v1727 = vlaneseq
        %v1728 = vshrl.u32 %v1727, 7
        %v1729 = vsub.s32 2, %v1728
        %v1730 = vrot.slane %v1669, %v1729
        %v1731 = vlaneseq
        %v1732 = vshrl.u32 %v1731, 7
        %v1733 = vsub.s32 2, %v1732
        %v1734 = vrot.slane %v1670, %v1733
        %v1735 = vmul.f32 %v1721, %v1730
        %v1736 = vmul.f32 %v1721, %v1734
        %v1737 = vmul.f32 %v1725, %v1730
        %v1738 = vmul.f32 %v1725, %v1734
        %v1739 = vadd.f32 %v1715, %v1735
        %v1740 = vadd.f32 %v1716, %v1736
        %v1741 = vadd.f32 %v1717, %v1737
        %v1742 = vadd.f32 %v1718, %v1738
        %1743 = vset.pattern.permute.xlu0 15
        %1744 = vperm.xlu0 %1743, %v1329
        %v1745 = vpop.permute.xlu0 %1744
        %1747 = vset.pattern.permute.xlu0 15
        %1748 = vperm.xlu0 %1747, %v1330
        %v1749 = vpop.permute.xlu0 %1748
        %v1751 = vlaneseq
        %v1752 = vshrl.u32 %v1751, 7
        %v1753 = vsub.s32 3, %v1752
        %v1754 = vrot.slane %v1669, %v1753
        %v1755 = vlaneseq
        %v1756 = vshrl.u32 %v1755, 7
        %v1757 = vsub.s32 3, %v1756
        %v1758 = vrot.slane %v1670, %v1757
        %v1759 = vmul.f32 %v1745, %v1754
        %v1760 = vmul.f32 %v1745, %v1758
        %v1761 = vmul.f32 %v1749, %v1754
        %v1762 = vmul.f32 %v1749, %v1758
        %v1763 = vadd.f32 %v1739, %v1759
        %v1764 = vadd.f32 %v1740, %v1760
        %v1765 = vadd.f32 %v1741, %v1761
        %v1766 = vadd.f32 %v1742, %v1762
        %1767 = vset.pattern.permute.xlu0 16
        %1768 = vperm.xlu0 %1767, %v1329
        %v1769 = vpop.permute.xlu0 %1768
        %1771 = vset.pattern.permute.xlu0 16
        %1772 = vperm.xlu0 %1771, %v1330
        %v1773 = vpop.permute.xlu0 %1772
        %v1775 = vlaneseq
        %v1776 = vshrl.u32 %v1775, 7
        %v1777 = vsub.s32 4, %v1776
        %v1778 = vrot.slane %v1669, %v1777
        %v1779 = vlaneseq
        %v1780 = vshrl.u32 %v1779, 7
        %v1781 = vsub.s32 4, %v1780
        %v1782 = vrot.slane %v1670, %v1781
        %v1783 = vmul.f32 %v1769, %v1778
        %v1784 = vmul.f32 %v1769, %v1782
        %v1785 = vmul.f32 %v1773, %v1778
        %v1786 = vmul.f32 %v1773, %v1782
        %v1787 = vadd.f32 %v1763, %v1783
        %v1788 = vadd.f32 %v1764, %v1784
        %v1789 = vadd.f32 %v1765, %v1785
        %v1790 = vadd.f32 %v1766, %v1786
        %1791 = vset.pattern.permute.xlu0 17
        %1792 = vperm.xlu0 %1791, %v1329
        %v1793 = vpop.permute.xlu0 %1792
        %1795 = vset.pattern.permute.xlu0 17
        %1796 = vperm.xlu0 %1795, %v1330
        %v1797 = vpop.permute.xlu0 %1796
        %v1799 = vlaneseq
        %v1800 = vshrl.u32 %v1799, 7
        %v1801 = vsub.s32 5, %v1800
        %v1802 = vrot.slane %v1669, %v1801
        %v1803 = vlaneseq
        %v1804 = vshrl.u32 %v1803, 7
        %v1805 = vsub.s32 5, %v1804
        %v1806 = vrot.slane %v1670, %v1805
        %v1807 = vmul.f32 %v1793, %v1802
        %v1808 = vmul.f32 %v1793, %v1806
        %v1809 = vmul.f32 %v1797, %v1802
        %v1810 = vmul.f32 %v1797, %v1806
        %v1811 = vadd.f32 %v1787, %v1807
        %v1812 = vadd.f32 %v1788, %v1808
        %v1813 = vadd.f32 %v1789, %v1809
        %v1814 = vadd.f32 %v1790, %v1810
        %1815 = vrot.lane.b32.xlu0 %v1288, 2
        %v1816 = vpop.permute.xlu0 %1815
        %1818 = vrot.lane.b32.xlu0 %v1287, 2
        %v1819 = vpop.permute.xlu0 %1818
        %vm1820 = vcmask 15360
        %v1821 = vsel %vm1820, %v1819, %v1816
        %v1824 = vsel %vm1820, %v1816, %v1819
        %s1825 = scalar_lea.vmem [#allocation8], 3
        %v1826 = vld [vmem:[%s1825] ss:$8 sm:$0x3]
        %v1828 = vlaneseq
        %v1829 = vshrl.u32 %v1828, 7
        %v1830 = vsub.s32 0, %v1829
        %v1831 = vrot.slane %v1826, %v1830
        %v1832 = vlaneseq
        %v1833 = vshrl.u32 %v1832, 7
        %v1834 = vsub.s32 1, %v1833
        %v1835 = vrot.slane %v1826, %v1834
        %v1838 = vmul.f32 %v1824, %v1831
        %v1839 = vmul.f32 %v1821, %v1835
        %1840 = vset.pattern.permute.xlu0 18
        %1841 = vperm.xlu0 %1840, %v1329
        %v1842 = vpop.permute.xlu0 %1841
        %1844 = vset.pattern.permute.xlu0 18
        %1845 = vperm.xlu0 %1844, %v1330
        %v1846 = vpop.permute.xlu0 %1845
        %v1848 = vlaneseq
        %v1849 = vshrl.u32 %v1848, 7
        %v1850 = vsub.s32 0, %v1849
        %v1851 = vrot.slane %v1838, %v1850
        %v1852 = vlaneseq
        %v1853 = vshrl.u32 %v1852, 7
        %v1854 = vsub.s32 0, %v1853
        %v1855 = vrot.slane %v1839, %v1854
        %v1856 = vmul.f32 %v1842, %v1851
        %v1857 = vmul.f32 %v1842, %v1855
        %v1858 = vmul.f32 %v1846, %v1851
        %v1859 = vmul.f32 %v1846, %v1855
        %v1860 = vadd.f32 %v1811, %v1856
        %v1861 = vadd.f32 %v1812, %v1857
        %v1862 = vadd.f32 %v1813, %v1858
        %v1863 = vadd.f32 %v1814, %v1859
        %1864 = vset.pattern.permute.xlu0 19
        %1865 = vperm.xlu0 %1864, %v1329
        %v1866 = vpop.permute.xlu0 %1865
        %1868 = vset.pattern.permute.xlu0 19
        %1869 = vperm.xlu0 %1868, %v1330
        %v1870 = vpop.permute.xlu0 %1869
        %v1872 = vlaneseq
        %v1873 = vshrl.u32 %v1872, 7
        %v1874 = vsub.s32 1, %v1873
        %v1875 = vrot.slane %v1838, %v1874
        %v1876 = vlaneseq
        %v1877 = vshrl.u32 %v1876, 7
        %v1878 = vsub.s32 1, %v1877
        %v1879 = vrot.slane %v1839, %v1878
        %v1880 = vmul.f32 %v1866, %v1875
        %v1881 = vmul.f32 %v1866, %v1879
        %v1882 = vmul.f32 %v1870, %v1875
        %v1883 = vmul.f32 %v1870, %v1879
        %v1884 = vadd.f32 %v1860, %v1880
        %v1885 = vadd.f32 %v1861, %v1881
        %v1886 = vadd.f32 %v1862, %v1882
        %v1887 = vadd.f32 %v1863, %v1883
        %1888 = vset.pattern.permute.xlu0 20
        %1889 = vperm.xlu0 %1888, %v1329
        %v1890 = vpop.permute.xlu0 %1889
        %1892 = vset.pattern.permute.xlu0 20
        %1893 = vperm.xlu0 %1892, %v1330
        %v1894 = vpop.permute.xlu0 %1893
        %v1896 = vlaneseq
        %v1897 = vshrl.u32 %v1896, 7
        %v1898 = vsub.s32 2, %v1897
        %v1899 = vrot.slane %v1838, %v1898
        %v1900 = vlaneseq
        %v1901 = vshrl.u32 %v1900, 7
        %v1902 = vsub.s32 2, %v1901
        %v1903 = vrot.slane %v1839, %v1902
        %v1904 = vmul.f32 %v1890, %v1899
        %v1905 = vmul.f32 %v1890, %v1903
        %v1906 = vmul.f32 %v1894, %v1899
        %v1907 = vmul.f32 %v1894, %v1903
        %v1908 = vadd.f32 %v1884, %v1904
        %v1909 = vadd.f32 %v1885, %v1905
        %v1910 = vadd.f32 %v1886, %v1906
        %v1911 = vadd.f32 %v1887, %v1907
        %1912 = vset.pattern.permute.xlu0 21
        %1913 = vperm.xlu0 %1912, %v1329
        %v1914 = vpop.permute.xlu0 %1913
        %1916 = vset.pattern.permute.xlu0 21
        %1917 = vperm.xlu0 %1916, %v1330
        %v1918 = vpop.permute.xlu0 %1917
        %v1920 = vlaneseq
        %v1921 = vshrl.u32 %v1920, 7
        %v1922 = vsub.s32 3, %v1921
        %v1923 = vrot.slane %v1838, %v1922
        %v1924 = vlaneseq
        %v1925 = vshrl.u32 %v1924, 7
        %v1926 = vsub.s32 3, %v1925
        %v1927 = vrot.slane %v1839, %v1926
        %v1928 = vmul.f32 %v1914, %v1923
        %v1929 = vmul.f32 %v1914, %v1927
        %v1930 = vmul.f32 %v1918, %v1923
        %v1931 = vmul.f32 %v1918, %v1927
        %v1932 = vadd.f32 %v1908, %v1928
        %v1933 = vadd.f32 %v1909, %v1929
        %v1934 = vadd.f32 %v1910, %v1930
        %v1935 = vadd.f32 %v1911, %v1931
        %1936 = vset.pattern.permute.xlu0 22
        %1937 = vperm.xlu0 %1936, %v1329
        %v1938 = vpop.permute.xlu0 %1937
        %1940 = vset.pattern.permute.xlu0 22
        %1941 = vperm.xlu0 %1940, %v1330
        %v1942 = vpop.permute.xlu0 %1941
        %v1944 = vlaneseq
        %v1945 = vshrl.u32 %v1944, 7
        %v1946 = vsub.s32 4, %v1945
        %v1947 = vrot.slane %v1838, %v1946
        %v1948 = vlaneseq
        %v1949 = vshrl.u32 %v1948, 7
        %v1950 = vsub.s32 4, %v1949
        %v1951 = vrot.slane %v1839, %v1950
        %v1952 = vmul.f32 %v1938, %v1947
        %v1953 = vmul.f32 %v1938, %v1951
        %v1954 = vmul.f32 %v1942, %v1947
        %v1955 = vmul.f32 %v1942, %v1951
        %v1956 = vadd.f32 %v1932, %v1952
        %v1957 = vadd.f32 %v1933, %v1953
        %v1958 = vadd.f32 %v1934, %v1954
        %v1959 = vadd.f32 %v1935, %v1955
        %1960 = vset.pattern.permute.xlu0 23
        %1961 = vperm.xlu0 %1960, %v1329
        %v1962 = vpop.permute.xlu0 %1961
        %1964 = vset.pattern.permute.xlu0 23
        %1965 = vperm.xlu0 %1964, %v1330
        %v1966 = vpop.permute.xlu0 %1965
        %v1968 = vlaneseq
        %v1969 = vshrl.u32 %v1968, 7
        %v1970 = vsub.s32 5, %v1969
        %v1971 = vrot.slane %v1838, %v1970
        %v1972 = vlaneseq
        %v1973 = vshrl.u32 %v1972, 7
        %v1974 = vsub.s32 5, %v1973
        %v1975 = vrot.slane %v1839, %v1974
        %v1976 = vmul.f32 %v1962, %v1971
        %v1977 = vmul.f32 %v1962, %v1975
        %v1978 = vmul.f32 %v1966, %v1971
        %v1979 = vmul.f32 %v1966, %v1975
        %v1980 = vadd.f32 %v1956, %v1976
        %v1981 = vadd.f32 %v1957, %v1977
        %v1982 = vadd.f32 %v1958, %v1978
        %v1983 = vadd.f32 %v1959, %v1979
        %1984 = vset.pattern.permute.xlu0 24
        %1985 = vperm.xlu0 %1984, %v1329
        %v1986 = vpop.permute.xlu0 %1985
        %1988 = vset.pattern.permute.xlu0 24
        %1989 = vperm.xlu0 %1988, %v1330
        %v1990 = vpop.permute.xlu0 %1989
        %v1992 = vlaneseq
        %v1993 = vshrl.u32 %v1992, 7
        %v1994 = vsub.s32 0, %v1993
        %v1995 = vrot.slane %v1287, %v1994
        %v1996 = vlaneseq
        %v1997 = vshrl.u32 %v1996, 7
        %v1998 = vsub.s32 0, %v1997
        %v1999 = vrot.slane %v1288, %v1998
        %v2000 = vmul.f32 %v1986, %v1995
        %v2001 = vmul.f32 %v1986, %v1999
        %v2002 = vmul.f32 %v1990, %v1995
        %v2003 = vmul.f32 %v1990, %v1999
        %v2004 = vadd.f32 %v1980, %v2000
        %v2005 = vadd.f32 %v1981, %v2001
        %v2006 = vadd.f32 %v1982, %v2002
        %v2007 = vadd.f32 %v1983, %v2003
        %2008 = vset.pattern.permute.xlu0 25
        %2009 = vperm.xlu0 %2008, %v1329
        %v2010 = vpop.permute.xlu0 %2009
        %2012 = vset.pattern.permute.xlu0 25
        %2013 = vperm.xlu0 %2012, %v1330
        %v2014 = vpop.permute.xlu0 %2013
        %v2016 = vlaneseq
        %v2017 = vshrl.u32 %v2016, 7
        %v2018 = vsub.s32 1, %v2017
        %v2019 = vrot.slane %v1287, %v2018
        %v2020 = vlaneseq
        %v2021 = vshrl.u32 %v2020, 7
        %v2022 = vsub.s32 1, %v2021
        %v2023 = vrot.slane %v1288, %v2022
        %v2024 = vmul.f32 %v2010, %v2019
        %v2025 = vmul.f32 %v2010, %v2023
        %v2026 = vmul.f32 %v2014, %v2019
        %v2027 = vmul.f32 %v2014, %v2023
        %v2028 = vadd.f32 %v2004, %v2024
        %v2029 = vadd.f32 %v2005, %v2025
        %v2030 = vadd.f32 %v2006, %v2026
        %v2031 = vadd.f32 %v2007, %v2027
        %2032 = vset.pattern.permute.xlu0 26
        %2033 = vperm.xlu0 %2032, %v1329
        %v2034 = vpop.permute.xlu0 %2033
        %2036 = vset.pattern.permute.xlu0 26
        %2037 = vperm.xlu0 %2036, %v1330
        %v2038 = vpop.permute.xlu0 %2037
        %v2040 = vlaneseq
        %v2041 = vshrl.u32 %v2040, 7
        %v2042 = vsub.s32 2, %v2041
        %v2043 = vrot.slane %v1287, %v2042
        %v2044 = vlaneseq
        %v2045 = vshrl.u32 %v2044, 7
        %v2046 = vsub.s32 2, %v2045
        %v2047 = vrot.slane %v1288, %v2046
        %v2048 = vmul.f32 %v2034, %v2043
        %v2049 = vmul.f32 %v2034, %v2047
        %v2050 = vmul.f32 %v2038, %v2043
        %v2051 = vmul.f32 %v2038, %v2047
        %v2052 = vadd.f32 %v2028, %v2048
        %v2053 = vadd.f32 %v2029, %v2049
        %v2054 = vadd.f32 %v2030, %v2050
        %v2055 = vadd.f32 %v2031, %v2051
        %2056 = vset.pattern.permute.xlu0 27
        %2057 = vperm.xlu0 %2056, %v1329
        %v2058 = vpop.permute.xlu0 %2057
        %2060 = vset.pattern.permute.xlu0 27
        %2061 = vperm.xlu0 %2060, %v1330
        %v2062 = vpop.permute.xlu0 %2061
        %v2064 = vlaneseq
        %v2065 = vshrl.u32 %v2064, 7
        %v2066 = vsub.s32 3, %v2065
        %v2067 = vrot.slane %v1287, %v2066
        %v2068 = vlaneseq
        %v2069 = vshrl.u32 %v2068, 7
        %v2070 = vsub.s32 3, %v2069
        %v2071 = vrot.slane %v1288, %v2070
        %v2072 = vmul.f32 %v2058, %v2067
        %v2073 = vmul.f32 %v2058, %v2071
        %v2074 = vmul.f32 %v2062, %v2067
        %v2075 = vmul.f32 %v2062, %v2071
        %v2076 = vadd.f32 %v2052, %v2072
        %v2077 = vadd.f32 %v2053, %v2073
        %v2078 = vadd.f32 %v2054, %v2074
        %v2079 = vadd.f32 %v2055, %v2075
        %2080 = vset.pattern.permute.xlu0 28
        %2081 = vperm.xlu0 %2080, %v1329
        %v2082 = vpop.permute.xlu0 %2081
        %2084 = vset.pattern.permute.xlu0 28
        %2085 = vperm.xlu0 %2084, %v1330
        %v2086 = vpop.permute.xlu0 %2085
        %v2088 = vlaneseq
        %v2089 = vshrl.u32 %v2088, 7
        %v2090 = vsub.s32 4, %v2089
        %v2091 = vrot.slane %v1287, %v2090
        %v2092 = vlaneseq
        %v2093 = vshrl.u32 %v2092, 7
        %v2094 = vsub.s32 4, %v2093
        %v2095 = vrot.slane %v1288, %v2094
        %v2096 = vmul.f32 %v2082, %v2091
        %v2097 = vmul.f32 %v2082, %v2095
        %v2098 = vmul.f32 %v2086, %v2091
        %v2099 = vmul.f32 %v2086, %v2095
        %v2100 = vadd.f32 %v2076, %v2096
        %v2101 = vadd.f32 %v2077, %v2097
        %v2102 = vadd.f32 %v2078, %v2098
        %v2103 = vadd.f32 %v2079, %v2099
        %2104 = vset.pattern.permute.xlu0 29
        %2105 = vperm.xlu0 %2104, %v1329
        %v2106 = vpop.permute.xlu0 %2105
        %2108 = vset.pattern.permute.xlu0 29
        %2109 = vperm.xlu0 %2108, %v1330
        %v2110 = vpop.permute.xlu0 %2109
        %v2112 = vlaneseq
        %v2113 = vshrl.u32 %v2112, 7
        %v2114 = vsub.s32 5, %v2113
        %v2115 = vrot.slane %v1287, %v2114
        %v2116 = vlaneseq
        %v2117 = vshrl.u32 %v2116, 7
        %v2118 = vsub.s32 5, %v2117
        %v2119 = vrot.slane %v1288, %v2118
        %v2120 = vmul.f32 %v2106, %v2115
        %v2121 = vmul.f32 %v2106, %v2119
        %v2122 = vmul.f32 %v2110, %v2115
        %v2123 = vmul.f32 %v2110, %v2119
        %v2124 = vadd.f32 %v2100, %v2120
        %v2125 = vadd.f32 %v2101, %v2121
        %v2126 = vadd.f32 %v2102, %v2122
        %v2127 = vadd.f32 %v2103, %v2123
        %2128 = vrot.lane.b32.xlu0 %v1287, 126
        %v2129 = vpop.permute.xlu0 %2128
        %2130 = vrot.lane.b32.xlu0 %v1288, 126
        %v2131 = vpop.permute.xlu0 %2130
        %vm2132 = vcmask 1031168
        %v2133 = vsel %vm2132, %v2129, %v2131
        %v2137 = vsel %vm2132, %v2131, %v2129
        %s2138 = scalar_lea.vmem [#allocation8], 5
        %v2139 = vld [vmem:[%s2138] ss:$8 sm:$0x3]
        %v2141 = vlaneseq
        %v2142 = vshrl.u32 %v2141, 7
        %v2143 = vsub.s32 0, %v2142
        %v2144 = vrot.slane %v2139, %v2143
        %v2145 = vlaneseq
        %v2146 = vshrl.u32 %v2145, 7
        %v2147 = vsub.s32 1, %v2146
        %v2148 = vrot.slane %v2139, %v2147
        %v2151 = vmul.f32 %v2133, %v2144
        %v2152 = vmul.f32 %v2137, %v2148
        %2153 = vset.pattern.permute.xlu0 30
        %2154 = vperm.xlu0 %2153, %v1329
        %v2155 = vpop.permute.xlu0 %2154
        %2157 = vset.pattern.permute.xlu0 30
        %2158 = vperm.xlu0 %2157, %v1330
        %v2159 = vpop.permute.xlu0 %2158
        %v2161 = vlaneseq
        %v2162 = vshrl.u32 %v2161, 7
        %v2163 = vsub.s32 0, %v2162
        %v2164 = vrot.slane %v2151, %v2163
        %v2165 = vlaneseq
        %v2166 = vshrl.u32 %v2165, 7
        %v2167 = vsub.s32 0, %v2166
        %v2168 = vrot.slane %v2152, %v2167
        %v2169 = vmul.f32 %v2155, %v2164
        %v2170 = vmul.f32 %v2155, %v2168
        %v2171 = vmul.f32 %v2159, %v2164
        %v2172 = vmul.f32 %v2159, %v2168
        %v2173 = vadd.f32 %v2124, %v2169
        %v2174 = vadd.f32 %v2125, %v2170
        %v2175 = vadd.f32 %v2126, %v2171
        %v2176 = vadd.f32 %v2127, %v2172
        %2177 = vset.pattern.permute.xlu0 31
        %2178 = vperm.xlu0 %2177, %v1329
        %v2179 = vpop.permute.xlu0 %2178
        %2181 = vset.pattern.permute.xlu0 31
        %2182 = vperm.xlu0 %2181, %v1330
        %v2183 = vpop.permute.xlu0 %2182
        %v2185 = vlaneseq
        %v2186 = vshrl.u32 %v2185, 7
        %v2187 = vsub.s32 1, %v2186
        %v2188 = vrot.slane %v2151, %v2187
        %v2189 = vlaneseq
        %v2190 = vshrl.u32 %v2189, 7
        %v2191 = vsub.s32 1, %v2190
        %v2192 = vrot.slane %v2152, %v2191
        %v2193 = vmul.f32 %v2179, %v2188
        %v2194 = vmul.f32 %v2179, %v2192
        %v2195 = vmul.f32 %v2183, %v2188
        %v2196 = vmul.f32 %v2183, %v2192
        %v2197 = vadd.f32 %v2173, %v2193
        %v2198 = vadd.f32 %v2174, %v2194
        %v2199 = vadd.f32 %v2175, %v2195
        %v2200 = vadd.f32 %v2176, %v2196
        %2201 = vset.pattern.permute.xlu0 32
        %2202 = vperm.xlu0 %2201, %v1329
        %v2203 = vpop.permute.xlu0 %2202
        %2205 = vset.pattern.permute.xlu0 32
        %2206 = vperm.xlu0 %2205, %v1330
        %v2207 = vpop.permute.xlu0 %2206
        %v2209 = vlaneseq
        %v2210 = vshrl.u32 %v2209, 7
        %v2211 = vsub.s32 2, %v2210
        %v2212 = vrot.slane %v2151, %v2211
        %v2213 = vlaneseq
        %v2214 = vshrl.u32 %v2213, 7
        %v2215 = vsub.s32 2, %v2214
        %v2216 = vrot.slane %v2152, %v2215
        %v2217 = vmul.f32 %v2203, %v2212
        %v2218 = vmul.f32 %v2203, %v2216
        %v2219 = vmul.f32 %v2207, %v2212
        %v2220 = vmul.f32 %v2207, %v2216
        %v2221 = vadd.f32 %v2197, %v2217
        %v2222 = vadd.f32 %v2198, %v2218
        %v2223 = vadd.f32 %v2199, %v2219
        %v2224 = vadd.f32 %v2200, %v2220
        %2225 = vset.pattern.permute.xlu0 33
        %2226 = vperm.xlu0 %2225, %v1329
        %v2227 = vpop.permute.xlu0 %2226
        %2229 = vset.pattern.permute.xlu0 33
        %2230 = vperm.xlu0 %2229, %v1330
        %v2231 = vpop.permute.xlu0 %2230
        %v2233 = vlaneseq
        %v2234 = vshrl.u32 %v2233, 7
        %v2235 = vsub.s32 3, %v2234
        %v2236 = vrot.slane %v2151, %v2235
        %v2237 = vlaneseq
        %v2238 = vshrl.u32 %v2237, 7
        %v2239 = vsub.s32 3, %v2238
        %v2240 = vrot.slane %v2152, %v2239
        %v2241 = vmul.f32 %v2227, %v2236
        %v2242 = vmul.f32 %v2227, %v2240
        %v2243 = vmul.f32 %v2231, %v2236
        %v2244 = vmul.f32 %v2231, %v2240
        %v2245 = vadd.f32 %v2221, %v2241
        %v2246 = vadd.f32 %v2222, %v2242
        %v2247 = vadd.f32 %v2223, %v2243
        %v2248 = vadd.f32 %v2224, %v2244
        %2249 = vset.pattern.permute.xlu0 34
        %2250 = vperm.xlu0 %2249, %v1329
        %v2251 = vpop.permute.xlu0 %2250
        %2253 = vset.pattern.permute.xlu0 34
        %2254 = vperm.xlu0 %2253, %v1330
        %v2255 = vpop.permute.xlu0 %2254
        %v2257 = vlaneseq
        %v2258 = vshrl.u32 %v2257, 7
        %v2259 = vsub.s32 4, %v2258
        %v2260 = vrot.slane %v2151, %v2259
        %v2261 = vlaneseq
        %v2262 = vshrl.u32 %v2261, 7
        %v2263 = vsub.s32 4, %v2262
        %v2264 = vrot.slane %v2152, %v2263
        %v2265 = vmul.f32 %v2251, %v2260
        %v2266 = vmul.f32 %v2251, %v2264
        %v2267 = vmul.f32 %v2255, %v2260
        %v2268 = vmul.f32 %v2255, %v2264
        %v2269 = vadd.f32 %v2245, %v2265
        %v2270 = vadd.f32 %v2246, %v2266
        %v2271 = vadd.f32 %v2247, %v2267
        %v2272 = vadd.f32 %v2248, %v2268
        %2273 = vset.pattern.permute.xlu0 35
        %2274 = vperm.xlu0 %2273, %v1329
        %v2275 = vpop.permute.xlu0 %2274
        %2277 = vset.pattern.permute.xlu0 35
        %2278 = vperm.xlu0 %2277, %v1330
        %v2279 = vpop.permute.xlu0 %2278
        %v2281 = vlaneseq
        %v2282 = vshrl.u32 %v2281, 7
        %v2283 = vsub.s32 5, %v2282
        %v2284 = vrot.slane %v2151, %v2283
        %v2285 = vlaneseq
        %v2286 = vshrl.u32 %v2285, 7
        %v2287 = vsub.s32 5, %v2286
        %v2288 = vrot.slane %v2152, %v2287
        %v2289 = vmul.f32 %v2275, %v2284
        %v2290 = vmul.f32 %v2275, %v2288
        %v2291 = vmul.f32 %v2279, %v2284
        %v2292 = vmul.f32 %v2279, %v2288
        %v2293 = vadd.f32 %v2269, %v2289
        %v2294 = vadd.f32 %v2270, %v2290
        %v2295 = vadd.f32 %v2271, %v2291
        %v2296 = vadd.f32 %v2272, %v2292
        %2297 = vrot.lane.b32.xlu0 %v1287, 98
        %v2298 = vpop.permute.xlu0 %2297
        %2299 = vrot.lane.b32.xlu0 %v1288, 98
        %v2300 = vpop.permute.xlu0 %2299
        %vm2301 = vcmask 801792
        %v2302 = vsel %vm2301, %v2298, %v2300
        %v2306 = vsel %vm2301, %v2300, %v2298
        %s2307 = scalar_lea.vmem [#allocation8], 6
        %v2308 = vld [vmem:[%s2307] ss:$8 sm:$0x3]
        %v2310 = vlaneseq
        %v2311 = vshrl.u32 %v2310, 7
        %v2312 = vsub.s32 0, %v2311
        %v2313 = vrot.slane %v2308, %v2312
        %v2314 = vlaneseq
        %v2315 = vshrl.u32 %v2314, 7
        %v2316 = vsub.s32 1, %v2315
        %v2317 = vrot.slane %v2308, %v2316
        %v2320 = vmul.f32 %v2302, %v2313
        %v2321 = vmul.f32 %v2306, %v2317
        %2322 = vset.pattern.permute.xlu0 36
        %2323 = vperm.xlu0 %2322, %v1329
        %v2324 = vpop.permute.xlu0 %2323
        %2326 = vset.pattern.permute.xlu0 36
        %2327 = vperm.xlu0 %2326, %v1330
        %v2328 = vpop.permute.xlu0 %2327
        %v2330 = vlaneseq
        %v2331 = vshrl.u32 %v2330, 7
        %v2332 = vsub.s32 0, %v2331
        %v2333 = vrot.slane %v2320, %v2332
        %v2334 = vlaneseq
        %v2335 = vshrl.u32 %v2334, 7
        %v2336 = vsub.s32 0, %v2335
        %v2337 = vrot.slane %v2321, %v2336
        %v2338 = vmul.f32 %v2324, %v2333
        %v2339 = vmul.f32 %v2324, %v2337
        %v2340 = vmul.f32 %v2328, %v2333
        %v2341 = vmul.f32 %v2328, %v2337
        %v2342 = vadd.f32 %v2293, %v2338
        %v2343 = vadd.f32 %v2294, %v2339
        %v2344 = vadd.f32 %v2295, %v2340
        %v2345 = vadd.f32 %v2296, %v2341
        %2346 = vset.pattern.permute.xlu0 37
        %2347 = vperm.xlu0 %2346, %v1329
        %v2348 = vpop.permute.xlu0 %2347
        %2350 = vset.pattern.permute.xlu0 37
        %2351 = vperm.xlu0 %2350, %v1330
        %v2352 = vpop.permute.xlu0 %2351
        %v2354 = vlaneseq
        %v2355 = vshrl.u32 %v2354, 7
        %v2356 = vsub.s32 1, %v2355
        %v2357 = vrot.slane %v2320, %v2356
        %v2358 = vlaneseq
        %v2359 = vshrl.u32 %v2358, 7
        %v2360 = vsub.s32 1, %v2359
        %v2361 = vrot.slane %v2321, %v2360
        %v2362 = vmul.f32 %v2348, %v2357
        %v2363 = vmul.f32 %v2348, %v2361
        %v2364 = vmul.f32 %v2352, %v2357
        %v2365 = vmul.f32 %v2352, %v2361
        %v2366 = vadd.f32 %v2342, %v2362
        %v2367 = vadd.f32 %v2343, %v2363
        %v2368 = vadd.f32 %v2344, %v2364
        %v2369 = vadd.f32 %v2345, %v2365
        %2370 = vset.pattern.permute.xlu0 38
        %2371 = vperm.xlu0 %2370, %v1329
        %v2372 = vpop.permute.xlu0 %2371
        %2374 = vset.pattern.permute.xlu0 38
        %2375 = vperm.xlu0 %2374, %v1330
        %v2376 = vpop.permute.xlu0 %2375
        %v2378 = vlaneseq
        %v2379 = vshrl.u32 %v2378, 7
        %v2380 = vsub.s32 2, %v2379
        %v2381 = vrot.slane %v2320, %v2380
        %v2382 = vlaneseq
        %v2383 = vshrl.u32 %v2382, 7
        %v2384 = vsub.s32 2, %v2383
        %v2385 = vrot.slane %v2321, %v2384
        %v2386 = vmul.f32 %v2372, %v2381
        %v2387 = vmul.f32 %v2372, %v2385
        %v2388 = vmul.f32 %v2376, %v2381
        %v2389 = vmul.f32 %v2376, %v2385
        %v2390 = vadd.f32 %v2366, %v2386
        %v2391 = vadd.f32 %v2367, %v2387
        %v2392 = vadd.f32 %v2368, %v2388
        %v2393 = vadd.f32 %v2369, %v2389
        %2394 = vset.pattern.permute.xlu0 39
        %2395 = vperm.xlu0 %2394, %v1329
        %v2396 = vpop.permute.xlu0 %2395
        %2398 = vset.pattern.permute.xlu0 39
        %2399 = vperm.xlu0 %2398, %v1330
        %v2400 = vpop.permute.xlu0 %2399
        %v2402 = vlaneseq
        %v2403 = vshrl.u32 %v2402, 7
        %v2404 = vsub.s32 3, %v2403
        %v2405 = vrot.slane %v2320, %v2404
        %v2406 = vlaneseq
        %v2407 = vshrl.u32 %v2406, 7
        %v2408 = vsub.s32 3, %v2407
        %v2409 = vrot.slane %v2321, %v2408
        %v2410 = vmul.f32 %v2396, %v2405
        %v2411 = vmul.f32 %v2396, %v2409
        %v2412 = vmul.f32 %v2400, %v2405
        %v2413 = vmul.f32 %v2400, %v2409
        %v2414 = vadd.f32 %v2390, %v2410
        %v2415 = vadd.f32 %v2391, %v2411
        %v2416 = vadd.f32 %v2392, %v2412
        %v2417 = vadd.f32 %v2393, %v2413
        %2418 = vset.pattern.permute.xlu0 40
        %2419 = vperm.xlu0 %2418, %v1329
        %v2420 = vpop.permute.xlu0 %2419
        %2422 = vset.pattern.permute.xlu0 40
        %2423 = vperm.xlu0 %2422, %v1330
        %v2424 = vpop.permute.xlu0 %2423
        %v2426 = vlaneseq
        %v2427 = vshrl.u32 %v2426, 7
        %v2428 = vsub.s32 4, %v2427
        %v2429 = vrot.slane %v2320, %v2428
        %v2430 = vlaneseq
        %v2431 = vshrl.u32 %v2430, 7
        %v2432 = vsub.s32 4, %v2431
        %v2433 = vrot.slane %v2321, %v2432
        %v2434 = vmul.f32 %v2420, %v2429
        %v2435 = vmul.f32 %v2420, %v2433
        %v2436 = vmul.f32 %v2424, %v2429
        %v2437 = vmul.f32 %v2424, %v2433
        %v2438 = vadd.f32 %v2414, %v2434
        %v2439 = vadd.f32 %v2415, %v2435
        %v2440 = vadd.f32 %v2416, %v2436
        %v2441 = vadd.f32 %v2417, %v2437
        %2442 = vset.pattern.permute.xlu0 41
        %2443 = vperm.xlu0 %2442, %v1329
        %v2444 = vpop.permute.xlu0 %2443
        %2446 = vset.pattern.permute.xlu0 41
        %2447 = vperm.xlu0 %2446, %v1330
        %v2448 = vpop.permute.xlu0 %2447
        %v2450 = vlaneseq
        %v2451 = vshrl.u32 %v2450, 7
        %v2452 = vsub.s32 5, %v2451
        %v2453 = vrot.slane %v2320, %v2452
        %v2454 = vlaneseq
        %v2455 = vshrl.u32 %v2454, 7
        %v2456 = vsub.s32 5, %v2455
        %v2457 = vrot.slane %v2321, %v2456
        %v2458 = vmul.f32 %v2444, %v2453
        %v2459 = vmul.f32 %v2444, %v2457
        %v2460 = vmul.f32 %v2448, %v2453
        %v2461 = vmul.f32 %v2448, %v2457
        %v2462 = vadd.f32 %v2438, %v2458
        %v2463 = vadd.f32 %v2439, %v2459
        %v2464 = vadd.f32 %v2440, %v2460
        %v2465 = vadd.f32 %v2441, %v2461
        %2466 = vrot.lane.b32.xlu0 %v1287, 96
        %v2467 = vpop.permute.xlu0 %2466
        %2468 = vrot.lane.b32.xlu0 %v1288, 96
        %v2469 = vpop.permute.xlu0 %2468
        %vm2470 = vcmask 785408
        %v2471 = vsel %vm2470, %v2467, %v2469
        %v2475 = vsel %vm2470, %v2469, %v2467
        %s2476 = scalar_lea.vmem [#allocation8], 7
        %v2477 = vld [vmem:[%s2476] ss:$8 sm:$0x3]
        %v2479 = vlaneseq
        %v2480 = vshrl.u32 %v2479, 7
        %v2481 = vsub.s32 0, %v2480
        %v2482 = vrot.slane %v2477, %v2481
        %v2483 = vlaneseq
        %v2484 = vshrl.u32 %v2483, 7
        %v2485 = vsub.s32 1, %v2484
        %v2486 = vrot.slane %v2477, %v2485
        %v2489 = vmul.f32 %v2471, %v2482
        %v2490 = vmul.f32 %v2475, %v2486
        %2491 = vset.pattern.permute.xlu0 42
        %2492 = vperm.xlu0 %2491, %v1329
        %v2493 = vpop.permute.xlu0 %2492
        %2495 = vset.pattern.permute.xlu0 42
        %2496 = vperm.xlu0 %2495, %v1330
        %v2497 = vpop.permute.xlu0 %2496
        %v2499 = vlaneseq
        %v2500 = vshrl.u32 %v2499, 7
        %v2501 = vsub.s32 0, %v2500
        %v2502 = vrot.slane %v2489, %v2501
        %v2503 = vlaneseq
        %v2504 = vshrl.u32 %v2503, 7
        %v2505 = vsub.s32 0, %v2504
        %v2506 = vrot.slane %v2490, %v2505
        %v2507 = vmul.f32 %v2493, %v2502
        %v2508 = vmul.f32 %v2493, %v2506
        %v2509 = vmul.f32 %v2497, %v2502
        %v2510 = vmul.f32 %v2497, %v2506
        %v2511 = vadd.f32 %v2462, %v2507
        %v2512 = vadd.f32 %v2463, %v2508
        %v2513 = vadd.f32 %v2464, %v2509
        %v2514 = vadd.f32 %v2465, %v2510
        %2515 = vset.pattern.permute.xlu0 43
        %2516 = vperm.xlu0 %2515, %v1329
        %v2517 = vpop.permute.xlu0 %2516
        %2519 = vset.pattern.permute.xlu0 43
        %2520 = vperm.xlu0 %2519, %v1330
        %v2521 = vpop.permute.xlu0 %2520
        %v2523 = vlaneseq
        %v2524 = vshrl.u32 %v2523, 7
        %v2525 = vsub.s32 1, %v2524
        %v2526 = vrot.slane %v2489, %v2525
        %v2527 = vlaneseq
        %v2528 = vshrl.u32 %v2527, 7
        %v2529 = vsub.s32 1, %v2528
        %v2530 = vrot.slane %v2490, %v2529
        %v2531 = vmul.f32 %v2517, %v2526
        %v2532 = vmul.f32 %v2517, %v2530
        %v2533 = vmul.f32 %v2521, %v2526
        %v2534 = vmul.f32 %v2521, %v2530
        %v2535 = vadd.f32 %v2511, %v2531
        %v2536 = vadd.f32 %v2512, %v2532
        %v2537 = vadd.f32 %v2513, %v2533
        %v2538 = vadd.f32 %v2514, %v2534
        %2539 = vset.pattern.permute.xlu0 44
        %2540 = vperm.xlu0 %2539, %v1329
        %v2541 = vpop.permute.xlu0 %2540
        %2543 = vset.pattern.permute.xlu0 44
        %2544 = vperm.xlu0 %2543, %v1330
        %v2545 = vpop.permute.xlu0 %2544
        %v2547 = vlaneseq
        %v2548 = vshrl.u32 %v2547, 7
        %v2549 = vsub.s32 2, %v2548
        %v2550 = vrot.slane %v2489, %v2549
        %v2551 = vlaneseq
        %v2552 = vshrl.u32 %v2551, 7
        %v2553 = vsub.s32 2, %v2552
        %v2554 = vrot.slane %v2490, %v2553
        %v2555 = vmul.f32 %v2541, %v2550
        %v2556 = vmul.f32 %v2541, %v2554
        %v2557 = vmul.f32 %v2545, %v2550
        %v2558 = vmul.f32 %v2545, %v2554
        %v2559 = vadd.f32 %v2535, %v2555
        %v2560 = vadd.f32 %v2536, %v2556
        %v2561 = vadd.f32 %v2537, %v2557
        %v2562 = vadd.f32 %v2538, %v2558
        %2563 = vset.pattern.permute.xlu0 45
        %2564 = vperm.xlu0 %2563, %v1329
        %v2565 = vpop.permute.xlu0 %2564
        %2567 = vset.pattern.permute.xlu0 45
        %2568 = vperm.xlu0 %2567, %v1330
        %v2569 = vpop.permute.xlu0 %2568
        %v2571 = vlaneseq
        %v2572 = vshrl.u32 %v2571, 7
        %v2573 = vsub.s32 3, %v2572
        %v2574 = vrot.slane %v2489, %v2573
        %v2575 = vlaneseq
        %v2576 = vshrl.u32 %v2575, 7
        %v2577 = vsub.s32 3, %v2576
        %v2578 = vrot.slane %v2490, %v2577
        %v2579 = vmul.f32 %v2565, %v2574
        %v2580 = vmul.f32 %v2565, %v2578
        %v2581 = vmul.f32 %v2569, %v2574
        %v2582 = vmul.f32 %v2569, %v2578
        %v2583 = vadd.f32 %v2559, %v2579
        %v2584 = vadd.f32 %v2560, %v2580
        %v2585 = vadd.f32 %v2561, %v2581
        %v2586 = vadd.f32 %v2562, %v2582
        %2587 = vset.pattern.permute.xlu0 46
        %2588 = vperm.xlu0 %2587, %v1329
        %v2589 = vpop.permute.xlu0 %2588
        %2591 = vset.pattern.permute.xlu0 46
        %2592 = vperm.xlu0 %2591, %v1330
        %v2593 = vpop.permute.xlu0 %2592
        %v2595 = vlaneseq
        %v2596 = vshrl.u32 %v2595, 7
        %v2597 = vsub.s32 4, %v2596
        %v2598 = vrot.slane %v2489, %v2597
        %v2599 = vlaneseq
        %v2600 = vshrl.u32 %v2599, 7
        %v2601 = vsub.s32 4, %v2600
        %v2602 = vrot.slane %v2490, %v2601
        %v2603 = vmul.f32 %v2589, %v2598
        %v2604 = vmul.f32 %v2589, %v2602
        %v2605 = vmul.f32 %v2593, %v2598
        %v2606 = vmul.f32 %v2593, %v2602
        %v2607 = vadd.f32 %v2583, %v2603
        %v2608 = vadd.f32 %v2584, %v2604
        %v2609 = vadd.f32 %v2585, %v2605
        %v2610 = vadd.f32 %v2586, %v2606
        %2611 = vset.pattern.permute.xlu0 47
        %2612 = vperm.xlu0 %2611, %v1329
        %v2613 = vpop.permute.xlu0 %2612
        %2615 = vset.pattern.permute.xlu0 47
        %2616 = vperm.xlu0 %2615, %v1330
        %v2617 = vpop.permute.xlu0 %2616
        %v2619 = vlaneseq
        %v2620 = vshrl.u32 %v2619, 7
        %v2621 = vsub.s32 5, %v2620
        %v2622 = vrot.slane %v2489, %v2621
        %v2623 = vlaneseq
        %v2624 = vshrl.u32 %v2623, 7
        %v2625 = vsub.s32 5, %v2624
        %v2626 = vrot.slane %v2490, %v2625
        %v2627 = vmul.f32 %v2613, %v2622
        %v2628 = vmul.f32 %v2613, %v2626
        %v2629 = vmul.f32 %v2617, %v2622
        %v2630 = vmul.f32 %v2617, %v2626
        %v2631 = vadd.f32 %v2607, %v2627
        %v2632 = vadd.f32 %v2608, %v2628
        %v2633 = vadd.f32 %v2609, %v2629
        %v2634 = vadd.f32 %v2610, %v2630
        %2635 = vrot.lane.b32.xlu0 %v1287, 94
        %v2636 = vpop.permute.xlu0 %2635
        %2637 = vrot.lane.b32.xlu0 %v1288, 94
        %v2638 = vpop.permute.xlu0 %2637
        %vm2639 = vcmask 769024
        %v2640 = vsel %vm2639, %v2636, %v2638
        %v2644 = vsel %vm2639, %v2638, %v2636
        %s2645 = scalar_lea.vmem [#allocation8], 16
        %v2646 = vld [vmem:[%s2645] ss:$8 sm:$0x3]
        %v2648 = vlaneseq
        %v2649 = vshrl.u32 %v2648, 7
        %v2650 = vsub.s32 0, %v2649
        %v2651 = vrot.slane %v2646, %v2650
        %v2652 = vlaneseq
        %v2653 = vshrl.u32 %v2652, 7
        %v2654 = vsub.s32 1, %v2653
        %v2655 = vrot.slane %v2646, %v2654
        %v2658 = vmul.f32 %v2640, %v2651
        %v2659 = vmul.f32 %v2644, %v2655
        %2660 = vset.pattern.permute.xlu0 48
        %2661 = vperm.xlu0 %2660, %v1329
        %v2662 = vpop.permute.xlu0 %2661
        %2664 = vset.pattern.permute.xlu0 48
        %2665 = vperm.xlu0 %2664, %v1330
        %v2666 = vpop.permute.xlu0 %2665
        %v2668 = vlaneseq
        %v2669 = vshrl.u32 %v2668, 7
        %v2670 = vsub.s32 0, %v2669
        %v2671 = vrot.slane %v2658, %v2670
        %v2672 = vlaneseq
        %v2673 = vshrl.u32 %v2672, 7
        %v2674 = vsub.s32 0, %v2673
        %v2675 = vrot.slane %v2659, %v2674
        %v2676 = vmul.f32 %v2662, %v2671
        %v2677 = vmul.f32 %v2662, %v2675
        %v2678 = vmul.f32 %v2666, %v2671
        %v2679 = vmul.f32 %v2666, %v2675
        %v2680 = vadd.f32 %v2631, %v2676
        %v2681 = vadd.f32 %v2632, %v2677
        %v2682 = vadd.f32 %v2633, %v2678
        %v2683 = vadd.f32 %v2634, %v2679
        %2684 = vset.pattern.permute.xlu0 49
        %2685 = vperm.xlu0 %2684, %v1329
        %v2686 = vpop.permute.xlu0 %2685
        %2688 = vset.pattern.permute.xlu0 49
        %2689 = vperm.xlu0 %2688, %v1330
        %v2690 = vpop.permute.xlu0 %2689
        %v2692 = vlaneseq
        %v2693 = vshrl.u32 %v2692, 7
        %v2694 = vsub.s32 1, %v2693
        %v2695 = vrot.slane %v2658, %v2694
        %v2696 = vlaneseq
        %v2697 = vshrl.u32 %v2696, 7
        %v2698 = vsub.s32 1, %v2697
        %v2699 = vrot.slane %v2659, %v2698
        %v2700 = vmul.f32 %v2686, %v2695
        %v2701 = vmul.f32 %v2686, %v2699
        %v2702 = vmul.f32 %v2690, %v2695
        %v2703 = vmul.f32 %v2690, %v2699
        %v2704 = vadd.f32 %v2680, %v2700
        %v2705 = vadd.f32 %v2681, %v2701
        %v2706 = vadd.f32 %v2682, %v2702
        %v2707 = vadd.f32 %v2683, %v2703
        %2708 = vset.pattern.permute.xlu0 50
        %2709 = vperm.xlu0 %2708, %v1329
        %v2710 = vpop.permute.xlu0 %2709
        %2712 = vset.pattern.permute.xlu0 50
        %2713 = vperm.xlu0 %2712, %v1330
        %v2714 = vpop.permute.xlu0 %2713
        %v2716 = vlaneseq
        %v2717 = vshrl.u32 %v2716, 7
        %v2718 = vsub.s32 2, %v2717
        %v2719 = vrot.slane %v2658, %v2718
        %v2720 = vlaneseq
        %v2721 = vshrl.u32 %v2720, 7
        %v2722 = vsub.s32 2, %v2721
        %v2723 = vrot.slane %v2659, %v2722
        %v2724 = vmul.f32 %v2710, %v2719
        %v2725 = vmul.f32 %v2710, %v2723
        %v2726 = vmul.f32 %v2714, %v2719
        %v2727 = vmul.f32 %v2714, %v2723
        %v2728 = vadd.f32 %v2704, %v2724
        %v2729 = vadd.f32 %v2705, %v2725
        %v2730 = vadd.f32 %v2706, %v2726
        %v2731 = vadd.f32 %v2707, %v2727
        %2732 = vset.pattern.permute.xlu0 51
        %2733 = vperm.xlu0 %2732, %v1329
        %v2734 = vpop.permute.xlu0 %2733
        %2736 = vset.pattern.permute.xlu0 51
        %2737 = vperm.xlu0 %2736, %v1330
        %v2738 = vpop.permute.xlu0 %2737
        %v2740 = vlaneseq
        %v2741 = vshrl.u32 %v2740, 7
        %v2742 = vsub.s32 3, %v2741
        %v2743 = vrot.slane %v2658, %v2742
        %v2744 = vlaneseq
        %v2745 = vshrl.u32 %v2744, 7
        %v2746 = vsub.s32 3, %v2745
        %v2747 = vrot.slane %v2659, %v2746
        %v2748 = vmul.f32 %v2734, %v2743
        %v2749 = vmul.f32 %v2734, %v2747
        %v2750 = vmul.f32 %v2738, %v2743
        %v2751 = vmul.f32 %v2738, %v2747
        %v2752 = vadd.f32 %v2728, %v2748
        %v2753 = vadd.f32 %v2729, %v2749
        %v2754 = vadd.f32 %v2730, %v2750
        %v2755 = vadd.f32 %v2731, %v2751
        %2756 = vset.pattern.permute.xlu0 52
        %2757 = vperm.xlu0 %2756, %v1329
        %v2758 = vpop.permute.xlu0 %2757
        %2760 = vset.pattern.permute.xlu0 52
        %2761 = vperm.xlu0 %2760, %v1330
        %v2762 = vpop.permute.xlu0 %2761
        %v2764 = vlaneseq
        %v2765 = vshrl.u32 %v2764, 7
        %v2766 = vsub.s32 4, %v2765
        %v2767 = vrot.slane %v2658, %v2766
        %v2768 = vlaneseq
        %v2769 = vshrl.u32 %v2768, 7
        %v2770 = vsub.s32 4, %v2769
        %v2771 = vrot.slane %v2659, %v2770
        %v2772 = vmul.f32 %v2758, %v2767
        %v2773 = vmul.f32 %v2758, %v2771
        %v2774 = vmul.f32 %v2762, %v2767
        %v2775 = vmul.f32 %v2762, %v2771
        %v2776 = vadd.f32 %v2752, %v2772
        %v2777 = vadd.f32 %v2753, %v2773
        %v2778 = vadd.f32 %v2754, %v2774
        %v2779 = vadd.f32 %v2755, %v2775
        %2780 = vset.pattern.permute.xlu0 53
        %2781 = vperm.xlu0 %2780, %v1329
        %v2782 = vpop.permute.xlu0 %2781
        %2784 = vset.pattern.permute.xlu0 53
        %2785 = vperm.xlu0 %2784, %v1330
        %v2786 = vpop.permute.xlu0 %2785
        %v2788 = vlaneseq
        %v2789 = vshrl.u32 %v2788, 7
        %v2790 = vsub.s32 5, %v2789
        %v2791 = vrot.slane %v2658, %v2790
        %v2792 = vlaneseq
        %v2793 = vshrl.u32 %v2792, 7
        %v2794 = vsub.s32 5, %v2793
        %v2795 = vrot.slane %v2659, %v2794
        %v2796 = vmul.f32 %v2782, %v2791
        %v2797 = vmul.f32 %v2782, %v2795
        %v2798 = vmul.f32 %v2786, %v2791
        %v2799 = vmul.f32 %v2786, %v2795
        %v2800 = vadd.f32 %v2776, %v2796
        %v2801 = vadd.f32 %v2777, %v2797
        %v2802 = vadd.f32 %v2778, %v2798
        %v2803 = vadd.f32 %v2779, %v2799
        %v2804 = vmax.f32 %v2800, 0.0
        %v2805 = vmax.f32 %v2801, 0.0
        %v2806 = vmax.f32 %v2802, 0.0
        %v2807 = vmax.f32 %v2803, 0.0
        %2812 = vrot.lane.b32.xlu0 %v2804, 126
        %v2813 = vpop.permute.xlu0 %2812
        %2814 = vrot.lane.b32.xlu0 %v2805, 126
        %v2815 = vpop.permute.xlu0 %2814
        %2816 = vrot.lane.b32.xlu0 %v2806, 126
        %v2817 = vpop.permute.xlu0 %2816
        %2818 = vrot.lane.b32.xlu0 %v2807, 126
        %v2819 = vpop.permute.xlu0 %2818
        %v2820 = vsel %vm2132, %v2813, %v2815
        %v2821 = vsel %vm2132, %v2817, %v2819
        %v2828 = vsel %vm2132, %v2815, %v2813
        %v2829 = vsel %vm2132, %v2819, %v2817
        %v2830 = vmax.f32 %v2804, %v2820
        %v2831 = vmax.f32 %v2805, %v2828
        %v2832 = vmax.f32 %v2806, %v2821
        %v2833 = vmax.f32 %v2807, %v2829
        %2834 = vrot.lane.b32.xlu0 %v2804, 96
        %v2835 = vpop.permute.xlu0 %2834
        %2836 = vrot.lane.b32.xlu0 %v2805, 96
        %v2837 = vpop.permute.xlu0 %2836
        %2838 = vrot.lane.b32.xlu0 %v2806, 96
        %v2839 = vpop.permute.xlu0 %2838
        %2840 = vrot.lane.b32.xlu0 %v2807, 96
        %v2841 = vpop.permute.xlu0 %2840
        %v2842 = vsel %vm2470, %v2835, %v2837
        %v2843 = vsel %vm2470, %v2839, %v2841
        %v2850 = vsel %vm2470, %v2837, %v2835
        %v2851 = vsel %vm2470, %v2841, %v2839
        %2852 = vrot.lane.b32.xlu0 %v2804, 94
        %v2853 = vpop.permute.xlu0 %2852
        %2854 = vrot.lane.b32.xlu0 %v2805, 94
        %v2855 = vpop.permute.xlu0 %2854
        %2856 = vrot.lane.b32.xlu0 %v2806, 94
        %v2857 = vpop.permute.xlu0 %2856
        %2858 = vrot.lane.b32.xlu0 %v2807, 94
        %v2859 = vpop.permute.xlu0 %2858
        %v2860 = vsel %vm2639, %v2853, %v2855
        %v2861 = vsel %vm2639, %v2857, %v2859
        %v2868 = vsel %vm2639, %v2855, %v2853
        %v2869 = vsel %vm2639, %v2859, %v2857
        %v2870 = vmax.f32 %v2842, %v2860
        %v2871 = vmax.f32 %v2850, %v2868
        %v2872 = vmax.f32 %v2843, %v2861
        %v2873 = vmax.f32 %v2851, %v2869
        %v2874 = vmax.f32 %v2830, %v2870
        %v2875 = vmax.f32 %v2831, %v2871
        %v2876 = vmax.f32 %v2832, %v2872
        %v2877 = vmax.f32 %v2833, %v2873
        %v2878 = vld [vmem:[#allocation10] sm:$0xff]
        %v2879 = vld [vmem:[#allocation10 + $0x8] sm:$0xff]
        %v2880 = vld [vmem:[#allocation10 + $0x10] sm:$0xff]
        %v2881 = vld [vmem:[#allocation10 + $0x18] sm:$0xff]
        %v2882 = vld [vmem:[#allocation10 + $0x20] sm:$0xff]
        %v2883 = vld [vmem:[#allocation10 + $0x28] sm:$0xff]
        %v2884 = vld [vmem:[#allocation10 + $0x30] sm:$0xff]
        %v2885 = vld [vmem:[#allocation10 + $0x38] sm:$0xff]
        %v2886 = vld [vmem:[#allocation10 + $0x40] sm:$0xff]
        %v2887 = vld [vmem:[#allocation10 + $0x48] sm:$0xff]
        %v2888 = vld [vmem:[#allocation10 + $0x50] sm:$0xff]
        %v2889 = vld [vmem:[#allocation10 + $0x58] sm:$0xff]
        %v2890 = vld [vmem:[#allocation10 + $0x60] sm:$0xff]
        %v2891 = vld [vmem:[#allocation10 + $0x68] sm:$0xff]
        %v2892 = vld [vmem:[#allocation10 + $0x70] sm:$0xff]
        %v2893 = vld [vmem:[#allocation10 + $0x78] sm:$0xff]
        %v2894 = vld [vmem:[#allocation10 + $0x80] sm:$0xff]
        %v2895 = vld [vmem:[#allocation10 + $0x88] sm:$0xff]
        %v2896 = vld [vmem:[#allocation10 + $0x90] sm:$0xff]
        %v2897 = vld [vmem:[#allocation10 + $0x98] sm:$0xff]
        %v2898 = vld [vmem:[#allocation10 + $0xa0] sm:$0xff]
        %v2899 = vld [vmem:[#allocation10 + $0xa8] sm:$0xff]
        %v2900 = vld [vmem:[#allocation10 + $0xb0] sm:$0xff]
        %v2901 = vld [vmem:[#allocation10 + $0xb8] sm:$0xff]
        %v2902 = vld [vmem:[#allocation10 + $0xc0] sm:$0xff]
        %v2903 = vld [vmem:[#allocation10 + $0xc8] sm:$0xff]
        %v2904 = vld [vmem:[#allocation10 + $0xd0] sm:$0xff]
        %v2905 = vld [vmem:[#allocation10 + $0xd8] sm:$0xff]
        %v2906 = vld [vmem:[#allocation10 + $0xe0] sm:$0xff]
        %v2907 = vld [vmem:[#allocation10 + $0xe8] sm:$0xff]
        %v2908 = vld [vmem:[#allocation10 + $0xf0] sm:$0xff]
        %v2909 = vld [vmem:[#allocation10 + $0xf8] sm:$0xff]
        %2910 = vmatprep.subr.mxu0 0.0
        %2911 = vmatpush1.msra.mxu0 %v2878
        %2912 = vmatprep.subr.mxu0 0.0
        %2913 = vmatpush1.msra.mxu0 %v2879
        %2914 = vmatprep.subr.mxu0 0.0
        %2915 = vmatpush1.msra.mxu0 %v2880
        %2916 = vmatprep.subr.mxu0 0.0
        %2917 = vmatpush1.msra.mxu0 %v2881
        %2918 = vmatprep.subr.mxu0 0.0
        %2919 = vmatpush1.msra.mxu0 %v2882
        %2920 = vmatprep.subr.mxu0 0.0
        %2921 = vmatpush1.msra.mxu0 %v2883
        %2922 = vmatprep.subr.mxu0 0.0
        %2923 = vmatpush1.msra.mxu0 %v2884
        %2924 = vmatprep.subr.mxu0 0.0
        %2925 = vmatpush1.msra.mxu0 %v2885
        %2926 = vmatprep.subr.mxu0 0.0
        %2927 = vmatpush1.msra.mxu0 %v2886
        %2928 = vmatprep.subr.mxu0 0.0
        %2929 = vmatpush1.msra.mxu0 %v2887
        %2930 = vmatprep.subr.mxu0 0.0
        %2931 = vmatpush1.msra.mxu0 %v2888
        %2932 = vmatprep.subr.mxu0 0.0
        %2933 = vmatpush1.msra.mxu0 %v2889
        %2934 = vmatprep.subr.mxu0 0.0
        %2935 = vmatpush1.msra.mxu0 %v2890
        %2936 = vmatprep.subr.mxu0 0.0
        %2937 = vmatpush1.msra.mxu0 %v2891
        %2938 = vmatprep.subr.mxu0 0.0
        %2939 = vmatpush1.msra.mxu0 %v2892
        %2940 = vmatprep.subr.mxu0 0.0
        %2941 = vmatpush1.msra.mxu0 %v2893
        %2942 = vmatprep.subr.mxu0 0.0
        %2943 = vmatpush1.msra.mxu0 %v2894
        %2944 = vmatprep.subr.mxu0 0.0
        %2945 = vmatpush1.msra.mxu0 %v2895
        %2946 = vmatprep.subr.mxu0 0.0
        %2947 = vmatpush1.msra.mxu0 %v2896
        %2948 = vmatprep.subr.mxu0 0.0
        %2949 = vmatpush1.msra.mxu0 %v2897
        %2950 = vmatprep.subr.mxu0 0.0
        %2951 = vmatpush1.msra.mxu0 %v2898
        %2952 = vmatprep.subr.mxu0 0.0
        %2953 = vmatpush1.msra.mxu0 %v2899
        %2954 = vmatprep.subr.mxu0 0.0
        %2955 = vmatpush1.msra.mxu0 %v2900
        %2956 = vmatprep.subr.mxu0 0.0
        %2957 = vmatpush1.msra.mxu0 %v2901
        %2958 = vmatprep.subr.mxu0 0.0
        %2959 = vmatpush1.msra.mxu0 %v2902
        %2960 = vmatprep.subr.mxu0 0.0
        %2961 = vmatpush1.msra.mxu0 %v2903
        %2962 = vmatprep.subr.mxu0 0.0
        %2963 = vmatpush1.msra.mxu0 %v2904
        %2964 = vmatprep.subr.mxu0 0.0
        %2965 = vmatpush1.msra.mxu0 %v2905
        %2966 = vmatprep.subr.mxu0 0.0
        %2967 = vmatpush1.msra.mxu0 %v2906
        %2968 = vmatprep.subr.mxu0 0.0
        %2969 = vmatpush1.msra.mxu0 %v2907
        %2970 = vmatprep.subr.mxu0 0.0
        %2971 = vmatpush1.msra.mxu0 %v2908
        %2972 = vmatprep.subr.mxu0 0.0
        %2973 = vmatpush1.msra.mxu0 %v2909
        %2974 = vmatprep.mubr.f32.mxu0 %v2875
        %2975 = vmatmul.mubr.f32.gmra.mrb[0].mxu0 %v2874
        %v2976 = vpop.f32.mrb[0].mxu0
        %v2977 = vadd.f32 0.0, %v2976
        %v2978 = vpop.f32.mrb[0].mxu0
        %2979 = vmatprep.mubr.f32.mxu0 %v2877
        %2980 = vmatmul.mubr.f32.gmra.mrb[0].mxu0 %v2876
        %v2981 = vpop.f32.mrb[0].mxu0
        %v2982 = vadd.f32 0.0, %v2981
        %v2983 = vpop.f32.mrb[0].mxu0
        %2984 = vdwg.mxu0
        %v2986 = vrot.slane %v2977, 1
        %2987 = vrot.lane.b32.xlu0 %v2986, 16
        %v2988 = vpop.permute.xlu0 %2987
        %v2990 = vrot.slane %v2977, 2
        %2991 = vrot.lane.b32.xlu0 %v2990, 32
        %v2992 = vpop.permute.xlu0 %2991
        %v2994 = vrot.slane %v2977, 3
        %2995 = vrot.lane.b32.xlu0 %v2994, 48
        %v2996 = vpop.permute.xlu0 %2995
        %v2998 = vrot.slane %v2977, 4
        %2999 = vrot.lane.b32.xlu0 %v2998, 64
        %v3000 = vpop.permute.xlu0 %2999
        %v3002 = vrot.slane %v2977, 5
        %3003 = vrot.lane.b32.xlu0 %v3002, 80
        %v3004 = vpop.permute.xlu0 %3003
        %v3006 = vrot.slane %v2977, 6
        %3007 = vrot.lane.b32.xlu0 %v3006, 96
        %v3008 = vpop.permute.xlu0 %3007
        %v3010 = vrot.slane %v2977, 7
        %3011 = vrot.lane.b32.xlu0 %v3010, 112
        %v3012 = vpop.permute.xlu0 %3011
        %v3015 = vrot.slane %v2982, 1
        %3016 = vrot.lane.b32.xlu0 %v3015, 16
        %v3017 = vpop.permute.xlu0 %3016
        %v3019 = vrot.slane %v2982, 2
        %3020 = vrot.lane.b32.xlu0 %v3019, 32
        %v3021 = vpop.permute.xlu0 %3020
        %v3023 = vrot.slane %v2982, 3
        %3024 = vrot.lane.b32.xlu0 %v3023, 48
        %v3025 = vpop.permute.xlu0 %3024
        %v3027 = vrot.slane %v2982, 4
        %3028 = vrot.lane.b32.xlu0 %v3027, 64
        %v3029 = vpop.permute.xlu0 %3028
        %v3031 = vrot.slane %v2982, 5
        %3032 = vrot.lane.b32.xlu0 %v3031, 80
        %v3033 = vpop.permute.xlu0 %3032
        %v3035 = vrot.slane %v2982, 6
        %3036 = vrot.lane.b32.xlu0 %v3035, 96
        %v3037 = vpop.permute.xlu0 %3036
        %v3039 = vrot.slane %v2982, 7
        %3040 = vrot.lane.b32.xlu0 %v3039, 112
        %v3041 = vpop.permute.xlu0 %3040
        %v3043 = vsel %vm654, %v2977, %v2988
        %v3044 = vsel %vm1482, %v3043, %v2992
        %vm3045 = vcmask 392192
        %v3046 = vsel %vm3045, %v3044, %v2996
        %vm3047 = vcmask 523264
        %v3048 = vsel %vm3047, %v3046, %v3000
        %vm3049 = vcmask 654336
        %v3050 = vsel %vm3049, %v3048, %v3004
        %v3051 = vsel %vm2470, %v3050, %v3008
        %v3052 = vsel %vm1106, %v3051, %v3012
        %v3053 = vsel %vm654, %v2982, %v3017
        %v3054 = vsel %vm1482, %v3053, %v3021
        %v3055 = vsel %vm3045, %v3054, %v3025
        %v3056 = vsel %vm3047, %v3055, %v3029
        %v3057 = vsel %vm3049, %v3056, %v3033
        %v3058 = vsel %vm2470, %v3057, %v3037
        %v3059 = vsel %vm1106, %v3058, %v3041
        %v3060 = vld [vmem:[#allocation11] sm:$0xff]
        %v3061 = vld [vmem:[#allocation11 + $0x8] sm:$0xff]
        %v3062 = vld [vmem:[#allocation11 + $0x10] sm:$0xff]
        %v3063 = vld [vmem:[#allocation11 + $0x18] sm:$0xff]
        %v3064 = vld [vmem:[#allocation11 + $0x20] sm:$0xff]
        %v3065 = vld [vmem:[#allocation11 + $0x28] sm:$0xff]
        %v3066 = vld [vmem:[#allocation11 + $0x30] sm:$0xff]
        %v3067 = vld [vmem:[#allocation11 + $0x38] sm:$0xff]
        %v3068 = vld [vmem:[#allocation11 + $0x40] sm:$0xff]
        %v3069 = vld [vmem:[#allocation11 + $0x48] sm:$0xff]
        %v3070 = vld [vmem:[#allocation11 + $0x50] sm:$0xff]
        %v3071 = vld [vmem:[#allocation11 + $0x58] sm:$0xff]
        %v3072 = vld [vmem:[#allocation11 + $0x60] sm:$0xff]
        %v3073 = vld [vmem:[#allocation11 + $0x68] sm:$0xff]
        %v3074 = vld [vmem:[#allocation11 + $0x70] sm:$0xff]
        %v3075 = vld [vmem:[#allocation11 + $0x78] sm:$0xff]
        %v3076 = vld [vmem:[#allocation11 + $0x80] sm:$0xff]
        %v3077 = vld [vmem:[#allocation11 + $0x88] sm:$0xff]
        %v3078 = vld [vmem:[#allocation11 + $0x90] sm:$0xff]
        %v3079 = vld [vmem:[#allocation11 + $0x98] sm:$0xff]
        %v3080 = vld [vmem:[#allocation11 + $0xa0] sm:$0xff]
        %v3081 = vld [vmem:[#allocation11 + $0xa8] sm:$0xff]
        %v3082 = vld [vmem:[#allocation11 + $0xb0] sm:$0xff]
        %v3083 = vld [vmem:[#allocation11 + $0xb8] sm:$0xff]
        %v3084 = vld [vmem:[#allocation11 + $0xc0] sm:$0xff]
        %v3085 = vld [vmem:[#allocation11 + $0xc8] sm:$0xff]
        %v3086 = vld [vmem:[#allocation11 + $0xd0] sm:$0xff]
        %v3087 = vld [vmem:[#allocation11 + $0xd8] sm:$0xff]
        %v3088 = vld [vmem:[#allocation11 + $0xe0] sm:$0xff]
        %v3089 = vld [vmem:[#allocation11 + $0xe8] sm:$0xff]
        %v3090 = vld [vmem:[#allocation11 + $0xf0] sm:$0xff]
        %v3091 = vld [vmem:[#allocation11 + $0xf8] sm:$0xff]
        %v3092 = vld [vmem:[%s9] sm:$0x1]
        %3093 = vmatprep.subr.mxu0 0.0
        %3094 = vmatpush1.msra.mxu0 %v3060
        %3095 = vmatprep.subr.mxu0 0.0
        %3096 = vmatpush1.msra.mxu0 %v3061
        %3097 = vmatprep.subr.mxu0 0.0
        %3098 = vmatpush1.msra.mxu0 %v3062
        %3099 = vmatprep.subr.mxu0 0.0
        %3100 = vmatpush1.msra.mxu0 %v3063
        %3101 = vmatprep.subr.mxu0 0.0
        %3102 = vmatpush1.msra.mxu0 %v3064
        %3103 = vmatprep.subr.mxu0 0.0
        %3104 = vmatpush1.msra.mxu0 %v3065
        %3105 = vmatprep.subr.mxu0 0.0
        %3106 = vmatpush1.msra.mxu0 %v3066
        %3107 = vmatprep.subr.mxu0 0.0
        %3108 = vmatpush1.msra.mxu0 %v3067
        %3109 = vmatprep.subr.mxu0 0.0
        %3110 = vmatpush1.msra.mxu0 %v3068
        %3111 = vmatprep.subr.mxu0 0.0
        %3112 = vmatpush1.msra.mxu0 %v3069
        %3113 = vmatprep.subr.mxu0 0.0
        %3114 = vmatpush1.msra.mxu0 %v3070
        %3115 = vmatprep.subr.mxu0 0.0
        %3116 = vmatpush1.msra.mxu0 %v3071
        %3117 = vmatprep.subr.mxu0 0.0
        %3118 = vmatpush1.msra.mxu0 %v3072
        %3119 = vmatprep.subr.mxu0 0.0
        %3120 = vmatpush1.msra.mxu0 %v3073
        %3121 = vmatprep.subr.mxu0 0.0
        %3122 = vmatpush1.msra.mxu0 %v3074
        %3123 = vmatprep.subr.mxu0 0.0
        %3124 = vmatpush1.msra.mxu0 %v3075
        %3125 = vmatprep.subr.mxu0 0.0
        %3126 = vmatpush1.msra.mxu0 %v3076
        %3127 = vmatprep.subr.mxu0 0.0
        %3128 = vmatpush1.msra.mxu0 %v3077
        %3129 = vmatprep.subr.mxu0 0.0
        %3130 = vmatpush1.msra.mxu0 %v3078
        %3131 = vmatprep.subr.mxu0 0.0
        %3132 = vmatpush1.msra.mxu0 %v3079
        %3133 = vmatprep.subr.mxu0 0.0
        %3134 = vmatpush1.msra.mxu0 %v3080
        %3135 = vmatprep.subr.mxu0 0.0
        %3136 = vmatpush1.msra.mxu0 %v3081
        %3137 = vmatprep.subr.mxu0 0.0
        %3138 = vmatpush1.msra.mxu0 %v3082
        %3139 = vmatprep.subr.mxu0 0.0
        %3140 = vmatpush1.msra.mxu0 %v3083
        %3141 = vmatprep.subr.mxu0 0.0
        %3142 = vmatpush1.msra.mxu0 %v3084
        %3143 = vmatprep.subr.mxu0 0.0
        %3144 = vmatpush1.msra.mxu0 %v3085
        %3145 = vmatprep.subr.mxu0 0.0
        %3146 = vmatpush1.msra.mxu0 %v3086
        %3147 = vmatprep.subr.mxu0 0.0
        %3148 = vmatpush1.msra.mxu0 %v3087
        %3149 = vmatprep.subr.mxu0 0.0
        %3150 = vmatpush1.msra.mxu0 %v3088
        %3151 = vmatprep.subr.mxu0 0.0
        %3152 = vmatpush1.msra.mxu0 %v3089
        %3153 = vmatprep.subr.mxu0 0.0
        %3154 = vmatpush1.msra.mxu0 %v3090
        %3155 = vmatprep.subr.mxu0 0.0
        %3156 = vmatpush1.msra.mxu0 %v3091
        %3157 = vmatprep.mubr.f32.mxu0 %v3059
        %3158 = vmatmul.mubr.f32.gmra.mrb[0].mxu0 %v3052
        %v3159 = vpop.f32.mrb[0].mxu0
        %v3160 = vadd.f32 %v3092, %v3159
        %v3161 = vpop.f32.mrb[0].mxu0
        %3162 = vdwg.mxu0
        %v3163 = vmax.f32 %v3160, 0.0
        %v3164 = vld [vmem:[#allocation13] sm:$0xff]
        %v3165 = vld [vmem:[#allocation13 + $0x8] sm:$0xff]
        %v3166 = vld [vmem:[#allocation13 + $0x10] sm:$0xff]
        %v3167 = vld [vmem:[#allocation13 + $0x18] sm:$0xff]
        %v3168 = vld [vmem:[#allocation13 + $0x20] sm:$0xff]
        %v3169 = vld [vmem:[#allocation13 + $0x28] sm:$0xff]
        %v3170 = vld [vmem:[#allocation13 + $0x30] sm:$0xff]
        %v3171 = vld [vmem:[#allocation13 + $0x38] sm:$0xff]
        %v3172 = vld [vmem:[#allocation13 + $0x40] sm:$0xff]
        %v3173 = vld [vmem:[#allocation13 + $0x48] sm:$0xff]
        %v3174 = vld [vmem:[#allocation13 + $0x50] sm:$0xff]
        %v3175 = vld [vmem:[#allocation13 + $0x58] sm:$0xff]
        %v3176 = vld [vmem:[#allocation13 + $0x60] sm:$0xff]
        %v3177 = vld [vmem:[#allocation13 + $0x68] sm:$0xff]
        %v3178 = vld [vmem:[#allocation13 + $0x70] sm:$0xff]
        %v3179 = vld [vmem:[#allocation13 + $0x78] sm:$0xff]
        %v3180 = vld [vmem:[%s11] sm:$0x1]
        %3181 = vmatprep.subr.mxu0 0.0
        %3182 = vmatpush1.msra.mxu0 %v3164
        %3183 = vmatprep.subr.mxu0 0.0
        %3184 = vmatpush1.msra.mxu0 %v3165
        %3185 = vmatprep.subr.mxu0 0.0
        %3186 = vmatpush1.msra.mxu0 %v3166
        %3187 = vmatprep.subr.mxu0 0.0
        %3188 = vmatpush1.msra.mxu0 %v3167
        %3189 = vmatprep.subr.mxu0 0.0
        %3190 = vmatpush1.msra.mxu0 %v3168
        %3191 = vmatprep.subr.mxu0 0.0
        %3192 = vmatpush1.msra.mxu0 %v3169
        %3193 = vmatprep.subr.mxu0 0.0
        %3194 = vmatpush1.msra.mxu0 %v3170
        %3195 = vmatprep.subr.mxu0 0.0
        %3196 = vmatpush1.msra.mxu0 %v3171
        %3197 = vmatprep.subr.mxu0 0.0
        %3198 = vmatpush1.msra.mxu0 %v3172
        %3199 = vmatprep.subr.mxu0 0.0
        %3200 = vmatpush1.msra.mxu0 %v3173
        %3201 = vmatprep.subr.mxu0 0.0
        %3202 = vmatpush1.msra.mxu0 %v3174
        %3203 = vmatprep.subr.mxu0 0.0
        %3204 = vmatpush1.msra.mxu0 %v3175
        %3205 = vmatprep.subr.mxu0 0.0
        %3206 = vmatpush1.msra.mxu0 %v3176
        %3207 = vmatprep.subr.mxu0 0.0
        %3208 = vmatpush1.msra.mxu0 %v3177
        %3209 = vmatprep.subr.mxu0 0.0
        %3210 = vmatpush1.msra.mxu0 %v3178
        %3211 = vmatprep.subr.mxu0 0.0
        %3212 = vmatpush1.msra.mxu0 %v3179
        %3213 = vmatprep.subr.mxu0 0.0
        %3214 = vmatpush1.msra.mxu0 0.0
        %3215 = vmatprep.subr.mxu0 0.0
        %3216 = vmatpush1.msra.mxu0 0.0
        %3217 = vmatprep.subr.mxu0 0.0
        %3218 = vmatpush1.msra.mxu0 0.0
        %3219 = vmatprep.subr.mxu0 0.0
        %3220 = vmatpush1.msra.mxu0 0.0
        %3221 = vmatprep.subr.mxu0 0.0
        %3222 = vmatpush1.msra.mxu0 0.0
        %3223 = vmatprep.subr.mxu0 0.0
        %3224 = vmatpush1.msra.mxu0 0.0
        %3225 = vmatprep.subr.mxu0 0.0
        %3226 = vmatpush1.msra.mxu0 0.0
        %3227 = vmatprep.subr.mxu0 0.0
        %3228 = vmatpush1.msra.mxu0 0.0
        %3229 = vmatprep.subr.mxu0 0.0
        %3230 = vmatpush1.msra.mxu0 0.0
        %3231 = vmatprep.subr.mxu0 0.0
        %3232 = vmatpush1.msra.mxu0 0.0
        %3233 = vmatprep.subr.mxu0 0.0
        %3234 = vmatpush1.msra.mxu0 0.0
        %3235 = vmatprep.subr.mxu0 0.0
        %3236 = vmatpush1.msra.mxu0 0.0
        %3237 = vmatprep.subr.mxu0 0.0
        %3238 = vmatpush1.msra.mxu0 0.0
        %3239 = vmatprep.subr.mxu0 0.0
        %3240 = vmatpush1.msra.mxu0 0.0
        %3241 = vmatprep.subr.mxu0 0.0
        %3242 = vmatpush1.msra.mxu0 0.0
        %3243 = vmatprep.subr.mxu0 0.0
        %3244 = vmatpush1.msra.mxu0 0.0
        %3245 = vmatprep.mubr.f32.mxu0 0.0
        %3246 = vmatmul.mubr.f32.gmra.mrb[0].mxu0 %v3163
        %v3247 = vpop.f32.mrb[0].mxu0
        %v3248 = vadd.f32 %v3180, %v3247
        %v3249 = vpop.f32.mrb[0].mxu0
        %3250 = vdwg.mxu0
        %v3251 = vmax.f32 %v3248, 0.0
        %v3252 = vld [vmem:[%s12] sm:$0xff]
        %v3253 = vld [vmem:[%s12 + $0x8] sm:$0xff]
        %v3254 = vld [vmem:[%s12 + $0x10] sm:$0xff]
        %v3255 = vld [vmem:[%s12 + $0x18] sm:$0xff]
        %v3256 = vld [vmem:[%s12 + $0x20] sm:$0xff]
        %v3257 = vld [vmem:[%s12 + $0x28] sm:$0xff]
        %v3258 = vld [vmem:[%s12 + $0x30] sm:$0xff]
        %v3259 = vld [vmem:[%s12 + $0x38] sm:$0xff]
        %v3260 = vld [vmem:[%s12 + $0x40] sm:$0xff]
        %v3261 = vld [vmem:[%s12 + $0x48] sm:$0xff]
        %v3262 = vld [vmem:[%s12 + $0x50] sm:$0xff]
        %v3263 = vld [vmem:[%s12 + $0x58] sm:$0xff]
        %v3264 = vld [vmem:[%s12 + $0x60] sm:$0xff]
        %v3265 = vld [vmem:[%s12 + $0x68] sm:$0xff]
        %v3266 = vld [vmem:[%s12 + $0x70] sm:$0xff]
        %v3267 = vld [vmem:[%s12 + $0x78] sm:$0xff]
        %v3268 = vld [vmem:[%s13] sm:$0x1]
        %3269 = vmatprep.subr.mxu0 0.0
        %3270 = vmatpush1.msra.mxu0 %v3252
        %3271 = vmatprep.subr.mxu0 0.0
        %3272 = vmatpush1.msra.mxu0 %v3253
        %3273 = vmatprep.subr.mxu0 0.0
        %3274 = vmatpush1.msra.mxu0 %v3254
        %3275 = vmatprep.subr.mxu0 0.0
        %3276 = vmatpush1.msra.mxu0 %v3255
        %3277 = vmatprep.subr.mxu0 0.0
        %3278 = vmatpush1.msra.mxu0 %v3256
        %3279 = vmatprep.subr.mxu0 0.0
        %3280 = vmatpush1.msra.mxu0 %v3257
        %3281 = vmatprep.subr.mxu0 0.0
        %3282 = vmatpush1.msra.mxu0 %v3258
        %3283 = vmatprep.subr.mxu0 0.0
        %3284 = vmatpush1.msra.mxu0 %v3259
        %3285 = vmatprep.subr.mxu0 0.0
        %3286 = vmatpush1.msra.mxu0 %v3260
        %3287 = vmatprep.subr.mxu0 0.0
        %3288 = vmatpush1.msra.mxu0 %v3261
        %3289 = vmatprep.subr.mxu0 0.0
        %3290 = vmatpush1.msra.mxu0 %v3262
        %3291 = vmatprep.subr.mxu0 0.0
        %3292 = vmatpush1.msra.mxu0 %v3263
        %3293 = vmatprep.subr.mxu0 0.0
        %3294 = vmatpush1.msra.mxu0 %v3264
        %3295 = vmatprep.subr.mxu0 0.0
        %3296 = vmatpush1.msra.mxu0 %v3265
        %3297 = vmatprep.subr.mxu0 0.0
        %3298 = vmatpush1.msra.mxu0 %v3266
        %3299 = vmatprep.subr.mxu0 0.0
        %3300 = vmatpush1.msra.mxu0 %v3267
        %3301 = vmatprep.subr.mxu0 0.0
        %3302 = vmatpush1.msra.mxu0 0.0
        %3303 = vmatprep.subr.mxu0 0.0
        %3304 = vmatpush1.msra.mxu0 0.0
        %3305 = vmatprep.subr.mxu0 0.0
        %3306 = vmatpush1.msra.mxu0 0.0
        %3307 = vmatprep.subr.mxu0 0.0
        %3308 = vmatpush1.msra.mxu0 0.0
        %3309 = vmatprep.subr.mxu0 0.0
        %3310 = vmatpush1.msra.mxu0 0.0
        %3311 = vmatprep.subr.mxu0 0.0
        %3312 = vmatpush1.msra.mxu0 0.0
        %3313 = vmatprep.subr.mxu0 0.0
        %3314 = vmatpush1.msra.mxu0 0.0
        %3315 = vmatprep.subr.mxu0 0.0
        %3316 = vmatpush1.msra.mxu0 0.0
        %3317 = vmatprep.subr.mxu0 0.0
        %3318 = vmatpush1.msra.mxu0 0.0
        %3319 = vmatprep.subr.mxu0 0.0
        %3320 = vmatpush1.msra.mxu0 0.0
        %3321 = vmatprep.subr.mxu0 0.0
        %3322 = vmatpush1.msra.mxu0 0.0
        %3323 = vmatprep.subr.mxu0 0.0
        %3324 = vmatpush1.msra.mxu0 0.0
        %3325 = vmatprep.subr.mxu0 0.0
        %3326 = vmatpush1.msra.mxu0 0.0
        %3327 = vmatprep.subr.mxu0 0.0
        %3328 = vmatpush1.msra.mxu0 0.0
        %3329 = vmatprep.subr.mxu0 0.0
        %3330 = vmatpush1.msra.mxu0 0.0
        %3331 = vmatprep.subr.mxu0 0.0
        %3332 = vmatpush1.msra.mxu0 0.0
        %3333 = vmatprep.mubr.f32.mxu0 0.0
        %3334 = vmatmul.mubr.f32.gmra.mrb[0].mxu0 %v3251
        %v3335 = vpop.f32.mrb[0].mxu0
        %v3336 = vadd.f32 %v3268, %v3335
        %v3337 = vpop.f32.mrb[0].mxu0
        %3338 = vdwg.mxu0
        %3339 = vst [vmem:[%s559] sm:$0x1] %v3336
        %s3340 = sand.u32 %s339, 1
        %s3341 = scalar_lea.sflag [#allocation4], %s3340
        %s3342 = sand.u32 %s339, 1
        %s3343 = scalar_lea.vmem [#allocation14], %s3342
        // Predicated region
        $region105: #{_lambda_.1} parent=75 // pred_check
          %p3344 = pneg %p349
        $region106: #{_lambda_.1} parent=75 // pred_check_branch
          %3346 = sbr.rel (%p3344) target = $region108
        $region107: #{_lambda_.1} parent=75 // pred_region
          %s3348 = ssub.s32 16, 16
          %3349 = vsyncadd %s3341, %s3348
          %s3350 = smul.addr %s32, 16
          %s3351 = scalar_lea.hbm %s14, %s3350
          %s3353 = sshll.u32 %s3343, 4
          %s3354 = int_to_ptr.vmem [resolvable:$true] %s3353
          %3356 = dma.vmem_to_hbm [thread:$0]  %s3354, 16, %s3351, %s3341
        $region108: #{_lambda_.1} parent=75 // pred_fallthru
          _
      $region76: #{_lambda_.1} parent=5 // pred_fallthru
        _
      %p3357 = scmp.le.s32.totalorder 2, %s27
      // Predicated region
      $region109: #{_lambda_.1} parent=5 // pred_check
        %p3358 = pneg %p3357
      $region110: #{_lambda_.1} parent=5 // pred_check_branch
        %3360 = sbr.rel (%p3358) target = $region112
      $region111: #{_lambda_.1} parent=5 // pred_region
        %s3361 = ssub.s32 %s27, 2
        // Predicated region
        $region113: #{_lambda_.1} parent=111 // pred_check
          %p3362 = pneg %p355
        $region114: #{_lambda_.1} parent=111 // pred_check_branch
          %3364 = sbr.rel (%p3362) target = $region116
        $region115: #{_lambda_.1} parent=111 // pred_region
          %s3365 = sand.u32 %s340, 1
          %s3366 = scalar_lea.sflag [#allocation4], %s3365
          %s3367 = sand.u32 %s340, 1
          %s3368 = scalar_lea.vmem [#allocation14], %s3367
          %3369 = dma.done %s3366, 16
        $region116: #{_lambda_.1} parent=111 // pred_fallthru
          _
      $region112: #{_lambda_.1} parent=5 // pred_fallthru
        _
    $region6: #{_lambda_.1} parent=1 // loop_footer
      %s31 = sadd.s32 1, %s27
    $region7: #{_lambda_.1} parent=1 // loop_footer_branch
      %26 = sbr.rel target = $region3
    $region8: #{_lambda_.1} parent=1 // loop_exit
      _
    %3370 = vsyncpa [#allocation3], 1
    %s3371 = scalar_lea.sflag [#allocation3], 1
    %3372 = vsyncpa %s3371, 1
    %3373 = vsyncpa [#allocation6], 1
    %3374 = vsyncpa [#allocation9], 1
    %3375 = vsyncpa [#allocation12], 1
    %3376 = vsyncpa [#allocation4], 1
    %s3377 = scalar_lea.sflag [#allocation4], 1
    %3378 = vsyncpa %s3377, 1

</llo_original>
